<compile_context>
chip_gen: v7x
topology: tpu7x:2x2x1
jax: 0.10.0
libtpu: 0.0.40
codegen_flags: <defaults>
</compile_context>

<pallas_src>
import jax
import jax.numpy as jnp
from jax import lax
from jax.experimental import pallas as pl
from jax.experimental.pallas import tpu as pltpu

# ---------------- small synthetic config ----------------
HIDDEN = 32      # D  (hidden_size)
SEQ = 8          # T
BATCH = 2        # B
E_INNER = 64     # mamba inner dim (expand * hidden)
D_STATE = 8      # mamba SSM state size N
D_CONV = 4       # mamba depthwise conv width K
DT_RANK = 8
N_HEADS = 4
HEAD_DIM = HIDDEN // N_HEADS
FFN_DIM = 64
LATENT = 1024    # latent_dim_pi == latent_dim_vf
EPS = 1e-6


def _sigmoid(x):
    return 1.0 / (1.0 + jnp.exp(-x))


def _silu(x):
    return x * _sigmoid(x)


def _softplus(x):
    # numerically stable softplus (no overflow for large |x|)
    return jnp.maximum(x, 0.0) + jnp.log(1.0 + jnp.exp(-jnp.abs(x)))


def _rms(h, w, eps=EPS):
    var = jnp.mean(h * h, axis=-1, keepdims=True)
    return h * lax.rsqrt(var + eps) * w


def _mm(a, b):
    return jnp.dot(a, b, preferred_element_type=jnp.float32)


# ============================ fused Pallas kernel ============================

def _jamba_fused_kernel(
    x_ref,
    mnorm_ref, min_w_ref, min_b_ref,
    conv_w_ref, conv_b_ref,
    xproj_w_ref, xproj_b_ref, A_ref, Dvec_ref,
    mout_w_ref, mout_b_ref,
    mffn_norm_ref, mffn_wgu_ref, mffn_wd_ref,
    anorm_ref, qkv_w_ref, qkv_b_ref, ao_w_ref, ao_b_ref,
    affn_norm_ref, affn_wgu_ref, affn_wd_ref,
    fnorm_ref, head_w_ref, head_b_ref,
    o_ref,
):
    M, D = x_ref.shape
    B = o_ref.shape[0]
    T = M // B
    N, E = A_ref.shape
    K = conv_w_ref.shape[0]
    I = mffn_wd_ref.shape[0]
    H = N_HEADS
    DH = D // H
    NEG = jnp.finfo(jnp.float32).min

    x = x_ref[...]                                        # (M, D) residual stream

    # ================= layer 0 : Mamba mixer =================
    h = _rms(x, mnorm_ref[...])
    xz = _mm(h, min_w_ref[...]) + min_b_ref[...]          # (M, 2E), 128-lane matmul
    xpart = xz[:, :E]
    z = xz[:, E:]

    # causal depthwise conv over time: shifted views of the loaded value plus a
    # batch-boundary mask (no per-tap ref slicing, no HBM traffic).
    conv_w = conv_w_ref[...]                              # (K, E)
    tpos = lax.broadcasted_iota(jnp.int32, (M, E), 0) % T
    acc = xpart * conv_w[K - 1:K, :]                      # shift-0 tap
    for s in range(1, K):
        shifted = jnp.concatenate(
            [jnp.zeros((s, E), jnp.float32), xpart[:M - s, :]], axis=0)
        shifted = jnp.where(tpos >= s, shifted, 0.0)      # no cross-batch leakage
        acc = acc + shifted * conv_w[K - 1 - s:K - s, :]
    u = _silu(acc + conv_b_ref[...])                      # (M, E)

    # fused x-projection: [dt_raw | B | C]  (dt_proj folded in on the host)
    xdbc = _mm(u, xproj_w_ref[...]) + xproj_b_ref[...]    # (M, E + 2N)
    dt = _softplus(xdbc[:, :E])                           # (M, E)  hoisted
    dtu = dt * u                                          # hoisted
    gate = _silu(z)                                       # hoisted
    bc_t = jnp.transpose(xdbc[:, E:E + 2 * N])            # (2N, M): one transpose
    Bt = bc_t[:N, :]                                      # (N, M)
    Ct = bc_t[N:, :]                                      # (N, M)
    A = A_ref[...]                                        # (N, E) = -exp(A_log)

    # Selective scan, statically unrolled.  Only h = dA*h + dBu (+ the C
    # reduction) sit on the serial chain; the per-step exp / dBu depend only on
    # already-computed projections, so the scheduler overlaps them across steps.
    ys = []
    for b in range(B):
        hstate = jnp.zeros((N, E), jnp.float32)
        for t in range(T):
            r = b * T + t
            dA = jnp.exp(dt[r:r + 1, :] * A)              # (N, E)
            dBu = dtu[r:r + 1, :] * Bt[:, r:r + 1]        # (N, E) outer product
            hstate = dA * hstate + dBu
            ys.append(jnp.sum(hstate * Ct[:, r:r + 1], axis=0, keepdims=True))
    y = jnp.concatenate(ys, axis=0)                       # (M, E), assembled once
    y = (y + u * Dvec_ref[...]) * gate
    x = x + _mm(y, mout_w_ref[...]) + mout_b_ref[...]

    # gated-SiLU FFN (gate|up fused -> single 128-lane matmul)
    h = _rms(x, mffn_norm_ref[...])
    gu = _mm(h, mffn_wgu_ref[...])                        # (M, 2I)
    x = x + _mm(_silu(gu[:, :I]) * gu[:, I:], mffn_wd_ref[...])

    # ================= layer 1 : causal attention =================
    h = _rms(x, anorm_ref[...])
    qkv = _mm(h, qkv_w_ref[...]) + qkv_b_ref[...]         # (M, 3D)
    q, k, v = qkv[:, :D], qkv[:, D:2 * D], qkv[:, 2 * D:]

    row = lax.broadcasted_iota(jnp.int32, (T, T), 0)
    col = lax.broadcasted_iota(jnp.int32, (T, T), 1)
    causal = col <= row
    scale = 1.0 / (DH ** 0.5)

    attn_rows = []
    for b in range(B):
        qb = q[b * T:(b + 1) * T, :]
        kb = k[b * T:(b + 1) * T, :]
        vb = v[b * T:(b + 1) * T, :]
        heads = []
        for hh in range(H):
            sl = slice(hh * DH, (hh + 1) * DH)
            s = _mm(qb[:, sl], kb[:, sl].T) * scale       # (T, T)
            s = jnp.where(causal, s, NEG)                 # dtype-safe mask value
            s = s - jnp.max(s, axis=-1, keepdims=True)
            p = jnp.exp(s)
            p = p / jnp.sum(p, axis=-1, keepdims=True)
            heads.append(_mm(p, vb[:, sl]))
        attn_rows.append(jnp.concatenate(heads, axis=1))
    attn = jnp.concatenate(attn_rows, axis=0)             # (M, D)
    x = x + _mm(attn, ao_w_ref[...]) + ao_b_ref[...]

    h = _rms(x, affn_norm_ref[...])
    gu = _mm(h, affn_wgu_ref[...])
    x = x + _mm(_silu(gu[:, :I]) * gu[:, I:], affn_wd_ref[...])

    # ============ final RMSNorm + latent head (last token only) ============
    last = jnp.concatenate(
        [x[b * T + T - 1:b * T + T, :] for b in range(B)], axis=0)   # (B, D)
    last = _rms(last, fnorm_ref[...])
    o_ref[...] = _mm(last, head_w_ref[...]) + head_b_ref[...]        # (B, 1024)


# ============================ parameters ============================

def init_params(key):
    D, E, N, K, R = HIDDEN, E_INNER, D_STATE, D_CONV, DT_RANK
    I = FFN_DIM

    def nrm(k, shape, scale=0.02):
        return scale * jax.random.normal(k, shape, jnp.float32)

    ks = iter(jax.random.split(key, 32))
    p = {}
    # --- layer 0: Mamba mixer + FFN ---
    p['m_norm'] = jnp.ones((1, D), jnp.float32)
    p['m_in_w'] = nrm(next(ks), (D, 2 * E)); p['m_in_b'] = jnp.zeros((1, 2 * E))
    p['m_conv_w'] = nrm(next(ks), (K, E));   p['m_conv_b'] = jnp.zeros((1, E))
    p['m_x_w'] = nrm(next(ks), (E, R + 2 * N)); p['m_x_b'] = jnp.zeros((1, R + 2 * N))
    p['m_dt_w'] = nrm(next(ks), (R, E)); p['m_dt_b'] = jnp.full((1, E), 0.1, jnp.float32)
    p['m_A_log'] = jnp.log(jnp.broadcast_to(
        jnp.arange(1, N + 1, dtype=jnp.float32)[:, None], (N, E)))
    p['m_D'] = jnp.ones((1, E), jnp.float32)
    p['m_out_w'] = nrm(next(ks), (E, D)); p['m_out_b'] = jnp.zeros((1, D))
    p['m_ffn_norm'] = jnp.ones((1, D), jnp.float32)
    p['m_ffn_wg'] = nrm(next(ks), (D, I))
    p['m_ffn_wu'] = nrm(next(ks), (D, I))
    p['m_ffn_wd'] = nrm(next(ks), (I, D))
    # --- layer 1: attention mixer + FFN ---
    p['a_norm'] = jnp.ones((1, D), jnp.float32)
    p['a_qkv_w'] = nrm(next(ks), (D, 3 * D)); p['a_qkv_b'] = jnp.zeros((1, 3 * D))
    p['a_o_w'] = nrm(next(ks), (D, D)); p['a_o_b'] = jnp.zeros((1, D))
    p['a_ffn_norm'] = jnp.ones((1, D), jnp.float32)
    p['a_ffn_wg'] = nrm(next(ks), (D, I))
    p['a_ffn_wu'] = nrm(next(ks), (D, I))
    p['a_ffn_wd'] = nrm(next(ks), (I, D))
    # --- final norm + latent head ---
    p['f_norm'] = jnp.ones((1, D), jnp.float32)
    p['head_w'] = nrm(next(ks), (D, LATENT)); p['head_b'] = jnp.zeros((1, LATENT))
    return p


def prepare_fused_params(p):
    """Host-side weight fusion done once: fold dt_proj into the x-projection,
    concatenate gate|up FFN weights (128-lane matmuls), precompute A."""
    R = DT_RANK
    w_dt = p['m_x_w'][:, :R] @ p['m_dt_w']                        # (E, E)
    b_dt = p['m_x_b'][:, :R] @ p['m_dt_w'] + p['m_dt_b']          # (1, E)
    xproj_w = jnp.concatenate([w_dt, p['m_x_w'][:, R:]], axis=1)  # (E, E+2N)
    xproj_b = jnp.concatenate([b_dt, p['m_x_b'][:, R:]], axis=1)  # (1, E+2N)
    A = -jnp.exp(p['m_A_log'])                                    # (N, E)
    mffn_wgu = jnp.concatenate([p['m_ffn_wg'], p['m_ffn_wu']], axis=1)  # (D, 2I)
    affn_wgu = jnp.concatenate([p['a_ffn_wg'], p['a_ffn_wu']], axis=1)  # (D, 2I)
    return (
        p['m_norm'], p['m_in_w'], p['m_in_b'],
        p['m_conv_w'], p['m_conv_b'],
        xproj_w, xproj_b, A, p['m_D'],
        p['m_out_w'], p['m_out_b'],
        p['m_ffn_norm'], mffn_wgu, p['m_ffn_wd'],
        p['a_norm'], p['a_qkv_w'], p['a_qkv_b'],
        p['a_o_w'], p['a_o_b'],
        p['a_ffn_norm'], affn_wgu, p['a_ffn_wd'],
        p['f_norm'], p['head_w'], p['head_b'],
    )


# ============================ forward pass ============================

def jamba_actor_critic_forward(fused_weights, features):
    """features: (B, T, D) f32 -> (latent_pi, latent_vf), both (B, 1024).
    Shared policy/value net => the two latents are identical."""
    B, T, D = features.shape
    x_flat = features.reshape(B * T, D).astype(jnp.float32)
    args = (x_flat,) + tuple(fused_weights)
    in_specs = [pl.BlockSpec(a.shape, lambda i: (0, 0)) for a in args]
    latent = pl.pallas_call(
        _jamba_fused_kernel,
        out_shape=jax.ShapeDtypeStruct((B, LATENT), jnp.float32),
        grid=(1,),
        in_specs=in_specs,
        out_specs=pl.BlockSpec((B, LATENT), lambda i: (0, 0)),
        compiler_params=pltpu.CompilerParams(
            dimension_semantics=("arbitrary",)),
    )(*args)
    return latent, latent


# ============================ pure-JAX reference ============================

def reference_forward(params, features):
    """Plain-JAX (non-Pallas) forward with the same math, for validation."""
    p = params
    B, T, D = features.shape
    E, N, K, R = E_INNER, D_STATE, D_CONV, DT_RANK
    H, DH = N_HEADS, HEAD_DIM
    M = B * T
    x = features.astype(jnp.float32)

    # layer 0: mamba mixer
    h = _rms(x, p['m_norm'])
    xz = h.reshape(M, D) @ p['m_in_w'] + p['m_in_b']
    xpart = xz[:, :E].reshape(B, T, E)
    z = xz[:, E:].reshape(B, T, E)
    xpad = jnp.pad(xpart, ((0, 0), (K - 1, 0), (0, 0)))
    conv = jnp.zeros((B, T, E), jnp.float32)
    for j in range(K):
        conv = conv + xpad[:, j:j + T, :] * p['m_conv_w'][j]
    u = _silu(conv + p['m_conv_b'].reshape(-1))
    xdbc = u.reshape(M, E) @ p['m_x_w'] + p['m_x_b']
    dt = _softplus(xdbc[:, :R] @ p['m_dt_w'] + p['m_dt_b']).reshape(B, T, E)
    Bm = xdbc[:, R:R + N].reshape(B, T, N)
    Cm = xdbc[:, R + N:].reshape(B, T, N)
    A = -jnp.exp(p['m_A_log'])
    ys = []
    for b in range(B):
        hstate = jnp.zeros((N, E), jnp.float32)
        yb = []
        for t in range(T):
            dA = jnp.exp(dt[b, t][None, :] * A)
            dBu = (dt[b, t] * u[b, t])[None, :] * Bm[b, t][:, None]
            hstate = dA * hstate + dBu
            yb.append(jnp.sum(hstate * Cm[b, t][:, None], axis=0))
        ys.append(jnp.stack(yb, 0))
    y = jnp.stack(ys, 0)
    y = (y + u * p['m_D'].reshape(-1)) * _silu(z)
    x = x + (y.reshape(M, E) @ p['m_out_w'] + p['m_out_b']).reshape(B, T, D)

    h = _rms(x, p['m_ffn_norm']).reshape(M, D)
    ff = _silu(h @ p['m_ffn_wg']) * (h @ p['m_ffn_wu'])
    x = x + (ff @ p['m_ffn_wd']).reshape(B, T, D)

    # layer 1: causal attention
    h = _rms(x, p['a_norm']).reshape(M, D)
    qkv = h @ p['a_qkv_w'] + p['a_qkv_b']
    q, k, v = jnp.split(qkv, 3, axis=-1)

    def to_heads(t):
        return t.reshape(B, T, H, DH).transpose(0, 2, 1, 3)

    qh, kh, vh = to_heads(q), to_heads(k), to_heads(v)
    scale = 1.0 / (DH ** 0.5)
    s = jnp.einsum('bhqd,bhkd->bhqk', qh, kh) * scale
    row = jnp.arange(T)[:, None]
    col = jnp.arange(T)[None, :]
    s = jnp.where(col <= row, s, jnp.finfo(jnp.float32).min)
    s = s - jnp.max(s, axis=-1, keepdims=True)
    pm = jnp.exp(s)
    pm = pm / jnp.sum(pm, axis=-1, keepdims=True)
    o = jnp.einsum('bhqk,bhkd->bhqd', pm, vh)
    o = o.transpose(0, 2, 1, 3).reshape(M, D)
    x = x + (o @ p['a_o_w'] + p['a_o_b']).reshape(B, T, D)

    h = _rms(x, p['a_ffn_norm']).reshape(M, D)
    ff = _silu(h @ p['a_ffn_wg']) * (h @ p['a_ffn_wu'])
    x = x + (ff @ p['a_ffn_wd']).reshape(B, T, D)

    # final norm + last-token head
    h = _rms(x, p['f_norm'])
    last = h[:, -1, :]
    return last @ p['head_w'] + p['head_b']


# ============================ main ============================

if __name__ == "__main__":
    params = init_params(jax.random.PRNGKey(1))
    features = jax.random.normal(jax.random.PRNGKey(0),
                                 (BATCH, SEQ, HIDDEN), jnp.float32)

    fused = prepare_fused_params(params)            # host-side weight fusion, once
    fwd = jax.jit(jamba_actor_critic_forward)
    latent_pi, latent_vf = fwd(fused, features)
    jax.block_until_ready((latent_pi, latent_vf))

    assert latent_pi.shape == (BATCH, LATENT)
    assert latent_vf.shape == (BATCH, LATENT)
    assert bool(jnp.all(latent_pi == latent_vf))
    assert bool(jnp.all(jnp.isfinite(latent_pi)))

    # validate the fused kernel against the pure-JAX reference
    ref = reference_forward(params, features)
    err = float(jnp.max(jnp.abs(latent_pi - ref)))
    assert err < 1e-2, f"kernel/reference mismatch: max abs err {err}"

    print("KERNEL_OK")
</pallas_src>

<mosaic_0001>
module attributes {stable_mosaic.version = 11 : i64} {
  func.func @_jamba_fused_kernel(%arg0: i32, %arg1: memref<16x32xf32, #tpu.memory_space<vmem>>, %arg2: memref<1x32xf32, #tpu.memory_space<vmem>>, %arg3: memref<32x128xf32, #tpu.memory_space<vmem>>, %arg4: memref<1x128xf32, #tpu.memory_space<vmem>>, %arg5: memref<4x64xf32, #tpu.memory_space<vmem>>, %arg6: memref<1x64xf32, #tpu.memory_space<vmem>>, %arg7: memref<64x80xf32, #tpu.memory_space<vmem>>, %arg8: memref<1x80xf32, #tpu.memory_space<vmem>>, %arg9: memref<8x64xf32, #tpu.memory_space<vmem>>, %arg10: memref<1x64xf32, #tpu.memory_space<vmem>>, %arg11: memref<64x32xf32, #tpu.memory_space<vmem>>, %arg12: memref<1x32xf32, #tpu.memory_space<vmem>>, %arg13: memref<1x32xf32, #tpu.memory_space<vmem>>, %arg14: memref<32x128xf32, #tpu.memory_space<vmem>>, %arg15: memref<64x32xf32, #tpu.memory_space<vmem>>, %arg16: memref<1x32xf32, #tpu.memory_space<vmem>>, %arg17: memref<32x96xf32, #tpu.memory_space<vmem>>, %arg18: memref<1x96xf32, #tpu.memory_space<vmem>>, %arg19: memref<32x32xf32, #tpu.memory_space<vmem>>, %arg20: memref<1x32xf32, #tpu.memory_space<vmem>>, %arg21: memref<1x32xf32, #tpu.memory_space<vmem>>, %arg22: memref<32x128xf32, #tpu.memory_space<vmem>>, %arg23: memref<64x32xf32, #tpu.memory_space<vmem>>, %arg24: memref<1x32xf32, #tpu.memory_space<vmem>>, %arg25: memref<32x1024xf32, #tpu.memory_space<vmem>>, %arg26: memref<1x1024xf32, #tpu.memory_space<vmem>>, %arg27: memref<2x1024xf32, #tpu.memory_space<vmem>>) attributes {dimension_semantics = [#tpu.dimension_semantics<arbitrary>], iteration_bounds = array<i64: 1>, scalar_prefetch = 0 : i64, scratch_operands = 0 : i64, tpu.core_type = #tpu.core_type<tc>, window_params = [{pipeline_mode = #tpu.pipeline_mode<synchronous>, transform_indices = @transform_0, window_bounds = array<i64: 16, 32>}, {pipeline_mode = #tpu.pipeline_mode<synchronous>, transform_indices = @transform_1, window_bounds = array<i64: 1, 32>}, {pipeline_mode = #tpu.pipeline_mode<synchronous>, transform_indices = @transform_2, window_bounds = array<i64: 32, 128>}, {pipeline_mode = #tpu.pipeline_mode<synchronous>, transform_indices = @transform_3, window_bounds = array<i64: 1, 128>}, {pipeline_mode = #tpu.pipeline_mode<synchronous>, transform_indices = @transform_4, window_bounds = array<i64: 4, 64>}, {pipeline_mode = #tpu.pipeline_mode<synchronous>, transform_indices = @transform_5, window_bounds = array<i64: 1, 64>}, {pipeline_mode = #tpu.pipeline_mode<synchronous>, transform_indices = @transform_6, window_bounds = array<i64: 64, 80>}, {pipeline_mode = #tpu.pipeline_mode<synchronous>, transform_indices = @transform_7, window_bounds = array<i64: 1, 80>}, {pipeline_mode = #tpu.pipeline_mode<synchronous>, transform_indices = @transform_8, window_bounds = array<i64: 8, 64>}, {pipeline_mode = #tpu.pipeline_mode<synchronous>, transform_indices = @transform_9, window_bounds = array<i64: 1, 64>}, {pipeline_mode = #tpu.pipeline_mode<synchronous>, transform_indices = @transform_10, window_bounds = array<i64: 64, 32>}, {pipeline_mode = #tpu.pipeline_mode<synchronous>, transform_indices = @transform_11, window_bounds = array<i64: 1, 32>}, {pipeline_mode = #tpu.pipeline_mode<synchronous>, transform_indices = @transform_12, window_bounds = array<i64: 1, 32>}, {pipeline_mode = #tpu.pipeline_mode<synchronous>, transform_indices = @transform_13, window_bounds = array<i64: 32, 128>}, {pipeline_mode = #tpu.pipeline_mode<synchronous>, transform_indices = @transform_14, window_bounds = array<i64: 64, 32>}, {pipeline_mode = #tpu.pipeline_mode<synchronous>, transform_indices = @transform_15, window_bounds = array<i64: 1, 32>}, {pipeline_mode = #tpu.pipeline_mode<synchronous>, transform_indices = @transform_16, window_bounds = array<i64: 32, 96>}, {pipeline_mode = #tpu.pipeline_mode<synchronous>, transform_indices = @transform_17, window_bounds = array<i64: 1, 96>}, {pipeline_mode = #tpu.pipeline_mode<synchronous>, transform_indices = @transform_18, window_bounds = array<i64: 32, 32>}, {pipeline_mode = #tpu.pipeline_mode<synchronous>, transform_indices = @transform_19, window_bounds = array<i64: 1, 32>}, {pipeline_mode = #tpu.pipeline_mode<synchronous>, transform_indices = @transform_20, window_bounds = array<i64: 1, 32>}, {pipeline_mode = #tpu.pipeline_mode<synchronous>, transform_indices = @transform_21, window_bounds = array<i64: 32, 128>}, {pipeline_mode = #tpu.pipeline_mode<synchronous>, transform_indices = @transform_22, window_bounds = array<i64: 64, 32>}, {pipeline_mode = #tpu.pipeline_mode<synchronous>, transform_indices = @transform_23, window_bounds = array<i64: 1, 32>}, {pipeline_mode = #tpu.pipeline_mode<synchronous>, transform_indices = @transform_24, window_bounds = array<i64: 32, 1024>}, {pipeline_mode = #tpu.pipeline_mode<synchronous>, transform_indices = @transform_25, window_bounds = array<i64: 1, 1024>}, {pipeline_mode = #tpu.pipeline_mode<synchronous>, transform_indices = @transform_26, window_bounds = array<i64: 2, 1024>}]} {
    %c0 = arith.constant 0 : index
    %c0_0 = arith.constant 0 : index
    %0 = vector.load %arg1[%c0, %c0_0] : memref<16x32xf32, #tpu.memory_space<vmem>>, vector<16x32xf32>
    %c0_1 = arith.constant 0 : index
    %c0_2 = arith.constant 0 : index
    %1 = vector.load %arg2[%c0_1, %c0_2] : memref<1x32xf32, #tpu.memory_space<vmem>>, vector<1x32xf32>
    %2 = arith.mulf %0, %0 : vector<16x32xf32>
    %cst = arith.constant dense<0.000000e+00> : vector<16xf32>
    %3 = vector.multi_reduction <add>, %2, %cst [1] : vector<16x32xf32> to vector<16xf32>
    %4 = vector.shape_cast %3 : vector<16xf32> to vector<16x1xf32>
    %cst_3 = arith.constant 3.200000e+01 : f32
    %5 = vector.broadcast %cst_3 : f32 to vector<16x1xf32>
    %6 = arith.divf %4, %5 : vector<16x1xf32>
    %cst_4 = arith.constant 9.99999997E-7 : f32
    %7 = vector.broadcast %cst_4 : f32 to vector<16x1xf32>
    %8 = arith.addf %6, %7 : vector<16x1xf32>
    %9 = math.rsqrt %8 : vector<16x1xf32>
    %10 = vector.broadcast %9 : vector<16x1xf32> to vector<16x32xf32>
    %11 = arith.mulf %0, %10 : vector<16x32xf32>
    %12 = vector.broadcast %1 : vector<1x32xf32> to vector<16x32xf32>
    %13 = arith.mulf %11, %12 : vector<16x32xf32>
    %c0_5 = arith.constant 0 : index
    %c0_6 = arith.constant 0 : index
    %14 = vector.load %arg3[%c0_5, %c0_6] : memref<32x128xf32, #tpu.memory_space<vmem>>, vector<32x128xf32>
    %cst_7 = arith.constant dense<0.000000e+00> : vector<16x128xf32>
    %15 = tpu.matmul %13, %14, %cst_7 {dimension_numbers = #tpu.dot_dimension_numbers<[1], [0], [0], [1], [0, 0, 1, 1], [], []>} : vector<16x32xf32>, vector<32x128xf32>, vector<16x128xf32> -> vector<16x128xf32>
    %c0_8 = arith.constant 0 : index
    %c0_9 = arith.constant 0 : index
    %16 = vector.load %arg4[%c0_8, %c0_9] : memref<1x128xf32, #tpu.memory_space<vmem>>, vector<1x128xf32>
    %17 = vector.broadcast %16 : vector<1x128xf32> to vector<16x128xf32>
    %18 = arith.addf %15, %17 : vector<16x128xf32>
    %19 = vector.extract_strided_slice %18 {offsets = [0, 0], sizes = [16, 64], strides = [1, 1]} : vector<16x128xf32> to vector<16x64xf32>
    %20 = vector.extract_strided_slice %18 {offsets = [0, 64], sizes = [16, 64], strides = [1, 1]} : vector<16x128xf32> to vector<16x64xf32>
    %c0_10 = arith.constant 0 : index
    %c0_11 = arith.constant 0 : index
    %21 = vector.load %arg5[%c0_10, %c0_11] : memref<4x64xf32, #tpu.memory_space<vmem>>, vector<4x64xf32>
    %22 = tpu.iota {dimensions = array<i32: 0>} : vector<16x64xi32>
    %c8_i32 = arith.constant 8 : i32
    %c0_i32 = arith.constant 0 : i32
    %23 = arith.cmpi eq, %c8_i32, %c0_i32 : i32
    %c1_i32 = arith.constant 1 : i32
    %24 = arith.select %23, %c1_i32, %c8_i32 : i32
    %25 = vector.broadcast %24 : i32 to vector<16x64xi32>
    %26 = arith.remsi %22, %25 : vector<16x64xi32>
    %c0_i32_12 = arith.constant 0 : i32
    %27 = vector.broadcast %c0_i32_12 : i32 to vector<16x64xi32>
    %28 = arith.cmpi ne, %26, %27 : vector<16x64xi32>
    %c0_i32_13 = arith.constant 0 : i32
    %29 = vector.broadcast %c0_i32_13 : i32 to vector<16x64xi32>
    %30 = arith.cmpi slt, %26, %29 : vector<16x64xi32>
    %c0_i32_14 = arith.constant 0 : i32
    %31 = arith.cmpi slt, %24, %c0_i32_14 : i32
    %32 = vector.broadcast %31 : i1 to vector<16x64xi1>
    %33 = vector.broadcast %32 : vector<16x64xi1> to vector<16x64xi1>
    %34 = arith.xori %30, %33 : vector<16x64xi1>
    %35 = arith.andi %34, %28 : vector<16x64xi1>
    %36 = vector.broadcast %24 : i32 to vector<16x64xi32>
    %37 = arith.addi %26, %36 : vector<16x64xi32>
    %38 = arith.select %35, %37, %26 : vector<16x64xi1>, vector<16x64xi32>
    %39 = vector.extract_strided_slice %21 {offsets = [3, 0], sizes = [1, 64], strides = [1, 1]} : vector<4x64xf32> to vector<1x64xf32>
    %40 = vector.broadcast %39 : vector<1x64xf32> to vector<16x64xf32>
    %41 = arith.mulf %19, %40 : vector<16x64xf32>
    %cst_15 = arith.constant 0.000000e+00 : f32
    %42 = vector.broadcast %cst_15 : f32 to vector<1x64xf32>
    %43 = vector.extract_strided_slice %19 {offsets = [0, 0], sizes = [15, 64], strides = [1, 1]} : vector<16x64xf32> to vector<15x64xf32>
    %44 = tpu.concatenate %42, %43 in 0 : vector<1x64xf32>, vector<15x64xf32> -> vector<16x64xf32>
    %c1_i32_16 = arith.constant 1 : i32
    %45 = vector.broadcast %c1_i32_16 : i32 to vector<16x64xi32>
    %46 = arith.cmpi sge, %38, %45 : vector<16x64xi32>
    %cst_17 = arith.constant 0.000000e+00 : f32
    %47 = vector.broadcast %cst_17 : f32 to vector<16x64xf32>
    %48 = arith.select %46, %44, %47 : vector<16x64xi1>, vector<16x64xf32>
    %49 = vector.extract_strided_slice %21 {offsets = [2, 0], sizes = [1, 64], strides = [1, 1]} : vector<4x64xf32> to vector<1x64xf32>
    %50 = vector.broadcast %49 : vector<1x64xf32> to vector<16x64xf32>
    %51 = arith.mulf %48, %50 : vector<16x64xf32>
    %52 = arith.addf %41, %51 : vector<16x64xf32>
    %cst_18 = arith.constant 0.000000e+00 : f32
    %53 = vector.broadcast %cst_18 : f32 to vector<2x64xf32>
    %54 = vector.extract_strided_slice %19 {offsets = [0, 0], sizes = [14, 64], strides = [1, 1]} : vector<16x64xf32> to vector<14x64xf32>
    %55 = tpu.concatenate %53, %54 in 0 : vector<2x64xf32>, vector<14x64xf32> -> vector<16x64xf32>
    %c2_i32 = arith.constant 2 : i32
    %56 = vector.broadcast %c2_i32 : i32 to vector<16x64xi32>
    %57 = arith.cmpi sge, %38, %56 : vector<16x64xi32>
    %cst_19 = arith.constant 0.000000e+00 : f32
    %58 = vector.broadcast %cst_19 : f32 to vector<16x64xf32>
    %59 = arith.select %57, %55, %58 : vector<16x64xi1>, vector<16x64xf32>
    %60 = vector.extract_strided_slice %21 {offsets = [1, 0], sizes = [1, 64], strides = [1, 1]} : vector<4x64xf32> to vector<1x64xf32>
    %61 = vector.broadcast %60 : vector<1x64xf32> to vector<16x64xf32>
    %62 = arith.mulf %59, %61 : vector<16x64xf32>
    %63 = arith.addf %52, %62 : vector<16x64xf32>
    %cst_20 = arith.constant 0.000000e+00 : f32
    %64 = vector.broadcast %cst_20 : f32 to vector<3x64xf32>
    %65 = vector.extract_strided_slice %19 {offsets = [0, 0], sizes = [13, 64], strides = [1, 1]} : vector<16x64xf32> to vector<13x64xf32>
    %66 = tpu.concatenate %64, %65 in 0 : vector<3x64xf32>, vector<13x64xf32> -> vector<16x64xf32>
    %c3_i32 = arith.constant 3 : i32
    %67 = vector.broadcast %c3_i32 : i32 to vector<16x64xi32>
    %68 = arith.cmpi sge, %38, %67 : vector<16x64xi32>
    %cst_21 = arith.constant 0.000000e+00 : f32
    %69 = vector.broadcast %cst_21 : f32 to vector<16x64xf32>
    %70 = arith.select %68, %66, %69 : vector<16x64xi1>, vector<16x64xf32>
    %71 = vector.extract_strided_slice %21 {offsets = [0, 0], sizes = [1, 64], strides = [1, 1]} : vector<4x64xf32> to vector<1x64xf32>
    %72 = vector.broadcast %71 : vector<1x64xf32> to vector<16x64xf32>
    %73 = arith.mulf %70, %72 : vector<16x64xf32>
    %74 = arith.addf %63, %73 : vector<16x64xf32>
    %c0_22 = arith.constant 0 : index
    %c0_23 = arith.constant 0 : index
    %75 = vector.load %arg6[%c0_22, %c0_23] : memref<1x64xf32, #tpu.memory_space<vmem>>, vector<1x64xf32>
    %76 = vector.broadcast %75 : vector<1x64xf32> to vector<16x64xf32>
    %77 = arith.addf %74, %76 : vector<16x64xf32>
    %cst_24 = arith.constant 0.000000e+00 : f32
    %78 = vector.broadcast %cst_24 : f32 to vector<16x64xf32>
    %79 = arith.subf %78, %77 : vector<16x64xf32>
    %80 = math.exp %79 : vector<16x64xf32>
    %cst_25 = arith.constant 1.000000e+00 : f32
    %81 = vector.broadcast %cst_25 : f32 to vector<16x64xf32>
    %82 = arith.addf %81, %80 : vector<16x64xf32>
    %cst_26 = arith.constant 1.000000e+00 : f32
    %83 = vector.broadcast %cst_26 : f32 to vector<16x64xf32>
    %84 = arith.divf %83, %82 : vector<16x64xf32>
    %85 = arith.mulf %77, %84 : vector<16x64xf32>
    %c0_27 = arith.constant 0 : index
    %c0_28 = arith.constant 0 : index
    %86 = vector.load %arg7[%c0_27, %c0_28] : memref<64x80xf32, #tpu.memory_space<vmem>>, vector<64x80xf32>
    %cst_29 = arith.constant dense<0.000000e+00> : vector<16x80xf32>
    %87 = tpu.matmul %85, %86, %cst_29 {dimension_numbers = #tpu.dot_dimension_numbers<[1], [0], [0], [1], [0, 0, 1, 1], [], []>} : vector<16x64xf32>, vector<64x80xf32>, vector<16x80xf32> -> vector<16x80xf32>
    %c0_30 = arith.constant 0 : index
    %c0_31 = arith.constant 0 : index
    %88 = vector.load %arg8[%c0_30, %c0_31] : memref<1x80xf32, #tpu.memory_space<vmem>>, vector<1x80xf32>
    %89 = vector.broadcast %88 : vector<1x80xf32> to vector<16x80xf32>
    %90 = arith.addf %87, %89 : vector<16x80xf32>
    %91 = vector.extract_strided_slice %90 {offsets = [0, 0], sizes = [16, 64], strides = [1, 1]} : vector<16x80xf32> to vector<16x64xf32>
    %cst_32 = arith.constant 0.000000e+00 : f32
    %92 = vector.broadcast %cst_32 : f32 to vector<16x64xf32>
    %93 = arith.maximumf %91, %92 : vector<16x64xf32>
    %94 = math.absf %91 : vector<16x64xf32>
    %cst_33 = arith.constant 0.000000e+00 : f32
    %95 = vector.broadcast %cst_33 : f32 to vector<16x64xf32>
    %96 = arith.subf %95, %94 : vector<16x64xf32>
    %97 = math.exp %96 : vector<16x64xf32>
    %cst_34 = arith.constant 1.000000e+00 : f32
    %98 = vector.broadcast %cst_34 : f32 to vector<16x64xf32>
    %99 = arith.addf %98, %97 : vector<16x64xf32>
    %100 = math.log %99 : vector<16x64xf32>
    %101 = arith.addf %93, %100 : vector<16x64xf32>
    %102 = arith.mulf %101, %85 : vector<16x64xf32>
    %cst_35 = arith.constant 0.000000e+00 : f32
    %103 = vector.broadcast %cst_35 : f32 to vector<16x64xf32>
    %104 = arith.subf %103, %20 : vector<16x64xf32>
    %105 = math.exp %104 : vector<16x64xf32>
    %cst_36 = arith.constant 1.000000e+00 : f32
    %106 = vector.broadcast %cst_36 : f32 to vector<16x64xf32>
    %107 = arith.addf %106, %105 : vector<16x64xf32>
    %cst_37 = arith.constant 1.000000e+00 : f32
    %108 = vector.broadcast %cst_37 : f32 to vector<16x64xf32>
    %109 = arith.divf %108, %107 : vector<16x64xf32>
    %110 = arith.mulf %20, %109 : vector<16x64xf32>
    %111 = vector.extract_strided_slice %90 {offsets = [0, 64], sizes = [16, 16], strides = [1, 1]} : vector<16x80xf32> to vector<16x16xf32>
    %112 = tpu.transpose %111, [1, 0] : vector<16x16xf32> -> vector<16x16xf32>
    %113 = vector.extract_strided_slice %112 {offsets = [0, 0], sizes = [8, 16], strides = [1, 1]} : vector<16x16xf32> to vector<8x16xf32>
    %114 = vector.extract_strided_slice %112 {offsets = [8, 0], sizes = [8, 16], strides = [1, 1]} : vector<16x16xf32> to vector<8x16xf32>
    %c0_38 = arith.constant 0 : index
    %c0_39 = arith.constant 0 : index
    %115 = vector.load %arg9[%c0_38, %c0_39] : memref<8x64xf32, #tpu.memory_space<vmem>>, vector<8x64xf32>
    %cst_40 = arith.constant 0.000000e+00 : f32
    %116 = vector.broadcast %cst_40 : f32 to vector<8x64xf32>
    %117 = vector.extract_strided_slice %101 {offsets = [0, 0], sizes = [1, 64], strides = [1, 1]} : vector<16x64xf32> to vector<1x64xf32>
    %118 = vector.broadcast %117 : vector<1x64xf32> to vector<8x64xf32>
    %119 = arith.mulf %118, %115 : vector<8x64xf32>
    %120 = math.exp %119 : vector<8x64xf32>
    %121 = vector.extract_strided_slice %102 {offsets = [0, 0], sizes = [1, 64], strides = [1, 1]} : vector<16x64xf32> to vector<1x64xf32>
    %122 = vector.extract_strided_slice %113 {offsets = [0, 0], sizes = [8, 1], strides = [1, 1]} : vector<8x16xf32> to vector<8x1xf32>
    %123 = vector.broadcast %121 : vector<1x64xf32> to vector<8x64xf32>
    %124 = vector.broadcast %122 : vector<8x1xf32> to vector<8x64xf32>
    %125 = arith.mulf %123, %124 : vector<8x64xf32>
    %126 = arith.mulf %120, %116 : vector<8x64xf32>
    %127 = arith.addf %126, %125 : vector<8x64xf32>
    %128 = vector.extract_strided_slice %114 {offsets = [0, 0], sizes = [8, 1], strides = [1, 1]} : vector<8x16xf32> to vector<8x1xf32>
    %129 = vector.broadcast %128 : vector<8x1xf32> to vector<8x64xf32>
    %130 = arith.mulf %127, %129 : vector<8x64xf32>
    %cst_41 = arith.constant dense<0.000000e+00> : vector<64xf32>
    %131 = vector.multi_reduction <add>, %130, %cst_41 [0] : vector<8x64xf32> to vector<64xf32>
    %132 = vector.shape_cast %131 : vector<64xf32> to vector<1x64xf32>
    %133 = vector.extract_strided_slice %101 {offsets = [1, 0], sizes = [1, 64], strides = [1, 1]} : vector<16x64xf32> to vector<1x64xf32>
    %134 = vector.broadcast %133 : vector<1x64xf32> to vector<8x64xf32>
    %135 = arith.mulf %134, %115 : vector<8x64xf32>
    %136 = math.exp %135 : vector<8x64xf32>
    %137 = vector.extract_strided_slice %102 {offsets = [1, 0], sizes = [1, 64], strides = [1, 1]} : vector<16x64xf32> to vector<1x64xf32>
    %138 = vector.extract_strided_slice %113 {offsets = [0, 1], sizes = [8, 1], strides = [1, 1]} : vector<8x16xf32> to vector<8x1xf32>
    %139 = vector.broadcast %137 : vector<1x64xf32> to vector<8x64xf32>
    %140 = vector.broadcast %138 : vector<8x1xf32> to vector<8x64xf32>
    %141 = arith.mulf %139, %140 : vector<8x64xf32>
    %142 = arith.mulf %136, %127 : vector<8x64xf32>
    %143 = arith.addf %142, %141 : vector<8x64xf32>
    %144 = vector.extract_strided_slice %114 {offsets = [0, 1], sizes = [8, 1], strides = [1, 1]} : vector<8x16xf32> to vector<8x1xf32>
    %145 = vector.broadcast %144 : vector<8x1xf32> to vector<8x64xf32>
    %146 = arith.mulf %143, %145 : vector<8x64xf32>
    %cst_42 = arith.constant dense<0.000000e+00> : vector<64xf32>
    %147 = vector.multi_reduction <add>, %146, %cst_42 [0] : vector<8x64xf32> to vector<64xf32>
    %148 = vector.shape_cast %147 : vector<64xf32> to vector<1x64xf32>
    %149 = vector.extract_strided_slice %101 {offsets = [2, 0], sizes = [1, 64], strides = [1, 1]} : vector<16x64xf32> to vector<1x64xf32>
    %150 = vector.broadcast %149 : vector<1x64xf32> to vector<8x64xf32>
    %151 = arith.mulf %150, %115 : vector<8x64xf32>
    %152 = math.exp %151 : vector<8x64xf32>
    %153 = vector.extract_strided_slice %102 {offsets = [2, 0], sizes = [1, 64], strides = [1, 1]} : vector<16x64xf32> to vector<1x64xf32>
    %154 = vector.extract_strided_slice %113 {offsets = [0, 2], sizes = [8, 1], strides = [1, 1]} : vector<8x16xf32> to vector<8x1xf32>
    %155 = vector.broadcast %153 : vector<1x64xf32> to vector<8x64xf32>
    %156 = vector.broadcast %154 : vector<8x1xf32> to vector<8x64xf32>
    %157 = arith.mulf %155, %156 : vector<8x64xf32>
    %158 = arith.mulf %152, %143 : vector<8x64xf32>
    %159 = arith.addf %158, %157 : vector<8x64xf32>
    %160 = vector.extract_strided_slice %114 {offsets = [0, 2], sizes = [8, 1], strides = [1, 1]} : vector<8x16xf32> to vector<8x1xf32>
    %161 = vector.broadcast %160 : vector<8x1xf32> to vector<8x64xf32>
    %162 = arith.mulf %159, %161 : vector<8x64xf32>
    %cst_43 = arith.constant dense<0.000000e+00> : vector<64xf32>
    %163 = vector.multi_reduction <add>, %162, %cst_43 [0] : vector<8x64xf32> to vector<64xf32>
    %164 = vector.shape_cast %163 : vector<64xf32> to vector<1x64xf32>
    %165 = vector.extract_strided_slice %101 {offsets = [3, 0], sizes = [1, 64], strides = [1, 1]} : vector<16x64xf32> to vector<1x64xf32>
    %166 = vector.broadcast %165 : vector<1x64xf32> to vector<8x64xf32>
    %167 = arith.mulf %166, %115 : vector<8x64xf32>
    %168 = math.exp %167 : vector<8x64xf32>
    %169 = vector.extract_strided_slice %102 {offsets = [3, 0], sizes = [1, 64], strides = [1, 1]} : vector<16x64xf32> to vector<1x64xf32>
    %170 = vector.extract_strided_slice %113 {offsets = [0, 3], sizes = [8, 1], strides = [1, 1]} : vector<8x16xf32> to vector<8x1xf32>
    %171 = vector.broadcast %169 : vector<1x64xf32> to vector<8x64xf32>
    %172 = vector.broadcast %170 : vector<8x1xf32> to vector<8x64xf32>
    %173 = arith.mulf %171, %172 : vector<8x64xf32>
    %174 = arith.mulf %168, %159 : vector<8x64xf32>
    %175 = arith.addf %174, %173 : vector<8x64xf32>
    %176 = vector.extract_strided_slice %114 {offsets = [0, 3], sizes = [8, 1], strides = [1, 1]} : vector<8x16xf32> to vector<8x1xf32>
    %177 = vector.broadcast %176 : vector<8x1xf32> to vector<8x64xf32>
    %178 = arith.mulf %175, %177 : vector<8x64xf32>
    %cst_44 = arith.constant dense<0.000000e+00> : vector<64xf32>
    %179 = vector.multi_reduction <add>, %178, %cst_44 [0] : vector<8x64xf32> to vector<64xf32>
    %180 = vector.shape_cast %179 : vector<64xf32> to vector<1x64xf32>
    %181 = vector.extract_strided_slice %101 {offsets = [4, 0], sizes = [1, 64], strides = [1, 1]} : vector<16x64xf32> to vector<1x64xf32>
    %182 = vector.broadcast %181 : vector<1x64xf32> to vector<8x64xf32>
    %183 = arith.mulf %182, %115 : vector<8x64xf32>
    %184 = math.exp %183 : vector<8x64xf32>
    %185 = vector.extract_strided_slice %102 {offsets = [4, 0], sizes = [1, 64], strides = [1, 1]} : vector<16x64xf32> to vector<1x64xf32>
    %186 = vector.extract_strided_slice %113 {offsets = [0, 4], sizes = [8, 1], strides = [1, 1]} : vector<8x16xf32> to vector<8x1xf32>
    %187 = vector.broadcast %185 : vector<1x64xf32> to vector<8x64xf32>
    %188 = vector.broadcast %186 : vector<8x1xf32> to vector<8x64xf32>
    %189 = arith.mulf %187, %188 : vector<8x64xf32>
    %190 = arith.mulf %184, %175 : vector<8x64xf32>
    %191 = arith.addf %190, %189 : vector<8x64xf32>
    %192 = vector.extract_strided_slice %114 {offsets = [0, 4], sizes = [8, 1], strides = [1, 1]} : vector<8x16xf32> to vector<8x1xf32>
    %193 = vector.broadcast %192 : vector<8x1xf32> to vector<8x64xf32>
    %194 = arith.mulf %191, %193 : vector<8x64xf32>
    %cst_45 = arith.constant dense<0.000000e+00> : vector<64xf32>
    %195 = vector.multi_reduction <add>, %194, %cst_45 [0] : vector<8x64xf32> to vector<64xf32>
    %196 = vector.shape_cast %195 : vector<64xf32> to vector<1x64xf32>
    %197 = vector.extract_strided_slice %101 {offsets = [5, 0], sizes = [1, 64], strides = [1, 1]} : vector<16x64xf32> to vector<1x64xf32>
    %198 = vector.broadcast %197 : vector<1x64xf32> to vector<8x64xf32>
    %199 = arith.mulf %198, %115 : vector<8x64xf32>
    %200 = math.exp %199 : vector<8x64xf32>
    %201 = vector.extract_strided_slice %102 {offsets = [5, 0], sizes = [1, 64], strides = [1, 1]} : vector<16x64xf32> to vector<1x64xf32>
    %202 = vector.extract_strided_slice %113 {offsets = [0, 5], sizes = [8, 1], strides = [1, 1]} : vector<8x16xf32> to vector<8x1xf32>
    %203 = vector.broadcast %201 : vector<1x64xf32> to vector<8x64xf32>
    %204 = vector.broadcast %202 : vector<8x1xf32> to vector<8x64xf32>
    %205 = arith.mulf %203, %204 : vector<8x64xf32>
    %206 = arith.mulf %200, %191 : vector<8x64xf32>
    %207 = arith.addf %206, %205 : vector<8x64xf32>
    %208 = vector.extract_strided_slice %114 {offsets = [0, 5], sizes = [8, 1], strides = [1, 1]} : vector<8x16xf32> to vector<8x1xf32>
    %209 = vector.broadcast %208 : vector<8x1xf32> to vector<8x64xf32>
    %210 = arith.mulf %207, %209 : vector<8x64xf32>
    %cst_46 = arith.constant dense<0.000000e+00> : vector<64xf32>
    %211 = vector.multi_reduction <add>, %210, %cst_46 [0] : vector<8x64xf32> to vector<64xf32>
    %212 = vector.shape_cast %211 : vector<64xf32> to vector<1x64xf32>
    %213 = vector.extract_strided_slice %101 {offsets = [6, 0], sizes = [1, 64], strides = [1, 1]} : vector<16x64xf32> to vector<1x64xf32>
    %214 = vector.broadcast %213 : vector<1x64xf32> to vector<8x64xf32>
    %215 = arith.mulf %214, %115 : vector<8x64xf32>
    %216 = math.exp %215 : vector<8x64xf32>
    %217 = vector.extract_strided_slice %102 {offsets = [6, 0], sizes = [1, 64], strides = [1, 1]} : vector<16x64xf32> to vector<1x64xf32>
    %218 = vector.extract_strided_slice %113 {offsets = [0, 6], sizes = [8, 1], strides = [1, 1]} : vector<8x16xf32> to vector<8x1xf32>
    %219 = vector.broadcast %217 : vector<1x64xf32> to vector<8x64xf32>
    %220 = vector.broadcast %218 : vector<8x1xf32> to vector<8x64xf32>
    %221 = arith.mulf %219, %220 : vector<8x64xf32>
    %222 = arith.mulf %216, %207 : vector<8x64xf32>
    %223 = arith.addf %222, %221 : vector<8x64xf32>
    %224 = vector.extract_strided_slice %114 {offsets = [0, 6], sizes = [8, 1], strides = [1, 1]} : vector<8x16xf32> to vector<8x1xf32>
    %225 = vector.broadcast %224 : vector<8x1xf32> to vector<8x64xf32>
    %226 = arith.mulf %223, %225 : vector<8x64xf32>
    %cst_47 = arith.constant dense<0.000000e+00> : vector<64xf32>
    %227 = vector.multi_reduction <add>, %226, %cst_47 [0] : vector<8x64xf32> to vector<64xf32>
    %228 = vector.shape_cast %227 : vector<64xf32> to vector<1x64xf32>
    %229 = vector.extract_strided_slice %101 {offsets = [7, 0], sizes = [1, 64], strides = [1, 1]} : vector<16x64xf32> to vector<1x64xf32>
    %230 = vector.broadcast %229 : vector<1x64xf32> to vector<8x64xf32>
    %231 = arith.mulf %230, %115 : vector<8x64xf32>
    %232 = math.exp %231 : vector<8x64xf32>
    %233 = vector.extract_strided_slice %102 {offsets = [7, 0], sizes = [1, 64], strides = [1, 1]} : vector<16x64xf32> to vector<1x64xf32>
    %234 = vector.extract_strided_slice %113 {offsets = [0, 7], sizes = [8, 1], strides = [1, 1]} : vector<8x16xf32> to vector<8x1xf32>
    %235 = vector.broadcast %233 : vector<1x64xf32> to vector<8x64xf32>
    %236 = vector.broadcast %234 : vector<8x1xf32> to vector<8x64xf32>
    %237 = arith.mulf %235, %236 : vector<8x64xf32>
    %238 = arith.mulf %232, %223 : vector<8x64xf32>
    %239 = arith.addf %238, %237 : vector<8x64xf32>
    %240 = vector.extract_strided_slice %114 {offsets = [0, 7], sizes = [8, 1], strides = [1, 1]} : vector<8x16xf32> to vector<8x1xf32>
    %241 = vector.broadcast %240 : vector<8x1xf32> to vector<8x64xf32>
    %242 = arith.mulf %239, %241 : vector<8x64xf32>
    %cst_48 = arith.constant dense<0.000000e+00> : vector<64xf32>
    %243 = vector.multi_reduction <add>, %242, %cst_48 [0] : vector<8x64xf32> to vector<64xf32>
    %244 = vector.shape_cast %243 : vector<64xf32> to vector<1x64xf32>
    %cst_49 = arith.constant 0.000000e+00 : f32
    %245 = vector.broadcast %cst_49 : f32 to vector<8x64xf32>
    %246 = vector.extract_strided_slice %101 {offsets = [8, 0], sizes = [1, 64], strides = [1, 1]} : vector<16x64xf32> to vector<1x64xf32>
    %247 = vector.broadcast %246 : vector<1x64xf32> to vector<8x64xf32>
    %248 = arith.mulf %247, %115 : vector<8x64xf32>
    %249 = math.exp %248 : vector<8x64xf32>
    %250 = vector.extract_strided_slice %102 {offsets = [8, 0], sizes = [1, 64], strides = [1, 1]} : vector<16x64xf32> to vector<1x64xf32>
    %251 = vector.extract_strided_slice %113 {offsets = [0, 8], sizes = [8, 1], strides = [1, 1]} : vector<8x16xf32> to vector<8x1xf32>
    %252 = vector.broadcast %250 : vector<1x64xf32> to vector<8x64xf32>
    %253 = vector.broadcast %251 : vector<8x1xf32> to vector<8x64xf32>
    %254 = arith.mulf %252, %253 : vector<8x64xf32>
    %255 = arith.mulf %249, %245 : vector<8x64xf32>
    %256 = arith.addf %255, %254 : vector<8x64xf32>
    %257 = vector.extract_strided_slice %114 {offsets = [0, 8], sizes = [8, 1], strides = [1, 1]} : vector<8x16xf32> to vector<8x1xf32>
    %258 = vector.broadcast %257 : vector<8x1xf32> to vector<8x64xf32>
    %259 = arith.mulf %256, %258 : vector<8x64xf32>
    %cst_50 = arith.constant dense<0.000000e+00> : vector<64xf32>
    %260 = vector.multi_reduction <add>, %259, %cst_50 [0] : vector<8x64xf32> to vector<64xf32>
    %261 = vector.shape_cast %260 : vector<64xf32> to vector<1x64xf32>
    %262 = vector.extract_strided_slice %101 {offsets = [9, 0], sizes = [1, 64], strides = [1, 1]} : vector<16x64xf32> to vector<1x64xf32>
    %263 = vector.broadcast %262 : vector<1x64xf32> to vector<8x64xf32>
    %264 = arith.mulf %263, %115 : vector<8x64xf32>
    %265 = math.exp %264 : vector<8x64xf32>
    %266 = vector.extract_strided_slice %102 {offsets = [9, 0], sizes = [1, 64], strides = [1, 1]} : vector<16x64xf32> to vector<1x64xf32>
    %267 = vector.extract_strided_slice %113 {offsets = [0, 9], sizes = [8, 1], strides = [1, 1]} : vector<8x16xf32> to vector<8x1xf32>
    %268 = vector.broadcast %266 : vector<1x64xf32> to vector<8x64xf32>
    %269 = vector.broadcast %267 : vector<8x1xf32> to vector<8x64xf32>
    %270 = arith.mulf %268, %269 : vector<8x64xf32>
    %271 = arith.mulf %265, %256 : vector<8x64xf32>
    %272 = arith.addf %271, %270 : vector<8x64xf32>
    %273 = vector.extract_strided_slice %114 {offsets = [0, 9], sizes = [8, 1], strides = [1, 1]} : vector<8x16xf32> to vector<8x1xf32>
    %274 = vector.broadcast %273 : vector<8x1xf32> to vector<8x64xf32>
    %275 = arith.mulf %272, %274 : vector<8x64xf32>
    %cst_51 = arith.constant dense<0.000000e+00> : vector<64xf32>
    %276 = vector.multi_reduction <add>, %275, %cst_51 [0] : vector<8x64xf32> to vector<64xf32>
    %277 = vector.shape_cast %276 : vector<64xf32> to vector<1x64xf32>
    %278 = vector.extract_strided_slice %101 {offsets = [10, 0], sizes = [1, 64], strides = [1, 1]} : vector<16x64xf32> to vector<1x64xf32>
    %279 = vector.broadcast %278 : vector<1x64xf32> to vector<8x64xf32>
    %280 = arith.mulf %279, %115 : vector<8x64xf32>
    %281 = math.exp %280 : vector<8x64xf32>
    %282 = vector.extract_strided_slice %102 {offsets = [10, 0], sizes = [1, 64], strides = [1, 1]} : vector<16x64xf32> to vector<1x64xf32>
    %283 = vector.extract_strided_slice %113 {offsets = [0, 10], sizes = [8, 1], strides = [1, 1]} : vector<8x16xf32> to vector<8x1xf32>
    %284 = vector.broadcast %282 : vector<1x64xf32> to vector<8x64xf32>
    %285 = vector.broadcast %283 : vector<8x1xf32> to vector<8x64xf32>
    %286 = arith.mulf %284, %285 : vector<8x64xf32>
    %287 = arith.mulf %281, %272 : vector<8x64xf32>
    %288 = arith.addf %287, %286 : vector<8x64xf32>
    %289 = vector.extract_strided_slice %114 {offsets = [0, 10], sizes = [8, 1], strides = [1, 1]} : vector<8x16xf32> to vector<8x1xf32>
    %290 = vector.broadcast %289 : vector<8x1xf32> to vector<8x64xf32>
    %291 = arith.mulf %288, %290 : vector<8x64xf32>
    %cst_52 = arith.constant dense<0.000000e+00> : vector<64xf32>
    %292 = vector.multi_reduction <add>, %291, %cst_52 [0] : vector<8x64xf32> to vector<64xf32>
    %293 = vector.shape_cast %292 : vector<64xf32> to vector<1x64xf32>
    %294 = vector.extract_strided_slice %101 {offsets = [11, 0], sizes = [1, 64], strides = [1, 1]} : vector<16x64xf32> to vector<1x64xf32>
    %295 = vector.broadcast %294 : vector<1x64xf32> to vector<8x64xf32>
    %296 = arith.mulf %295, %115 : vector<8x64xf32>
    %297 = math.exp %296 : vector<8x64xf32>
    %298 = vector.extract_strided_slice %102 {offsets = [11, 0], sizes = [1, 64], strides = [1, 1]} : vector<16x64xf32> to vector<1x64xf32>
    %299 = vector.extract_strided_slice %113 {offsets = [0, 11], sizes = [8, 1], strides = [1, 1]} : vector<8x16xf32> to vector<8x1xf32>
    %300 = vector.broadcast %298 : vector<1x64xf32> to vector<8x64xf32>
    %301 = vector.broadcast %299 : vector<8x1xf32> to vector<8x64xf32>
    %302 = arith.mulf %300, %301 : vector<8x64xf32>
    %303 = arith.mulf %297, %288 : vector<8x64xf32>
    %304 = arith.addf %303, %302 : vector<8x64xf32>
    %305 = vector.extract_strided_slice %114 {offsets = [0, 11], sizes = [8, 1], strides = [1, 1]} : vector<8x16xf32> to vector<8x1xf32>
    %306 = vector.broadcast %305 : vector<8x1xf32> to vector<8x64xf32>
    %307 = arith.mulf %304, %306 : vector<8x64xf32>
    %cst_53 = arith.constant dense<0.000000e+00> : vector<64xf32>
    %308 = vector.multi_reduction <add>, %307, %cst_53 [0] : vector<8x64xf32> to vector<64xf32>
    %309 = vector.shape_cast %308 : vector<64xf32> to vector<1x64xf32>
    %310 = vector.extract_strided_slice %101 {offsets = [12, 0], sizes = [1, 64], strides = [1, 1]} : vector<16x64xf32> to vector<1x64xf32>
    %311 = vector.broadcast %310 : vector<1x64xf32> to vector<8x64xf32>
    %312 = arith.mulf %311, %115 : vector<8x64xf32>
    %313 = math.exp %312 : vector<8x64xf32>
    %314 = vector.extract_strided_slice %102 {offsets = [12, 0], sizes = [1, 64], strides = [1, 1]} : vector<16x64xf32> to vector<1x64xf32>
    %315 = vector.extract_strided_slice %113 {offsets = [0, 12], sizes = [8, 1], strides = [1, 1]} : vector<8x16xf32> to vector<8x1xf32>
    %316 = vector.broadcast %314 : vector<1x64xf32> to vector<8x64xf32>
    %317 = vector.broadcast %315 : vector<8x1xf32> to vector<8x64xf32>
    %318 = arith.mulf %316, %317 : vector<8x64xf32>
    %319 = arith.mulf %313, %304 : vector<8x64xf32>
    %320 = arith.addf %319, %318 : vector<8x64xf32>
    %321 = vector.extract_strided_slice %114 {offsets = [0, 12], sizes = [8, 1], strides = [1, 1]} : vector<8x16xf32> to vector<8x1xf32>
    %322 = vector.broadcast %321 : vector<8x1xf32> to vector<8x64xf32>
    %323 = arith.mulf %320, %322 : vector<8x64xf32>
    %cst_54 = arith.constant dense<0.000000e+00> : vector<64xf32>
    %324 = vector.multi_reduction <add>, %323, %cst_54 [0] : vector<8x64xf32> to vector<64xf32>
    %325 = vector.shape_cast %324 : vector<64xf32> to vector<1x64xf32>
    %326 = vector.extract_strided_slice %101 {offsets = [13, 0], sizes = [1, 64], strides = [1, 1]} : vector<16x64xf32> to vector<1x64xf32>
    %327 = vector.broadcast %326 : vector<1x64xf32> to vector<8x64xf32>
    %328 = arith.mulf %327, %115 : vector<8x64xf32>
    %329 = math.exp %328 : vector<8x64xf32>
    %330 = vector.extract_strided_slice %102 {offsets = [13, 0], sizes = [1, 64], strides = [1, 1]} : vector<16x64xf32> to vector<1x64xf32>
    %331 = vector.extract_strided_slice %113 {offsets = [0, 13], sizes = [8, 1], strides = [1, 1]} : vector<8x16xf32> to vector<8x1xf32>
    %332 = vector.broadcast %330 : vector<1x64xf32> to vector<8x64xf32>
    %333 = vector.broadcast %331 : vector<8x1xf32> to vector<8x64xf32>
    %334 = arith.mulf %332, %333 : vector<8x64xf32>
    %335 = arith.mulf %329, %320 : vector<8x64xf32>
    %336 = arith.addf %335, %334 : vector<8x64xf32>
    %337 = vector.extract_strided_slice %114 {offsets = [0, 13], sizes = [8, 1], strides = [1, 1]} : vector<8x16xf32> to vector<8x1xf32>
    %338 = vector.broadcast %337 : vector<8x1xf32> to vector<8x64xf32>
    %339 = arith.mulf %336, %338 : vector<8x64xf32>
    %cst_55 = arith.constant dense<0.000000e+00> : vector<64xf32>
    %340 = vector.multi_reduction <add>, %339, %cst_55 [0] : vector<8x64xf32> to vector<64xf32>
    %341 = vector.shape_cast %340 : vector<64xf32> to vector<1x64xf32>
    %342 = vector.extract_strided_slice %101 {offsets = [14, 0], sizes = [1, 64], strides = [1, 1]} : vector<16x64xf32> to vector<1x64xf32>
    %343 = vector.broadcast %342 : vector<1x64xf32> to vector<8x64xf32>
    %344 = arith.mulf %343, %115 : vector<8x64xf32>
    %345 = math.exp %344 : vector<8x64xf32>
    %346 = vector.extract_strided_slice %102 {offsets = [14, 0], sizes = [1, 64], strides = [1, 1]} : vector<16x64xf32> to vector<1x64xf32>
    %347 = vector.extract_strided_slice %113 {offsets = [0, 14], sizes = [8, 1], strides = [1, 1]} : vector<8x16xf32> to vector<8x1xf32>
    %348 = vector.broadcast %346 : vector<1x64xf32> to vector<8x64xf32>
    %349 = vector.broadcast %347 : vector<8x1xf32> to vector<8x64xf32>
    %350 = arith.mulf %348, %349 : vector<8x64xf32>
    %351 = arith.mulf %345, %336 : vector<8x64xf32>
    %352 = arith.addf %351, %350 : vector<8x64xf32>
    %353 = vector.extract_strided_slice %114 {offsets = [0, 14], sizes = [8, 1], strides = [1, 1]} : vector<8x16xf32> to vector<8x1xf32>
    %354 = vector.broadcast %353 : vector<8x1xf32> to vector<8x64xf32>
    %355 = arith.mulf %352, %354 : vector<8x64xf32>
    %cst_56 = arith.constant dense<0.000000e+00> : vector<64xf32>
    %356 = vector.multi_reduction <add>, %355, %cst_56 [0] : vector<8x64xf32> to vector<64xf32>
    %357 = vector.shape_cast %356 : vector<64xf32> to vector<1x64xf32>
    %358 = vector.extract_strided_slice %101 {offsets = [15, 0], sizes = [1, 64], strides = [1, 1]} : vector<16x64xf32> to vector<1x64xf32>
    %359 = vector.broadcast %358 : vector<1x64xf32> to vector<8x64xf32>
    %360 = arith.mulf %359, %115 : vector<8x64xf32>
    %361 = math.exp %360 : vector<8x64xf32>
    %362 = vector.extract_strided_slice %102 {offsets = [15, 0], sizes = [1, 64], strides = [1, 1]} : vector<16x64xf32> to vector<1x64xf32>
    %363 = vector.extract_strided_slice %113 {offsets = [0, 15], sizes = [8, 1], strides = [1, 1]} : vector<8x16xf32> to vector<8x1xf32>
    %364 = vector.broadcast %362 : vector<1x64xf32> to vector<8x64xf32>
    %365 = vector.broadcast %363 : vector<8x1xf32> to vector<8x64xf32>
    %366 = arith.mulf %364, %365 : vector<8x64xf32>
    %367 = arith.mulf %361, %352 : vector<8x64xf32>
    %368 = arith.addf %367, %366 : vector<8x64xf32>
    %369 = vector.extract_strided_slice %114 {offsets = [0, 15], sizes = [8, 1], strides = [1, 1]} : vector<8x16xf32> to vector<8x1xf32>
    %370 = vector.broadcast %369 : vector<8x1xf32> to vector<8x64xf32>
    %371 = arith.mulf %368, %370 : vector<8x64xf32>
    %cst_57 = arith.constant dense<0.000000e+00> : vector<64xf32>
    %372 = vector.multi_reduction <add>, %371, %cst_57 [0] : vector<8x64xf32> to vector<64xf32>
    %373 = vector.shape_cast %372 : vector<64xf32> to vector<1x64xf32>
    %374 = tpu.concatenate %132, %148, %164, %180, %196, %212, %228, %244, %261, %277, %293, %309, %325, %341, %357, %373 in 0 : vector<1x64xf32>, vector<1x64xf32>, vector<1x64xf32>, vector<1x64xf32>, vector<1x64xf32>, vector<1x64xf32>, vector<1x64xf32>, vector<1x64xf32>, vector<1x64xf32>, vector<1x64xf32>, vector<1x64xf32>, vector<1x64xf32>, vector<1x64xf32>, vector<1x64xf32>, vector<1x64xf32>, vector<1x64xf32> -> vector<16x64xf32>
    %c0_58 = arith.constant 0 : index
    %c0_59 = arith.constant 0 : index
    %375 = vector.load %arg10[%c0_58, %c0_59] : memref<1x64xf32, #tpu.memory_space<vmem>>, vector<1x64xf32>
    %376 = vector.broadcast %375 : vector<1x64xf32> to vector<16x64xf32>
    %377 = arith.mulf %85, %376 : vector<16x64xf32>
    %378 = arith.addf %374, %377 : vector<16x64xf32>
    %379 = arith.mulf %378, %110 : vector<16x64xf32>
    %c0_60 = arith.constant 0 : index
    %c0_61 = arith.constant 0 : index
    %380 = vector.load %arg11[%c0_60, %c0_61] : memref<64x32xf32, #tpu.memory_space<vmem>>, vector<64x32xf32>
    %cst_62 = arith.constant dense<0.000000e+00> : vector<16x32xf32>
    %381 = tpu.matmul %379, %380, %cst_62 {dimension_numbers = #tpu.dot_dimension_numbers<[1], [0], [0], [1], [0, 0, 1, 1], [], []>} : vector<16x64xf32>, vector<64x32xf32>, vector<16x32xf32> -> vector<16x32xf32>
    %382 = arith.addf %0, %381 : vector<16x32xf32>
    %c0_63 = arith.constant 0 : index
    %c0_64 = arith.constant 0 : index
    %383 = vector.load %arg12[%c0_63, %c0_64] : memref<1x32xf32, #tpu.memory_space<vmem>>, vector<1x32xf32>
    %384 = vector.broadcast %383 : vector<1x32xf32> to vector<16x32xf32>
    %385 = arith.addf %382, %384 : vector<16x32xf32>
    %c0_65 = arith.constant 0 : index
    %c0_66 = arith.constant 0 : index
    %386 = vector.load %arg13[%c0_65, %c0_66] : memref<1x32xf32, #tpu.memory_space<vmem>>, vector<1x32xf32>
    %387 = arith.mulf %385, %385 : vector<16x32xf32>
    %cst_67 = arith.constant dense<0.000000e+00> : vector<16xf32>
    %388 = vector.multi_reduction <add>, %387, %cst_67 [1] : vector<16x32xf32> to vector<16xf32>
    %389 = vector.shape_cast %388 : vector<16xf32> to vector<16x1xf32>
    %cst_68 = arith.constant 3.200000e+01 : f32
    %390 = vector.broadcast %cst_68 : f32 to vector<16x1xf32>
    %391 = arith.divf %389, %390 : vector<16x1xf32>
    %cst_69 = arith.constant 9.99999997E-7 : f32
    %392 = vector.broadcast %cst_69 : f32 to vector<16x1xf32>
    %393 = arith.addf %391, %392 : vector<16x1xf32>
    %394 = math.rsqrt %393 : vector<16x1xf32>
    %395 = vector.broadcast %394 : vector<16x1xf32> to vector<16x32xf32>
    %396 = arith.mulf %385, %395 : vector<16x32xf32>
    %397 = vector.broadcast %386 : vector<1x32xf32> to vector<16x32xf32>
    %398 = arith.mulf %396, %397 : vector<16x32xf32>
    %c0_70 = arith.constant 0 : index
    %c0_71 = arith.constant 0 : index
    %399 = vector.load %arg14[%c0_70, %c0_71] : memref<32x128xf32, #tpu.memory_space<vmem>>, vector<32x128xf32>
    %cst_72 = arith.constant dense<0.000000e+00> : vector<16x128xf32>
    %400 = tpu.matmul %398, %399, %cst_72 {dimension_numbers = #tpu.dot_dimension_numbers<[1], [0], [0], [1], [0, 0, 1, 1], [], []>} : vector<16x32xf32>, vector<32x128xf32>, vector<16x128xf32> -> vector<16x128xf32>
    %401 = vector.extract_strided_slice %400 {offsets = [0, 0], sizes = [16, 64], strides = [1, 1]} : vector<16x128xf32> to vector<16x64xf32>
    %cst_73 = arith.constant 0.000000e+00 : f32
    %402 = vector.broadcast %cst_73 : f32 to vector<16x64xf32>
    %403 = arith.subf %402, %401 : vector<16x64xf32>
    %404 = math.exp %403 : vector<16x64xf32>
    %cst_74 = arith.constant 1.000000e+00 : f32
    %405 = vector.broadcast %cst_74 : f32 to vector<16x64xf32>
    %406 = arith.addf %405, %404 : vector<16x64xf32>
    %cst_75 = arith.constant 1.000000e+00 : f32
    %407 = vector.broadcast %cst_75 : f32 to vector<16x64xf32>
    %408 = arith.divf %407, %406 : vector<16x64xf32>
    %409 = arith.mulf %401, %408 : vector<16x64xf32>
    %410 = vector.extract_strided_slice %400 {offsets = [0, 64], sizes = [16, 64], strides = [1, 1]} : vector<16x128xf32> to vector<16x64xf32>
    %411 = arith.mulf %409, %410 : vector<16x64xf32>
    %c0_76 = arith.constant 0 : index
    %c0_77 = arith.constant 0 : index
    %412 = vector.load %arg15[%c0_76, %c0_77] : memref<64x32xf32, #tpu.memory_space<vmem>>, vector<64x32xf32>
    %cst_78 = arith.constant dense<0.000000e+00> : vector<16x32xf32>
    %413 = tpu.matmul %411, %412, %cst_78 {dimension_numbers = #tpu.dot_dimension_numbers<[1], [0], [0], [1], [0, 0, 1, 1], [], []>} : vector<16x64xf32>, vector<64x32xf32>, vector<16x32xf32> -> vector<16x32xf32>
    %414 = arith.addf %385, %413 : vector<16x32xf32>
    %c0_79 = arith.constant 0 : index
    %c0_80 = arith.constant 0 : index
    %415 = vector.load %arg16[%c0_79, %c0_80] : memref<1x32xf32, #tpu.memory_space<vmem>>, vector<1x32xf32>
    %416 = arith.mulf %414, %414 : vector<16x32xf32>
    %cst_81 = arith.constant dense<0.000000e+00> : vector<16xf32>
    %417 = vector.multi_reduction <add>, %416, %cst_81 [1] : vector<16x32xf32> to vector<16xf32>
    %418 = vector.shape_cast %417 : vector<16xf32> to vector<16x1xf32>
    %cst_82 = arith.constant 3.200000e+01 : f32
    %419 = vector.broadcast %cst_82 : f32 to vector<16x1xf32>
    %420 = arith.divf %418, %419 : vector<16x1xf32>
    %cst_83 = arith.constant 9.99999997E-7 : f32
    %421 = vector.broadcast %cst_83 : f32 to vector<16x1xf32>
    %422 = arith.addf %420, %421 : vector<16x1xf32>
    %423 = math.rsqrt %422 : vector<16x1xf32>
    %424 = vector.broadcast %423 : vector<16x1xf32> to vector<16x32xf32>
    %425 = arith.mulf %414, %424 : vector<16x32xf32>
    %426 = vector.broadcast %415 : vector<1x32xf32> to vector<16x32xf32>
    %427 = arith.mulf %425, %426 : vector<16x32xf32>
    %c0_84 = arith.constant 0 : index
    %c0_85 = arith.constant 0 : index
    %428 = vector.load %arg17[%c0_84, %c0_85] : memref<32x96xf32, #tpu.memory_space<vmem>>, vector<32x96xf32>
    %cst_86 = arith.constant dense<0.000000e+00> : vector<16x96xf32>
    %429 = tpu.matmul %427, %428, %cst_86 {dimension_numbers = #tpu.dot_dimension_numbers<[1], [0], [0], [1], [0, 0, 1, 1], [], []>} : vector<16x32xf32>, vector<32x96xf32>, vector<16x96xf32> -> vector<16x96xf32>
    %c0_87 = arith.constant 0 : index
    %c0_88 = arith.constant 0 : index
    %430 = vector.load %arg18[%c0_87, %c0_88] : memref<1x96xf32, #tpu.memory_space<vmem>>, vector<1x96xf32>
    %431 = vector.broadcast %430 : vector<1x96xf32> to vector<16x96xf32>
    %432 = arith.addf %429, %431 : vector<16x96xf32>
    %433 = vector.extract_strided_slice %432 {offsets = [0, 0], sizes = [16, 32], strides = [1, 1]} : vector<16x96xf32> to vector<16x32xf32>
    %434 = vector.extract_strided_slice %432 {offsets = [0, 32], sizes = [16, 32], strides = [1, 1]} : vector<16x96xf32> to vector<16x32xf32>
    %435 = vector.extract_strided_slice %432 {offsets = [0, 64], sizes = [16, 32], strides = [1, 1]} : vector<16x96xf32> to vector<16x32xf32>
    %436 = tpu.iota {dimensions = array<i32: 0>} : vector<8x8xi32>
    %437 = tpu.iota {dimensions = array<i32: 1>} : vector<8x8xi32>
    %438 = arith.cmpi sle, %437, %436 : vector<8x8xi32>
    %439 = vector.extract_strided_slice %433 {offsets = [0, 0], sizes = [8, 32], strides = [1, 1]} : vector<16x32xf32> to vector<8x32xf32>
    %440 = vector.extract_strided_slice %434 {offsets = [0, 0], sizes = [8, 32], strides = [1, 1]} : vector<16x32xf32> to vector<8x32xf32>
    %441 = vector.extract_strided_slice %435 {offsets = [0, 0], sizes = [8, 32], strides = [1, 1]} : vector<16x32xf32> to vector<8x32xf32>
    %442 = vector.extract_strided_slice %439 {offsets = [0, 0], sizes = [8, 8], strides = [1, 1]} : vector<8x32xf32> to vector<8x8xf32>
    %443 = vector.extract_strided_slice %440 {offsets = [0, 0], sizes = [8, 8], strides = [1, 1]} : vector<8x32xf32> to vector<8x8xf32>
    %444 = tpu.transpose %443, [1, 0] : vector<8x8xf32> -> vector<8x8xf32>
    %cst_89 = arith.constant dense<0.000000e+00> : vector<8x8xf32>
    %445 = tpu.matmul %442, %444, %cst_89 {dimension_numbers = #tpu.dot_dimension_numbers<[1], [0], [0], [1], [0, 0, 1, 1], [], []>} : vector<8x8xf32>, vector<8x8xf32>, vector<8x8xf32> -> vector<8x8xf32>
    %cst_90 = arith.constant 0.353553385 : f32
    %446 = vector.broadcast %cst_90 : f32 to vector<8x8xf32>
    %447 = arith.mulf %445, %446 : vector<8x8xf32>
    %cst_91 = arith.constant -3.40282347E+38 : f32
    %448 = vector.broadcast %cst_91 : f32 to vector<8x8xf32>
    %449 = arith.select %438, %447, %448 : vector<8x8xi1>, vector<8x8xf32>
    %cst_92 = arith.constant dense<0xFF800000> : vector<8xf32>
    %450 = vector.multi_reduction <maximumf>, %449, %cst_92 [1] : vector<8x8xf32> to vector<8xf32>
    %451 = vector.shape_cast %450 : vector<8xf32> to vector<8x1xf32>
    %452 = vector.broadcast %451 : vector<8x1xf32> to vector<8x8xf32>
    %453 = arith.subf %449, %452 : vector<8x8xf32>
    %454 = math.exp %453 : vector<8x8xf32>
    %cst_93 = arith.constant dense<0.000000e+00> : vector<8xf32>
    %455 = vector.multi_reduction <add>, %454, %cst_93 [1] : vector<8x8xf32> to vector<8xf32>
    %456 = vector.shape_cast %455 : vector<8xf32> to vector<8x1xf32>
    %457 = vector.broadcast %456 : vector<8x1xf32> to vector<8x8xf32>
    %458 = arith.divf %454, %457 : vector<8x8xf32>
    %459 = vector.extract_strided_slice %441 {offsets = [0, 0], sizes = [8, 8], strides = [1, 1]} : vector<8x32xf32> to vector<8x8xf32>
    %cst_94 = arith.constant dense<0.000000e+00> : vector<8x8xf32>
    %460 = tpu.matmul %458, %459, %cst_94 {dimension_numbers = #tpu.dot_dimension_numbers<[1], [0], [0], [1], [0, 0, 1, 1], [], []>} : vector<8x8xf32>, vector<8x8xf32>, vector<8x8xf32> -> vector<8x8xf32>
    %461 = vector.extract_strided_slice %439 {offsets = [0, 8], sizes = [8, 8], strides = [1, 1]} : vector<8x32xf32> to vector<8x8xf32>
    %462 = vector.extract_strided_slice %440 {offsets = [0, 8], sizes = [8, 8], strides = [1, 1]} : vector<8x32xf32> to vector<8x8xf32>
    %463 = tpu.transpose %462, [1, 0] : vector<8x8xf32> -> vector<8x8xf32>
    %cst_95 = arith.constant dense<0.000000e+00> : vector<8x8xf32>
    %464 = tpu.matmul %461, %463, %cst_95 {dimension_numbers = #tpu.dot_dimension_numbers<[1], [0], [0], [1], [0, 0, 1, 1], [], []>} : vector<8x8xf32>, vector<8x8xf32>, vector<8x8xf32> -> vector<8x8xf32>
    %cst_96 = arith.constant 0.353553385 : f32
    %465 = vector.broadcast %cst_96 : f32 to vector<8x8xf32>
    %466 = arith.mulf %464, %465 : vector<8x8xf32>
    %cst_97 = arith.constant -3.40282347E+38 : f32
    %467 = vector.broadcast %cst_97 : f32 to vector<8x8xf32>
    %468 = arith.select %438, %466, %467 : vector<8x8xi1>, vector<8x8xf32>
    %cst_98 = arith.constant dense<0xFF800000> : vector<8xf32>
    %469 = vector.multi_reduction <maximumf>, %468, %cst_98 [1] : vector<8x8xf32> to vector<8xf32>
    %470 = vector.shape_cast %469 : vector<8xf32> to vector<8x1xf32>
    %471 = vector.broadcast %470 : vector<8x1xf32> to vector<8x8xf32>
    %472 = arith.subf %468, %471 : vector<8x8xf32>
    %473 = math.exp %472 : vector<8x8xf32>
    %cst_99 = arith.constant dense<0.000000e+00> : vector<8xf32>
    %474 = vector.multi_reduction <add>, %473, %cst_99 [1] : vector<8x8xf32> to vector<8xf32>
    %475 = vector.shape_cast %474 : vector<8xf32> to vector<8x1xf32>
    %476 = vector.broadcast %475 : vector<8x1xf32> to vector<8x8xf32>
    %477 = arith.divf %473, %476 : vector<8x8xf32>
    %478 = vector.extract_strided_slice %441 {offsets = [0, 8], sizes = [8, 8], strides = [1, 1]} : vector<8x32xf32> to vector<8x8xf32>
    %cst_100 = arith.constant dense<0.000000e+00> : vector<8x8xf32>
    %479 = tpu.matmul %477, %478, %cst_100 {dimension_numbers = #tpu.dot_dimension_numbers<[1], [0], [0], [1], [0, 0, 1, 1], [], []>} : vector<8x8xf32>, vector<8x8xf32>, vector<8x8xf32> -> vector<8x8xf32>
    %480 = vector.extract_strided_slice %439 {offsets = [0, 16], sizes = [8, 8], strides = [1, 1]} : vector<8x32xf32> to vector<8x8xf32>
    %481 = vector.extract_strided_slice %440 {offsets = [0, 16], sizes = [8, 8], strides = [1, 1]} : vector<8x32xf32> to vector<8x8xf32>
    %482 = tpu.transpose %481, [1, 0] : vector<8x8xf32> -> vector<8x8xf32>
    %cst_101 = arith.constant dense<0.000000e+00> : vector<8x8xf32>
    %483 = tpu.matmul %480, %482, %cst_101 {dimension_numbers = #tpu.dot_dimension_numbers<[1], [0], [0], [1], [0, 0, 1, 1], [], []>} : vector<8x8xf32>, vector<8x8xf32>, vector<8x8xf32> -> vector<8x8xf32>
    %cst_102 = arith.constant 0.353553385 : f32
    %484 = vector.broadcast %cst_102 : f32 to vector<8x8xf32>
    %485 = arith.mulf %483, %484 : vector<8x8xf32>
    %cst_103 = arith.constant -3.40282347E+38 : f32
    %486 = vector.broadcast %cst_103 : f32 to vector<8x8xf32>
    %487 = arith.select %438, %485, %486 : vector<8x8xi1>, vector<8x8xf32>
    %cst_104 = arith.constant dense<0xFF800000> : vector<8xf32>
    %488 = vector.multi_reduction <maximumf>, %487, %cst_104 [1] : vector<8x8xf32> to vector<8xf32>
    %489 = vector.shape_cast %488 : vector<8xf32> to vector<8x1xf32>
    %490 = vector.broadcast %489 : vector<8x1xf32> to vector<8x8xf32>
    %491 = arith.subf %487, %490 : vector<8x8xf32>
    %492 = math.exp %491 : vector<8x8xf32>
    %cst_105 = arith.constant dense<0.000000e+00> : vector<8xf32>
    %493 = vector.multi_reduction <add>, %492, %cst_105 [1] : vector<8x8xf32> to vector<8xf32>
    %494 = vector.shape_cast %493 : vector<8xf32> to vector<8x1xf32>
    %495 = vector.broadcast %494 : vector<8x1xf32> to vector<8x8xf32>
    %496 = arith.divf %492, %495 : vector<8x8xf32>
    %497 = vector.extract_strided_slice %441 {offsets = [0, 16], sizes = [8, 8], strides = [1, 1]} : vector<8x32xf32> to vector<8x8xf32>
    %cst_106 = arith.constant dense<0.000000e+00> : vector<8x8xf32>
    %498 = tpu.matmul %496, %497, %cst_106 {dimension_numbers = #tpu.dot_dimension_numbers<[1], [0], [0], [1], [0, 0, 1, 1], [], []>} : vector<8x8xf32>, vector<8x8xf32>, vector<8x8xf32> -> vector<8x8xf32>
    %499 = vector.extract_strided_slice %439 {offsets = [0, 24], sizes = [8, 8], strides = [1, 1]} : vector<8x32xf32> to vector<8x8xf32>
    %500 = vector.extract_strided_slice %440 {offsets = [0, 24], sizes = [8, 8], strides = [1, 1]} : vector<8x32xf32> to vector<8x8xf32>
    %501 = tpu.transpose %500, [1, 0] : vector<8x8xf32> -> vector<8x8xf32>
    %cst_107 = arith.constant dense<0.000000e+00> : vector<8x8xf32>
    %502 = tpu.matmul %499, %501, %cst_107 {dimension_numbers = #tpu.dot_dimension_numbers<[1], [0], [0], [1], [0, 0, 1, 1], [], []>} : vector<8x8xf32>, vector<8x8xf32>, vector<8x8xf32> -> vector<8x8xf32>
    %cst_108 = arith.constant 0.353553385 : f32
    %503 = vector.broadcast %cst_108 : f32 to vector<8x8xf32>
    %504 = arith.mulf %502, %503 : vector<8x8xf32>
    %cst_109 = arith.constant -3.40282347E+38 : f32
    %505 = vector.broadcast %cst_109 : f32 to vector<8x8xf32>
    %506 = arith.select %438, %504, %505 : vector<8x8xi1>, vector<8x8xf32>
    %cst_110 = arith.constant dense<0xFF800000> : vector<8xf32>
    %507 = vector.multi_reduction <maximumf>, %506, %cst_110 [1] : vector<8x8xf32> to vector<8xf32>
    %508 = vector.shape_cast %507 : vector<8xf32> to vector<8x1xf32>
    %509 = vector.broadcast %508 : vector<8x1xf32> to vector<8x8xf32>
    %510 = arith.subf %506, %509 : vector<8x8xf32>
    %511 = math.exp %510 : vector<8x8xf32>
    %cst_111 = arith.constant dense<0.000000e+00> : vector<8xf32>
    %512 = vector.multi_reduction <add>, %511, %cst_111 [1] : vector<8x8xf32> to vector<8xf32>
    %513 = vector.shape_cast %512 : vector<8xf32> to vector<8x1xf32>
    %514 = vector.broadcast %513 : vector<8x1xf32> to vector<8x8xf32>
    %515 = arith.divf %511, %514 : vector<8x8xf32>
    %516 = vector.extract_strided_slice %441 {offsets = [0, 24], sizes = [8, 8], strides = [1, 1]} : vector<8x32xf32> to vector<8x8xf32>
    %cst_112 = arith.constant dense<0.000000e+00> : vector<8x8xf32>
    %517 = tpu.matmul %515, %516, %cst_112 {dimension_numbers = #tpu.dot_dimension_numbers<[1], [0], [0], [1], [0, 0, 1, 1], [], []>} : vector<8x8xf32>, vector<8x8xf32>, vector<8x8xf32> -> vector<8x8xf32>
    %518 = tpu.concatenate %460, %479, %498, %517 in 1 : vector<8x8xf32>, vector<8x8xf32>, vector<8x8xf32>, vector<8x8xf32> -> vector<8x32xf32>
    %519 = vector.extract_strided_slice %433 {offsets = [8, 0], sizes = [8, 32], strides = [1, 1]} : vector<16x32xf32> to vector<8x32xf32>
    %520 = vector.extract_strided_slice %434 {offsets = [8, 0], sizes = [8, 32], strides = [1, 1]} : vector<16x32xf32> to vector<8x32xf32>
    %521 = vector.extract_strided_slice %435 {offsets = [8, 0], sizes = [8, 32], strides = [1, 1]} : vector<16x32xf32> to vector<8x32xf32>
    %522 = vector.extract_strided_slice %519 {offsets = [0, 0], sizes = [8, 8], strides = [1, 1]} : vector<8x32xf32> to vector<8x8xf32>
    %523 = vector.extract_strided_slice %520 {offsets = [0, 0], sizes = [8, 8], strides = [1, 1]} : vector<8x32xf32> to vector<8x8xf32>
    %524 = tpu.transpose %523, [1, 0] : vector<8x8xf32> -> vector<8x8xf32>
    %cst_113 = arith.constant dense<0.000000e+00> : vector<8x8xf32>
    %525 = tpu.matmul %522, %524, %cst_113 {dimension_numbers = #tpu.dot_dimension_numbers<[1], [0], [0], [1], [0, 0, 1, 1], [], []>} : vector<8x8xf32>, vector<8x8xf32>, vector<8x8xf32> -> vector<8x8xf32>
    %cst_114 = arith.constant 0.353553385 : f32
    %526 = vector.broadcast %cst_114 : f32 to vector<8x8xf32>
    %527 = arith.mulf %525, %526 : vector<8x8xf32>
    %cst_115 = arith.constant -3.40282347E+38 : f32
    %528 = vector.broadcast %cst_115 : f32 to vector<8x8xf32>
    %529 = arith.select %438, %527, %528 : vector<8x8xi1>, vector<8x8xf32>
    %cst_116 = arith.constant dense<0xFF800000> : vector<8xf32>
    %530 = vector.multi_reduction <maximumf>, %529, %cst_116 [1] : vector<8x8xf32> to vector<8xf32>
    %531 = vector.shape_cast %530 : vector<8xf32> to vector<8x1xf32>
    %532 = vector.broadcast %531 : vector<8x1xf32> to vector<8x8xf32>
    %533 = arith.subf %529, %532 : vector<8x8xf32>
    %534 = math.exp %533 : vector<8x8xf32>
    %cst_117 = arith.constant dense<0.000000e+00> : vector<8xf32>
    %535 = vector.multi_reduction <add>, %534, %cst_117 [1] : vector<8x8xf32> to vector<8xf32>
    %536 = vector.shape_cast %535 : vector<8xf32> to vector<8x1xf32>
    %537 = vector.broadcast %536 : vector<8x1xf32> to vector<8x8xf32>
    %538 = arith.divf %534, %537 : vector<8x8xf32>
    %539 = vector.extract_strided_slice %521 {offsets = [0, 0], sizes = [8, 8], strides = [1, 1]} : vector<8x32xf32> to vector<8x8xf32>
    %cst_118 = arith.constant dense<0.000000e+00> : vector<8x8xf32>
    %540 = tpu.matmul %538, %539, %cst_118 {dimension_numbers = #tpu.dot_dimension_numbers<[1], [0], [0], [1], [0, 0, 1, 1], [], []>} : vector<8x8xf32>, vector<8x8xf32>, vector<8x8xf32> -> vector<8x8xf32>
    %541 = vector.extract_strided_slice %519 {offsets = [0, 8], sizes = [8, 8], strides = [1, 1]} : vector<8x32xf32> to vector<8x8xf32>
    %542 = vector.extract_strided_slice %520 {offsets = [0, 8], sizes = [8, 8], strides = [1, 1]} : vector<8x32xf32> to vector<8x8xf32>
    %543 = tpu.transpose %542, [1, 0] : vector<8x8xf32> -> vector<8x8xf32>
    %cst_119 = arith.constant dense<0.000000e+00> : vector<8x8xf32>
    %544 = tpu.matmul %541, %543, %cst_119 {dimension_numbers = #tpu.dot_dimension_numbers<[1], [0], [0], [1], [0, 0, 1, 1], [], []>} : vector<8x8xf32>, vector<8x8xf32>, vector<8x8xf32> -> vector<8x8xf32>
    %cst_120 = arith.constant 0.353553385 : f32
    %545 = vector.broadcast %cst_120 : f32 to vector<8x8xf32>
    %546 = arith.mulf %544, %545 : vector<8x8xf32>
    %cst_121 = arith.constant -3.40282347E+38 : f32
    %547 = vector.broadcast %cst_121 : f32 to vector<8x8xf32>
    %548 = arith.select %438, %546, %547 : vector<8x8xi1>, vector<8x8xf32>
    %cst_122 = arith.constant dense<0xFF800000> : vector<8xf32>
    %549 = vector.multi_reduction <maximumf>, %548, %cst_122 [1] : vector<8x8xf32> to vector<8xf32>
    %550 = vector.shape_cast %549 : vector<8xf32> to vector<8x1xf32>
    %551 = vector.broadcast %550 : vector<8x1xf32> to vector<8x8xf32>
    %552 = arith.subf %548, %551 : vector<8x8xf32>
    %553 = math.exp %552 : vector<8x8xf32>
    %cst_123 = arith.constant dense<0.000000e+00> : vector<8xf32>
    %554 = vector.multi_reduction <add>, %553, %cst_123 [1] : vector<8x8xf32> to vector<8xf32>
    %555 = vector.shape_cast %554 : vector<8xf32> to vector<8x1xf32>
    %556 = vector.broadcast %555 : vector<8x1xf32> to vector<8x8xf32>
    %557 = arith.divf %553, %556 : vector<8x8xf32>
    %558 = vector.extract_strided_slice %521 {offsets = [0, 8], sizes = [8, 8], strides = [1, 1]} : vector<8x32xf32> to vector<8x8xf32>
    %cst_124 = arith.constant dense<0.000000e+00> : vector<8x8xf32>
    %559 = tpu.matmul %557, %558, %cst_124 {dimension_numbers = #tpu.dot_dimension_numbers<[1], [0], [0], [1], [0, 0, 1, 1], [], []>} : vector<8x8xf32>, vector<8x8xf32>, vector<8x8xf32> -> vector<8x8xf32>
    %560 = vector.extract_strided_slice %519 {offsets = [0, 16], sizes = [8, 8], strides = [1, 1]} : vector<8x32xf32> to vector<8x8xf32>
    %561 = vector.extract_strided_slice %520 {offsets = [0, 16], sizes = [8, 8], strides = [1, 1]} : vector<8x32xf32> to vector<8x8xf32>
    %562 = tpu.transpose %561, [1, 0] : vector<8x8xf32> -> vector<8x8xf32>
    %cst_125 = arith.constant dense<0.000000e+00> : vector<8x8xf32>
    %563 = tpu.matmul %560, %562, %cst_125 {dimension_numbers = #tpu.dot_dimension_numbers<[1], [0], [0], [1], [0, 0, 1, 1], [], []>} : vector<8x8xf32>, vector<8x8xf32>, vector<8x8xf32> -> vector<8x8xf32>
    %cst_126 = arith.constant 0.353553385 : f32
    %564 = vector.broadcast %cst_126 : f32 to vector<8x8xf32>
    %565 = arith.mulf %563, %564 : vector<8x8xf32>
    %cst_127 = arith.constant -3.40282347E+38 : f32
    %566 = vector.broadcast %cst_127 : f32 to vector<8x8xf32>
    %567 = arith.select %438, %565, %566 : vector<8x8xi1>, vector<8x8xf32>
    %cst_128 = arith.constant dense<0xFF800000> : vector<8xf32>
    %568 = vector.multi_reduction <maximumf>, %567, %cst_128 [1] : vector<8x8xf32> to vector<8xf32>
    %569 = vector.shape_cast %568 : vector<8xf32> to vector<8x1xf32>
    %570 = vector.broadcast %569 : vector<8x1xf32> to vector<8x8xf32>
    %571 = arith.subf %567, %570 : vector<8x8xf32>
    %572 = math.exp %571 : vector<8x8xf32>
    %cst_129 = arith.constant dense<0.000000e+00> : vector<8xf32>
    %573 = vector.multi_reduction <add>, %572, %cst_129 [1] : vector<8x8xf32> to vector<8xf32>
    %574 = vector.shape_cast %573 : vector<8xf32> to vector<8x1xf32>
    %575 = vector.broadcast %574 : vector<8x1xf32> to vector<8x8xf32>
    %576 = arith.divf %572, %575 : vector<8x8xf32>
    %577 = vector.extract_strided_slice %521 {offsets = [0, 16], sizes = [8, 8], strides = [1, 1]} : vector<8x32xf32> to vector<8x8xf32>
    %cst_130 = arith.constant dense<0.000000e+00> : vector<8x8xf32>
    %578 = tpu.matmul %576, %577, %cst_130 {dimension_numbers = #tpu.dot_dimension_numbers<[1], [0], [0], [1], [0, 0, 1, 1], [], []>} : vector<8x8xf32>, vector<8x8xf32>, vector<8x8xf32> -> vector<8x8xf32>
    %579 = vector.extract_strided_slice %519 {offsets = [0, 24], sizes = [8, 8], strides = [1, 1]} : vector<8x32xf32> to vector<8x8xf32>
    %580 = vector.extract_strided_slice %520 {offsets = [0, 24], sizes = [8, 8], strides = [1, 1]} : vector<8x32xf32> to vector<8x8xf32>
    %581 = tpu.transpose %580, [1, 0] : vector<8x8xf32> -> vector<8x8xf32>
    %cst_131 = arith.constant dense<0.000000e+00> : vector<8x8xf32>
    %582 = tpu.matmul %579, %581, %cst_131 {dimension_numbers = #tpu.dot_dimension_numbers<[1], [0], [0], [1], [0, 0, 1, 1], [], []>} : vector<8x8xf32>, vector<8x8xf32>, vector<8x8xf32> -> vector<8x8xf32>
    %cst_132 = arith.constant 0.353553385 : f32
    %583 = vector.broadcast %cst_132 : f32 to vector<8x8xf32>
    %584 = arith.mulf %582, %583 : vector<8x8xf32>
    %cst_133 = arith.constant -3.40282347E+38 : f32
    %585 = vector.broadcast %cst_133 : f32 to vector<8x8xf32>
    %586 = arith.select %438, %584, %585 : vector<8x8xi1>, vector<8x8xf32>
    %cst_134 = arith.constant dense<0xFF800000> : vector<8xf32>
    %587 = vector.multi_reduction <maximumf>, %586, %cst_134 [1] : vector<8x8xf32> to vector<8xf32>
    %588 = vector.shape_cast %587 : vector<8xf32> to vector<8x1xf32>
    %589 = vector.broadcast %588 : vector<8x1xf32> to vector<8x8xf32>
    %590 = arith.subf %586, %589 : vector<8x8xf32>
    %591 = math.exp %590 : vector<8x8xf32>
    %cst_135 = arith.constant dense<0.000000e+00> : vector<8xf32>
    %592 = vector.multi_reduction <add>, %591, %cst_135 [1] : vector<8x8xf32> to vector<8xf32>
    %593 = vector.shape_cast %592 : vector<8xf32> to vector<8x1xf32>
    %594 = vector.broadcast %593 : vector<8x1xf32> to vector<8x8xf32>
    %595 = arith.divf %591, %594 : vector<8x8xf32>
    %596 = vector.extract_strided_slice %521 {offsets = [0, 24], sizes = [8, 8], strides = [1, 1]} : vector<8x32xf32> to vector<8x8xf32>
    %cst_136 = arith.constant dense<0.000000e+00> : vector<8x8xf32>
    %597 = tpu.matmul %595, %596, %cst_136 {dimension_numbers = #tpu.dot_dimension_numbers<[1], [0], [0], [1], [0, 0, 1, 1], [], []>} : vector<8x8xf32>, vector<8x8xf32>, vector<8x8xf32> -> vector<8x8xf32>
    %598 = tpu.concatenate %540, %559, %578, %597 in 1 : vector<8x8xf32>, vector<8x8xf32>, vector<8x8xf32>, vector<8x8xf32> -> vector<8x32xf32>
    %599 = tpu.concatenate %518, %598 in 0 : vector<8x32xf32>, vector<8x32xf32> -> vector<16x32xf32>
    %c0_137 = arith.constant 0 : index
    %c0_138 = arith.constant 0 : index
    %600 = vector.load %arg19[%c0_137, %c0_138] : memref<32x32xf32, #tpu.memory_space<vmem>>, vector<32x32xf32>
    %cst_139 = arith.constant dense<0.000000e+00> : vector<16x32xf32>
    %601 = tpu.matmul %599, %600, %cst_139 {dimension_numbers = #tpu.dot_dimension_numbers<[1], [0], [0], [1], [0, 0, 1, 1], [], []>} : vector<16x32xf32>, vector<32x32xf32>, vector<16x32xf32> -> vector<16x32xf32>
    %602 = arith.addf %414, %601 : vector<16x32xf32>
    %c0_140 = arith.constant 0 : index
    %c0_141 = arith.constant 0 : index
    %603 = vector.load %arg20[%c0_140, %c0_141] : memref<1x32xf32, #tpu.memory_space<vmem>>, vector<1x32xf32>
    %604 = vector.broadcast %603 : vector<1x32xf32> to vector<16x32xf32>
    %605 = arith.addf %602, %604 : vector<16x32xf32>
    %c0_142 = arith.constant 0 : index
    %c0_143 = arith.constant 0 : index
    %606 = vector.load %arg21[%c0_142, %c0_143] : memref<1x32xf32, #tpu.memory_space<vmem>>, vector<1x32xf32>
    %607 = arith.mulf %605, %605 : vector<16x32xf32>
    %cst_144 = arith.constant dense<0.000000e+00> : vector<16xf32>
    %608 = vector.multi_reduction <add>, %607, %cst_144 [1] : vector<16x32xf32> to vector<16xf32>
    %609 = vector.shape_cast %608 : vector<16xf32> to vector<16x1xf32>
    %cst_145 = arith.constant 3.200000e+01 : f32
    %610 = vector.broadcast %cst_145 : f32 to vector<16x1xf32>
    %611 = arith.divf %609, %610 : vector<16x1xf32>
    %cst_146 = arith.constant 9.99999997E-7 : f32
    %612 = vector.broadcast %cst_146 : f32 to vector<16x1xf32>
    %613 = arith.addf %611, %612 : vector<16x1xf32>
    %614 = math.rsqrt %613 : vector<16x1xf32>
    %615 = vector.broadcast %614 : vector<16x1xf32> to vector<16x32xf32>
    %616 = arith.mulf %605, %615 : vector<16x32xf32>
    %617 = vector.broadcast %606 : vector<1x32xf32> to vector<16x32xf32>
    %618 = arith.mulf %616, %617 : vector<16x32xf32>
    %c0_147 = arith.constant 0 : index
    %c0_148 = arith.constant 0 : index
    %619 = vector.load %arg22[%c0_147, %c0_148] : memref<32x128xf32, #tpu.memory_space<vmem>>, vector<32x128xf32>
    %cst_149 = arith.constant dense<0.000000e+00> : vector<16x128xf32>
    %620 = tpu.matmul %618, %619, %cst_149 {dimension_numbers = #tpu.dot_dimension_numbers<[1], [0], [0], [1], [0, 0, 1, 1], [], []>} : vector<16x32xf32>, vector<32x128xf32>, vector<16x128xf32> -> vector<16x128xf32>
    %621 = vector.extract_strided_slice %620 {offsets = [0, 0], sizes = [16, 64], strides = [1, 1]} : vector<16x128xf32> to vector<16x64xf32>
    %cst_150 = arith.constant 0.000000e+00 : f32
    %622 = vector.broadcast %cst_150 : f32 to vector<16x64xf32>
    %623 = arith.subf %622, %621 : vector<16x64xf32>
    %624 = math.exp %623 : vector<16x64xf32>
    %cst_151 = arith.constant 1.000000e+00 : f32
    %625 = vector.broadcast %cst_151 : f32 to vector<16x64xf32>
    %626 = arith.addf %625, %624 : vector<16x64xf32>
    %cst_152 = arith.constant 1.000000e+00 : f32
    %627 = vector.broadcast %cst_152 : f32 to vector<16x64xf32>
    %628 = arith.divf %627, %626 : vector<16x64xf32>
    %629 = arith.mulf %621, %628 : vector<16x64xf32>
    %630 = vector.extract_strided_slice %620 {offsets = [0, 64], sizes = [16, 64], strides = [1, 1]} : vector<16x128xf32> to vector<16x64xf32>
    %631 = arith.mulf %629, %630 : vector<16x64xf32>
    %c0_153 = arith.constant 0 : index
    %c0_154 = arith.constant 0 : index
    %632 = vector.load %arg23[%c0_153, %c0_154] : memref<64x32xf32, #tpu.memory_space<vmem>>, vector<64x32xf32>
    %cst_155 = arith.constant dense<0.000000e+00> : vector<16x32xf32>
    %633 = tpu.matmul %631, %632, %cst_155 {dimension_numbers = #tpu.dot_dimension_numbers<[1], [0], [0], [1], [0, 0, 1, 1], [], []>} : vector<16x64xf32>, vector<64x32xf32>, vector<16x32xf32> -> vector<16x32xf32>
    %634 = arith.addf %605, %633 : vector<16x32xf32>
    %635 = vector.extract_strided_slice %634 {offsets = [7, 0], sizes = [1, 32], strides = [1, 1]} : vector<16x32xf32> to vector<1x32xf32>
    %636 = vector.extract_strided_slice %634 {offsets = [15, 0], sizes = [1, 32], strides = [1, 1]} : vector<16x32xf32> to vector<1x32xf32>
    %637 = tpu.concatenate %635, %636 in 0 : vector<1x32xf32>, vector<1x32xf32> -> vector<2x32xf32>
    %c0_156 = arith.constant 0 : index
    %c0_157 = arith.constant 0 : index
    %638 = vector.load %arg24[%c0_156, %c0_157] : memref<1x32xf32, #tpu.memory_space<vmem>>, vector<1x32xf32>
    %639 = arith.mulf %637, %637 : vector<2x32xf32>
    %cst_158 = arith.constant dense<0.000000e+00> : vector<2xf32>
    %640 = vector.multi_reduction <add>, %639, %cst_158 [1] : vector<2x32xf32> to vector<2xf32>
    %641 = vector.shape_cast %640 : vector<2xf32> to vector<2x1xf32>
    %cst_159 = arith.constant 3.200000e+01 : f32
    %642 = vector.broadcast %cst_159 : f32 to vector<2x1xf32>
    %643 = arith.divf %641, %642 : vector<2x1xf32>
    %cst_160 = arith.constant 9.99999997E-7 : f32
    %644 = vector.broadcast %cst_160 : f32 to vector<2x1xf32>
    %645 = arith.addf %643, %644 : vector<2x1xf32>
    %646 = math.rsqrt %645 : vector<2x1xf32>
    %647 = vector.broadcast %646 : vector<2x1xf32> to vector<2x32xf32>
    %648 = arith.mulf %637, %647 : vector<2x32xf32>
    %649 = vector.broadcast %638 : vector<1x32xf32> to vector<2x32xf32>
    %650 = arith.mulf %648, %649 : vector<2x32xf32>
    %c0_161 = arith.constant 0 : index
    %c0_162 = arith.constant 0 : index
    %651 = vector.load %arg25[%c0_161, %c0_162] : memref<32x1024xf32, #tpu.memory_space<vmem>>, vector<32x1024xf32>
    %cst_163 = arith.constant dense<0.000000e+00> : vector<2x1024xf32>
    %652 = tpu.matmul %650, %651, %cst_163 {dimension_numbers = #tpu.dot_dimension_numbers<[1], [0], [0], [1], [0, 0, 1, 1], [], []>} : vector<2x32xf32>, vector<32x1024xf32>, vector<2x1024xf32> -> vector<2x1024xf32>
    %c0_164 = arith.constant 0 : index
    %c0_165 = arith.constant 0 : index
    %653 = vector.load %arg26[%c0_164, %c0_165] : memref<1x1024xf32, #tpu.memory_space<vmem>>, vector<1x1024xf32>
    %654 = vector.broadcast %653 : vector<1x1024xf32> to vector<2x1024xf32>
    %655 = arith.addf %652, %654 : vector<2x1024xf32>
    %c0_166 = arith.constant 0 : index
    %c0_167 = arith.constant 0 : index
    %656 = vector.load %arg27[%c0_166, %c0_167] : memref<2x1024xf32, #tpu.memory_space<vmem>>, vector<2x1024xf32>
    tpu.vector_store %arg27[%c0_166, %c0_167], %655 {strides = array<i32>} : memref<2x1024xf32, #tpu.memory_space<vmem>>, vector<2x1024xf32>,
    return
  }
  func.func @transform_0(%arg0: i32) -> (i32, i32) {
    %c0_i32 = arith.constant 0 : i32
    %c0_i32_0 = arith.constant 0 : i32
    %c0_i32_1 = arith.constant 0 : i32
    return %c0_i32, %c0_i32_0 : i32, i32
  }
  func.func @transform_1(%arg0: i32) -> (i32, i32) {
    %c0_i32 = arith.constant 0 : i32
    %c0_i32_0 = arith.constant 0 : i32
    %c0_i32_1 = arith.constant 0 : i32
    return %c0_i32, %c0_i32_0 : i32, i32
  }
  func.func @transform_2(%arg0: i32) -> (i32, i32) {
    %c0_i32 = arith.constant 0 : i32
    %c0_i32_0 = arith.constant 0 : i32
    %c0_i32_1 = arith.constant 0 : i32
    return %c0_i32, %c0_i32_0 : i32, i32
  }
  func.func @transform_3(%arg0: i32) -> (i32, i32) {
    %c0_i32 = arith.constant 0 : i32
    %c0_i32_0 = arith.constant 0 : i32
    %c0_i32_1 = arith.constant 0 : i32
    return %c0_i32, %c0_i32_0 : i32, i32
  }
  func.func @transform_4(%arg0: i32) -> (i32, i32) {
    %c0_i32 = arith.constant 0 : i32
    %c0_i32_0 = arith.constant 0 : i32
    %c0_i32_1 = arith.constant 0 : i32
    return %c0_i32, %c0_i32_0 : i32, i32
  }
  func.func @transform_5(%arg0: i32) -> (i32, i32) {
    %c0_i32 = arith.constant 0 : i32
    %c0_i32_0 = arith.constant 0 : i32
    %c0_i32_1 = arith.constant 0 : i32
    return %c0_i32, %c0_i32_0 : i32, i32
  }
  func.func @transform_6(%arg0: i32) -> (i32, i32) {
    %c0_i32 = arith.constant 0 : i32
    %c0_i32_0 = arith.constant 0 : i32
    %c0_i32_1 = arith.constant 0 : i32
    return %c0_i32, %c0_i32_0 : i32, i32
  }
  func.func @transform_7(%arg0: i32) -> (i32, i32) {
    %c0_i32 = arith.constant 0 : i32
    %c0_i32_0 = arith.constant 0 : i32
    %c0_i32_1 = arith.constant 0 : i32
    return %c0_i32, %c0_i32_0 : i32, i32
  }
  func.func @transform_8(%arg0: i32) -> (i32, i32) {
    %c0_i32 = arith.constant 0 : i32
    %c0_i32_0 = arith.constant 0 : i32
    %c0_i32_1 = arith.constant 0 : i32
    return %c0_i32, %c0_i32_0 : i32, i32
  }
  func.func @transform_9(%arg0: i32) -> (i32, i32) {
    %c0_i32 = arith.constant 0 : i32
    %c0_i32_0 = arith.constant 0 : i32
    %c0_i32_1 = arith.constant 0 : i32
    return %c0_i32, %c0_i32_0 : i32, i32
  }
  func.func @transform_10(%arg0: i32) -> (i32, i32) {
    %c0_i32 = arith.constant 0 : i32
    %c0_i32_0 = arith.constant 0 : i32
    %c0_i32_1 = arith.constant 0 : i32
    return %c0_i32, %c0_i32_0 : i32, i32
  }
  func.func @transform_11(%arg0: i32) -> (i32, i32) {
    %c0_i32 = arith.constant 0 : i32
    %c0_i32_0 = arith.constant 0 : i32
    %c0_i32_1 = arith.constant 0 : i32
    return %c0_i32, %c0_i32_0 : i32, i32
  }
  func.func @transform_12(%arg0: i32) -> (i32, i32) {
    %c0_i32 = arith.constant 0 : i32
    %c0_i32_0 = arith.constant 0 : i32
    %c0_i32_1 = arith.constant 0 : i32
    return %c0_i32, %c0_i32_0 : i32, i32
  }
  func.func @transform_13(%arg0: i32) -> (i32, i32) {
    %c0_i32 = arith.constant 0 : i32
    %c0_i32_0 = arith.constant 0 : i32
    %c0_i32_1 = arith.constant 0 : i32
    return %c0_i32, %c0_i32_0 : i32, i32
  }
  func.func @transform_14(%arg0: i32) -> (i32, i32) {
    %c0_i32 = arith.constant 0 : i32
    %c0_i32_0 = arith.constant 0 : i32
    %c0_i32_1 = arith.constant 0 : i32
    return %c0_i32, %c0_i32_0 : i32, i32
  }
  func.func @transform_15(%arg0: i32) -> (i32, i32) {
    %c0_i32 = arith.constant 0 : i32
    %c0_i32_0 = arith.constant 0 : i32
    %c0_i32_1 = arith.constant 0 : i32
    return %c0_i32, %c0_i32_0 : i32, i32
  }
  func.func @transform_16(%arg0: i32) -> (i32, i32) {
    %c0_i32 = arith.constant 0 : i32
    %c0_i32_0 = arith.constant 0 : i32
    %c0_i32_1 = arith.constant 0 : i32
    return %c0_i32, %c0_i32_0 : i32, i32
  }
  func.func @transform_17(%arg0: i32) -> (i32, i32) {
    %c0_i32 = arith.constant 0 : i32
    %c0_i32_0 = arith.constant 0 : i32
    %c0_i32_1 = arith.constant 0 : i32
    return %c0_i32, %c0_i32_0 : i32, i32
  }
  func.func @transform_18(%arg0: i32) -> (i32, i32) {
    %c0_i32 = arith.constant 0 : i32
    %c0_i32_0 = arith.constant 0 : i32
    %c0_i32_1 = arith.constant 0 : i32
    return %c0_i32, %c0_i32_0 : i32, i32
  }
  func.func @transform_19(%arg0: i32) -> (i32, i32) {
    %c0_i32 = arith.constant 0 : i32
    %c0_i32_0 = arith.constant 0 : i32
    %c0_i32_1 = arith.constant 0 : i32
    return %c0_i32, %c0_i32_0 : i32, i32
  }
  func.func @transform_20(%arg0: i32) -> (i32, i32) {
    %c0_i32 = arith.constant 0 : i32
    %c0_i32_0 = arith.constant 0 : i32
    %c0_i32_1 = arith.constant 0 : i32
    return %c0_i32, %c0_i32_0 : i32, i32
  }
  func.func @transform_21(%arg0: i32) -> (i32, i32) {
    %c0_i32 = arith.constant 0 : i32
    %c0_i32_0 = arith.constant 0 : i32
    %c0_i32_1 = arith.constant 0 : i32
    return %c0_i32, %c0_i32_0 : i32, i32
  }
  func.func @transform_22(%arg0: i32) -> (i32, i32) {
    %c0_i32 = arith.constant 0 : i32
    %c0_i32_0 = arith.constant 0 : i32
    %c0_i32_1 = arith.constant 0 : i32
    return %c0_i32, %c0_i32_0 : i32, i32
  }
  func.func @transform_23(%arg0: i32) -> (i32, i32) {
    %c0_i32 = arith.constant 0 : i32
    %c0_i32_0 = arith.constant 0 : i32
    %c0_i32_1 = arith.constant 0 : i32
    return %c0_i32, %c0_i32_0 : i32, i32
  }
  func.func @transform_24(%arg0: i32) -> (i32, i32) {
    %c0_i32 = arith.constant 0 : i32
    %c0_i32_0 = arith.constant 0 : i32
    %c0_i32_1 = arith.constant 0 : i32
    return %c0_i32, %c0_i32_0 : i32, i32
  }
  func.func @transform_25(%arg0: i32) -> (i32, i32) {
    %c0_i32 = arith.constant 0 : i32
    %c0_i32_0 = arith.constant 0 : i32
    %c0_i32_1 = arith.constant 0 : i32
    return %c0_i32, %c0_i32_0 : i32, i32
  }
  func.func @transform_26(%arg0: i32) -> (i32, i32) {
    %c0_i32 = arith.constant 0 : i32
    %c0_i32_0 = arith.constant 0 : i32
    %c0_i32_1 = arith.constant 0 : i32
    return %c0_i32, %c0_i32_0 : i32, i32
  }
}

</mosaic_0001>

<llo_original>
// kernel: jamba_actor_critic_forward.1
$region0: #{jamba_actor_critic_forward.1}
  #allocation0 [shape = 'u32[]', space=smem, size = 0x4, offset = 0x4, fixed_abs, tag = 'smem constant byte address 0x4 - core index']
  #allocation1 [shape = 'u32[144,128]{1,0:T(1,128)}', space=vmem, size = 0x12000, scoped, tag = 'internal scratch']
  %s0 = inlined_call_operand.vmem [shape: f32[16,32], index: 0, kind: input, shape index: {}]
  %s1 = inlined_call_operand.vmem [shape: f32[1,32], index: 1, kind: input, shape index: {}]
  %s2 = inlined_call_operand.vmem [shape: f32[32,128], index: 2, kind: input, shape index: {}]
  %s3 = inlined_call_operand.vmem [shape: f32[1,128], index: 3, kind: input, shape index: {}]
  %s4 = inlined_call_operand.hbm [shape: f32[4,64], index: 4, kind: input, shape index: {}]
  %s5 = inlined_call_operand.hbm [shape: f32[1,64], index: 5, kind: input, shape index: {}]
  %s6 = inlined_call_operand.vmem [shape: f32[64,80], index: 6, kind: input, shape index: {}]
  %s7 = inlined_call_operand.hbm [shape: f32[1,80], index: 7, kind: input, shape index: {}]
  %s8 = inlined_call_operand.vmem [shape: f32[8,64], index: 8, kind: input, shape index: {}]
  %s9 = inlined_call_operand.hbm [shape: f32[1,64], index: 9, kind: input, shape index: {}]
  %s10 = inlined_call_operand.vmem [shape: f32[64,32], index: 10, kind: input, shape index: {}]
  %s11 = inlined_call_operand.hbm [shape: f32[1,32], index: 11, kind: input, shape index: {}]
  %s12 = inlined_call_operand.hbm [shape: f32[1,32], index: 12, kind: input, shape index: {}]
  %s13 = inlined_call_operand.hbm [shape: f32[32,128], index: 13, kind: input, shape index: {}]
  %s14 = inlined_call_operand.vmem [shape: f32[64,32], index: 14, kind: input, shape index: {}]
  %s15 = inlined_call_operand.hbm [shape: f32[1,32], index: 15, kind: input, shape index: {}]
  %s16 = inlined_call_operand.hbm [shape: f32[32,96], index: 16, kind: input, shape index: {}]
  %s17 = inlined_call_operand.hbm [shape: f32[1,96], index: 17, kind: input, shape index: {}]
  %s18 = inlined_call_operand.hbm [shape: f32[32,32], index: 18, kind: input, shape index: {}]
  %s19 = inlined_call_operand.hbm [shape: f32[1,32], index: 19, kind: input, shape index: {}]
  %s20 = inlined_call_operand.hbm [shape: f32[1,32], index: 20, kind: input, shape index: {}]
  %s21 = inlined_call_operand.hbm [shape: f32[32,128], index: 21, kind: input, shape index: {}]
  %s22 = inlined_call_operand.vmem [shape: f32[64,32], index: 22, kind: input, shape index: {}]
  %s23 = inlined_call_operand.hbm [shape: f32[1,32], index: 23, kind: input, shape index: {}]
  %s24 = inlined_call_operand.vmem [shape: f32[32,1024], index: 24, kind: input, shape index: {}]
  %s25 = inlined_call_operand.hbm [shape: f32[1,1024], index: 25, kind: input, shape index: {}]
  %s26 = inlined_call_operand.vmem [shape: f32[2,1024], index: 26, kind: output, shape index: {}]
  %s27 = sld [smem:[#allocation0]]
  $region178: #{jamba_actor_critic_forward.1} parent=0
    _
  %s29 = ssub.s32 1, %s27
  %s30 = scalar_select 0, %s29, %s27
  $region1: #{jamba_actor_critic_forward.1} parent=0
    #allocation2 [shape = 'u8[2048]{0}', space=vmem, size = 0x800, scoped, tag = 'input window, operand 4, single buffered']
    #allocation3 [shape = 's32[1]{0}', space=sflag, size = 0x4, scoped, tag = 'scoped memory for jamba_actor_critic_forward.1']
    #allocation4 [shape = 'u8[512]{0}', space=vmem, size = 0x400, scoped, tag = 'input window, operand 5, single buffered']
    #allocation5 [shape = 's32[1]{0}', space=sflag, size = 0x4, scoped, tag = 'scoped memory for jamba_actor_critic_forward.1']
    #allocation6 [shape = 'u8[512]{0}', space=vmem, size = 0x400, scoped, tag = 'input window, operand 7, single buffered']
    #allocation7 [shape = 'u8[512]{0}', space=vmem, size = 0x400, scoped, tag = 'input window, operand 9, single buffered']
    #allocation8 [shape = 's32[1]{0}', space=sflag, size = 0x4, scoped, tag = 'scoped memory for jamba_actor_critic_forward.1']
    #allocation9 [shape = 'u8[512]{0}', space=vmem, size = 0x400, scoped, tag = 'input window, operand 11, single buffered']
    #allocation10 [shape = 'u8[512]{0}', space=vmem, size = 0x400, scoped, tag = 'input window, operand 12, single buffered']
    #allocation11 [shape = 's32[1]{0}', space=sflag, size = 0x4, scoped, tag = 'scoped memory for jamba_actor_critic_forward.1']
    #allocation12 [shape = 'u8[16384]{0}', space=vmem, size = 0x4000, scoped, tag = 'input window, operand 13, single buffered']
    #allocation13 [shape = 'u8[512]{0}', space=vmem, size = 0x400, scoped, tag = 'input window, operand 15, single buffered']
    #allocation14 [shape = 's32[1]{0}', space=sflag, size = 0x4, scoped, tag = 'scoped memory for jamba_actor_critic_forward.1']
    #allocation15 [shape = 'u8[16384]{0}', space=vmem, size = 0x4000, scoped, tag = 'input window, operand 16, single buffered']
    #allocation16 [shape = 'u8[512]{0}', space=vmem, size = 0x400, scoped, tag = 'input window, operand 17, single buffered']
    #allocation17 [shape = 's32[1]{0}', space=sflag, size = 0x4, scoped, tag = 'scoped memory for jamba_actor_critic_forward.1']
    #allocation18 [shape = 'u8[16384]{0}', space=vmem, size = 0x4000, scoped, tag = 'input window, operand 18, single buffered']
    #allocation19 [shape = 'u8[512]{0}', space=vmem, size = 0x400, scoped, tag = 'input window, operand 19, single buffered']
    #allocation20 [shape = 's32[1]{0}', space=sflag, size = 0x4, scoped, tag = 'scoped memory for jamba_actor_critic_forward.1']
    #allocation21 [shape = 'u8[512]{0}', space=vmem, size = 0x400, scoped, tag = 'input window, operand 20, single buffered']
    #allocation22 [shape = 'u8[16384]{0}', space=vmem, size = 0x4000, scoped, tag = 'input window, operand 21, single buffered']
    #allocation23 [shape = 's32[1]{0}', space=sflag, size = 0x4, scoped, tag = 'scoped memory for jamba_actor_critic_forward.1']
    #allocation24 [shape = 'u8[512]{0}', space=vmem, size = 0x400, scoped, tag = 'input window, operand 23, single buffered']
    #allocation25 [shape = 'u8[4096]{0}', space=vmem, size = 0x1000, scoped, tag = 'input window, operand 25, single buffered']
    #allocation26 [shape = 's32[1]{0}', space=sflag, size = 0x4, scoped, tag = 'scoped memory for jamba_actor_critic_forward.1']
    %31 = vsyncpa [#allocation3], 0
    %32 = vsyncpa [#allocation5], 0
    %33 = vsyncpa [#allocation8], 0
    %34 = vsyncpa [#allocation11], 0
    %35 = vsyncpa [#allocation14], 0
    %36 = vsyncpa [#allocation17], 0
    %37 = vsyncpa [#allocation20], 0
    %38 = vsyncpa [#allocation23], 0
    %39 = vsyncpa [#allocation26], 0
    // Predicated region
    $region2: #{jamba_actor_critic_forward.1} parent=1 // pred_check
      _
    $region3: #{jamba_actor_critic_forward.1} parent=1 // pred_check_branch
      %41 = sbr.rel (0) target = $region5
    $region4: #{jamba_actor_critic_forward.1} parent=1 // pred_region
      _
    $region5: #{jamba_actor_critic_forward.1} parent=1 // pred_fallthru
      _
    // Predicated region
    $region6: #{jamba_actor_critic_forward.1} parent=1 // pred_check
      _
    $region7: #{jamba_actor_critic_forward.1} parent=1 // pred_check_branch
      %43 = sbr.rel (0) target = $region9
    $region8: #{jamba_actor_critic_forward.1} parent=1 // pred_region
      _
    $region9: #{jamba_actor_critic_forward.1} parent=1 // pred_fallthru
      _
    // Predicated region
    $region10: #{jamba_actor_critic_forward.1} parent=1 // pred_check
      _
    $region11: #{jamba_actor_critic_forward.1} parent=1 // pred_check_branch
      %45 = sbr.rel (0) target = $region13
    $region12: #{jamba_actor_critic_forward.1} parent=1 // pred_region
      _
    $region13: #{jamba_actor_critic_forward.1} parent=1 // pred_fallthru
      _
    // Predicated region
    $region14: #{jamba_actor_critic_forward.1} parent=1 // pred_check
      _
    $region15: #{jamba_actor_critic_forward.1} parent=1 // pred_check_branch
      %47 = sbr.rel (0) target = $region17
    $region16: #{jamba_actor_critic_forward.1} parent=1 // pred_region
      _
    $region17: #{jamba_actor_critic_forward.1} parent=1 // pred_fallthru
      _
    // Predicated region
    $region18: #{jamba_actor_critic_forward.1} parent=1 // pred_check
      _
    $region19: #{jamba_actor_critic_forward.1} parent=1 // pred_check_branch
      %49 = sbr.rel (0) target = $region21
    $region20: #{jamba_actor_critic_forward.1} parent=1 // pred_region
      %s51 = ssub.s32 64, 64
      %52 = vsyncadd [#allocation3], %s51
      %s54 = sshll.u32 [#allocation2], 4
      %s55 = int_to_ptr.vmem [resolvable:$true] %s54
      %57 = dma.hbm_to_vmem [thread:$0]  %s4, 64, %s55, [#allocation3]
    $region21: #{jamba_actor_critic_forward.1} parent=1 // pred_fallthru
      _
    // Predicated region
    $region22: #{jamba_actor_critic_forward.1} parent=1 // pred_check
      _
    $region23: #{jamba_actor_critic_forward.1} parent=1 // pred_check_branch
      %59 = sbr.rel (0) target = $region25
    $region24: #{jamba_actor_critic_forward.1} parent=1 // pred_region
      %s61 = ssub.s32 16, 16
      %62 = vsyncadd [#allocation5], %s61
      %s64 = sshll.u32 [#allocation4], 4
      %s65 = int_to_ptr.vmem [resolvable:$true] %s64
      %67 = dma.hbm_to_vmem [thread:$0]  %s5, 16, %s65, [#allocation5]
    $region25: #{jamba_actor_critic_forward.1} parent=1 // pred_fallthru
      _
    // Predicated region
    $region26: #{jamba_actor_critic_forward.1} parent=1 // pred_check
      _
    $region27: #{jamba_actor_critic_forward.1} parent=1 // pred_check_branch
      %69 = sbr.rel (0) target = $region29
    $region28: #{jamba_actor_critic_forward.1} parent=1 // pred_region
      _
    $region29: #{jamba_actor_critic_forward.1} parent=1 // pred_fallthru
      _
    // Predicated region
    $region30: #{jamba_actor_critic_forward.1} parent=1 // pred_check
      _
    $region31: #{jamba_actor_critic_forward.1} parent=1 // pred_check_branch
      %71 = sbr.rel (0) target = $region33
    $region32: #{jamba_actor_critic_forward.1} parent=1 // pred_region
      %s73 = ssub.s32 16, 16
      %74 = vsyncadd [#allocation5], %s73
      %s76 = sshll.u32 [#allocation6], 4
      %s77 = int_to_ptr.vmem [resolvable:$true] %s76
      %79 = dma.hbm_to_vmem [thread:$0]  %s7, 16, %s77, [#allocation5]
    $region33: #{jamba_actor_critic_forward.1} parent=1 // pred_fallthru
      _
    // Predicated region
    $region34: #{jamba_actor_critic_forward.1} parent=1 // pred_check
      _
    $region35: #{jamba_actor_critic_forward.1} parent=1 // pred_check_branch
      %81 = sbr.rel (0) target = $region37
    $region36: #{jamba_actor_critic_forward.1} parent=1 // pred_region
      _
    $region37: #{jamba_actor_critic_forward.1} parent=1 // pred_fallthru
      _
    // Predicated region
    $region38: #{jamba_actor_critic_forward.1} parent=1 // pred_check
      _
    $region39: #{jamba_actor_critic_forward.1} parent=1 // pred_check_branch
      %83 = sbr.rel (0) target = $region41
    $region40: #{jamba_actor_critic_forward.1} parent=1 // pred_region
      %s85 = ssub.s32 16, 16
      %86 = vsyncadd [#allocation8], %s85
      %s88 = sshll.u32 [#allocation7], 4
      %s89 = int_to_ptr.vmem [resolvable:$true] %s88
      %91 = dma.hbm_to_vmem [thread:$0]  %s9, 16, %s89, [#allocation8]
    $region41: #{jamba_actor_critic_forward.1} parent=1 // pred_fallthru
      _
    // Predicated region
    $region42: #{jamba_actor_critic_forward.1} parent=1 // pred_check
      _
    $region43: #{jamba_actor_critic_forward.1} parent=1 // pred_check_branch
      %93 = sbr.rel (0) target = $region45
    $region44: #{jamba_actor_critic_forward.1} parent=1 // pred_region
      _
    $region45: #{jamba_actor_critic_forward.1} parent=1 // pred_fallthru
      _
    // Predicated region
    $region46: #{jamba_actor_critic_forward.1} parent=1 // pred_check
      _
    $region47: #{jamba_actor_critic_forward.1} parent=1 // pred_check_branch
      %95 = sbr.rel (0) target = $region49
    $region48: #{jamba_actor_critic_forward.1} parent=1 // pred_region
      %s97 = ssub.s32 16, 16
      %98 = vsyncadd [#allocation8], %s97
      %s100 = sshll.u32 [#allocation9], 4
      %s101 = int_to_ptr.vmem [resolvable:$true] %s100
      %103 = dma.hbm_to_vmem [thread:$0]  %s11, 16, %s101, [#allocation8]
    $region49: #{jamba_actor_critic_forward.1} parent=1 // pred_fallthru
      _
    // Predicated region
    $region50: #{jamba_actor_critic_forward.1} parent=1 // pred_check
      _
    $region51: #{jamba_actor_critic_forward.1} parent=1 // pred_check_branch
      %105 = sbr.rel (0) target = $region53
    $region52: #{jamba_actor_critic_forward.1} parent=1 // pred_region
      %s107 = ssub.s32 16, 16
      %108 = vsyncadd [#allocation11], %s107
      %s110 = sshll.u32 [#allocation10], 4
      %s111 = int_to_ptr.vmem [resolvable:$true] %s110
      %113 = dma.hbm_to_vmem [thread:$0]  %s12, 16, %s111, [#allocation11]
    $region53: #{jamba_actor_critic_forward.1} parent=1 // pred_fallthru
      _
    // Predicated region
    $region54: #{jamba_actor_critic_forward.1} parent=1 // pred_check
      _
    $region55: #{jamba_actor_critic_forward.1} parent=1 // pred_check_branch
      %115 = sbr.rel (0) target = $region57
    $region56: #{jamba_actor_critic_forward.1} parent=1 // pred_region
      %s117 = ssub.s32 512, 512
      %118 = vsyncadd [#allocation11], %s117
      %s119 = sshll.u32 [#allocation12], 4
      %s120 = int_to_ptr.vmem [resolvable:$true] %s119
      %125 = dma.hbm_to_vmem [thread:$0]  %s13, 512, %s120, [#allocation11], 128, 128, 8
    $region57: #{jamba_actor_critic_forward.1} parent=1 // pred_fallthru
      _
    // Predicated region
    $region58: #{jamba_actor_critic_forward.1} parent=1 // pred_check
      _
    $region59: #{jamba_actor_critic_forward.1} parent=1 // pred_check_branch
      %127 = sbr.rel (0) target = $region61
    $region60: #{jamba_actor_critic_forward.1} parent=1 // pred_region
      _
    $region61: #{jamba_actor_critic_forward.1} parent=1 // pred_fallthru
      _
    // Predicated region
    $region62: #{jamba_actor_critic_forward.1} parent=1 // pred_check
      _
    $region63: #{jamba_actor_critic_forward.1} parent=1 // pred_check_branch
      %129 = sbr.rel (0) target = $region65
    $region64: #{jamba_actor_critic_forward.1} parent=1 // pred_region
      %s131 = ssub.s32 16, 16
      %132 = vsyncadd [#allocation14], %s131
      %s134 = sshll.u32 [#allocation13], 4
      %s135 = int_to_ptr.vmem [resolvable:$true] %s134
      %137 = dma.hbm_to_vmem [thread:$0]  %s15, 16, %s135, [#allocation14]
    $region65: #{jamba_actor_critic_forward.1} parent=1 // pred_fallthru
      _
    // Predicated region
    $region66: #{jamba_actor_critic_forward.1} parent=1 // pred_check
      _
    $region67: #{jamba_actor_critic_forward.1} parent=1 // pred_check_branch
      %139 = sbr.rel (0) target = $region69
    $region68: #{jamba_actor_critic_forward.1} parent=1 // pred_region
      %s141 = ssub.s32 512, 512
      %142 = vsyncadd [#allocation14], %s141
      %s143 = sshll.u32 [#allocation15], 4
      %s144 = int_to_ptr.vmem [resolvable:$true] %s143
      %149 = dma.hbm_to_vmem [thread:$0]  %s16, 512, %s144, [#allocation14], 128, 128, 8
    $region69: #{jamba_actor_critic_forward.1} parent=1 // pred_fallthru
      _
    // Predicated region
    $region70: #{jamba_actor_critic_forward.1} parent=1 // pred_check
      _
    $region71: #{jamba_actor_critic_forward.1} parent=1 // pred_check_branch
      %151 = sbr.rel (0) target = $region73
    $region72: #{jamba_actor_critic_forward.1} parent=1 // pred_region
      %s153 = ssub.s32 16, 16
      %154 = vsyncadd [#allocation17], %s153
      %s156 = sshll.u32 [#allocation16], 4
      %s157 = int_to_ptr.vmem [resolvable:$true] %s156
      %159 = dma.hbm_to_vmem [thread:$0]  %s17, 16, %s157, [#allocation17]
    $region73: #{jamba_actor_critic_forward.1} parent=1 // pred_fallthru
      _
    // Predicated region
    $region74: #{jamba_actor_critic_forward.1} parent=1 // pred_check
      _
    $region75: #{jamba_actor_critic_forward.1} parent=1 // pred_check_branch
      %161 = sbr.rel (0) target = $region77
    $region76: #{jamba_actor_critic_forward.1} parent=1 // pred_region
      %s163 = ssub.s32 512, 512
      %164 = vsyncadd [#allocation17], %s163
      %s165 = sshll.u32 [#allocation18], 4
      %s166 = int_to_ptr.vmem [resolvable:$true] %s165
      %171 = dma.hbm_to_vmem [thread:$0]  %s18, 512, %s166, [#allocation17], 128, 128, 8
    $region77: #{jamba_actor_critic_forward.1} parent=1 // pred_fallthru
      _
    // Predicated region
    $region78: #{jamba_actor_critic_forward.1} parent=1 // pred_check
      _
    $region79: #{jamba_actor_critic_forward.1} parent=1 // pred_check_branch
      %173 = sbr.rel (0) target = $region81
    $region80: #{jamba_actor_critic_forward.1} parent=1 // pred_region
      %s175 = ssub.s32 16, 16
      %176 = vsyncadd [#allocation20], %s175
      %s178 = sshll.u32 [#allocation19], 4
      %s179 = int_to_ptr.vmem [resolvable:$true] %s178
      %181 = dma.hbm_to_vmem [thread:$0]  %s19, 16, %s179, [#allocation20]
    $region81: #{jamba_actor_critic_forward.1} parent=1 // pred_fallthru
      _
    // Predicated region
    $region82: #{jamba_actor_critic_forward.1} parent=1 // pred_check
      _
    $region83: #{jamba_actor_critic_forward.1} parent=1 // pred_check_branch
      %183 = sbr.rel (0) target = $region85
    $region84: #{jamba_actor_critic_forward.1} parent=1 // pred_region
      %s185 = ssub.s32 16, 16
      %186 = vsyncadd [#allocation20], %s185
      %s188 = sshll.u32 [#allocation21], 4
      %s189 = int_to_ptr.vmem [resolvable:$true] %s188
      %191 = dma.hbm_to_vmem [thread:$0]  %s20, 16, %s189, [#allocation20]
    $region85: #{jamba_actor_critic_forward.1} parent=1 // pred_fallthru
      _
    // Predicated region
    $region86: #{jamba_actor_critic_forward.1} parent=1 // pred_check
      _
    $region87: #{jamba_actor_critic_forward.1} parent=1 // pred_check_branch
      %193 = sbr.rel (0) target = $region89
    $region88: #{jamba_actor_critic_forward.1} parent=1 // pred_region
      %s195 = ssub.s32 512, 512
      %196 = vsyncadd [#allocation23], %s195
      %s197 = sshll.u32 [#allocation22], 4
      %s198 = int_to_ptr.vmem [resolvable:$true] %s197
      %203 = dma.hbm_to_vmem [thread:$0]  %s21, 512, %s198, [#allocation23], 128, 128, 8
    $region89: #{jamba_actor_critic_forward.1} parent=1 // pred_fallthru
      _
    // Predicated region
    $region90: #{jamba_actor_critic_forward.1} parent=1 // pred_check
      _
    $region91: #{jamba_actor_critic_forward.1} parent=1 // pred_check_branch
      %205 = sbr.rel (0) target = $region93
    $region92: #{jamba_actor_critic_forward.1} parent=1 // pred_region
      _
    $region93: #{jamba_actor_critic_forward.1} parent=1 // pred_fallthru
      _
    // Predicated region
    $region94: #{jamba_actor_critic_forward.1} parent=1 // pred_check
      _
    $region95: #{jamba_actor_critic_forward.1} parent=1 // pred_check_branch
      %207 = sbr.rel (0) target = $region97
    $region96: #{jamba_actor_critic_forward.1} parent=1 // pred_region
      %s209 = ssub.s32 16, 16
      %210 = vsyncadd [#allocation23], %s209
      %s212 = sshll.u32 [#allocation24], 4
      %s213 = int_to_ptr.vmem [resolvable:$true] %s212
      %215 = dma.hbm_to_vmem [thread:$0]  %s23, 16, %s213, [#allocation23]
    $region97: #{jamba_actor_critic_forward.1} parent=1 // pred_fallthru
      _
    // Predicated region
    $region98: #{jamba_actor_critic_forward.1} parent=1 // pred_check
      _
    $region99: #{jamba_actor_critic_forward.1} parent=1 // pred_check_branch
      %217 = sbr.rel (0) target = $region101
    $region100: #{jamba_actor_critic_forward.1} parent=1 // pred_region
      _
    $region101: #{jamba_actor_critic_forward.1} parent=1 // pred_fallthru
      _
    // Predicated region
    $region102: #{jamba_actor_critic_forward.1} parent=1 // pred_check
      _
    $region103: #{jamba_actor_critic_forward.1} parent=1 // pred_check_branch
      %219 = sbr.rel (0) target = $region105
    $region104: #{jamba_actor_critic_forward.1} parent=1 // pred_region
      %s221 = ssub.s32 128, 128
      %222 = vsyncadd [#allocation26], %s221
      %s224 = sshll.u32 [#allocation25], 4
      %s225 = int_to_ptr.vmem [resolvable:$true] %s224
      %227 = dma.hbm_to_vmem [thread:$0]  %s25, 128, %s225, [#allocation26]
    $region105: #{jamba_actor_critic_forward.1} parent=1 // pred_fallthru
      _
    // Predicated region
    $region106: #{jamba_actor_critic_forward.1} parent=1 // pred_check
      _
    $region107: #{jamba_actor_critic_forward.1} parent=1 // pred_check_branch
      %229 = sbr.rel (0) target = $region109
    $region108: #{jamba_actor_critic_forward.1} parent=1 // pred_region
      %230 = dma.done [#allocation3], 64
    $region109: #{jamba_actor_critic_forward.1} parent=1 // pred_fallthru
      _
    // Predicated region
    $region110: #{jamba_actor_critic_forward.1} parent=1 // pred_check
      _
    $region111: #{jamba_actor_critic_forward.1} parent=1 // pred_check_branch
      %232 = sbr.rel (0) target = $region113
    $region112: #{jamba_actor_critic_forward.1} parent=1 // pred_region
      %233 = dma.done [#allocation5], 16
    $region113: #{jamba_actor_critic_forward.1} parent=1 // pred_fallthru
      _
    // Predicated region
    $region114: #{jamba_actor_critic_forward.1} parent=1 // pred_check
      _
    $region115: #{jamba_actor_critic_forward.1} parent=1 // pred_check_branch
      %235 = sbr.rel (0) target = $region117
    $region116: #{jamba_actor_critic_forward.1} parent=1 // pred_region
      %236 = dma.done [#allocation5], 16
    $region117: #{jamba_actor_critic_forward.1} parent=1 // pred_fallthru
      _
    // Predicated region
    $region118: #{jamba_actor_critic_forward.1} parent=1 // pred_check
      _
    $region119: #{jamba_actor_critic_forward.1} parent=1 // pred_check_branch
      %238 = sbr.rel (0) target = $region121
    $region120: #{jamba_actor_critic_forward.1} parent=1 // pred_region
      %239 = dma.done [#allocation8], 16
    $region121: #{jamba_actor_critic_forward.1} parent=1 // pred_fallthru
      _
    // Predicated region
    $region122: #{jamba_actor_critic_forward.1} parent=1 // pred_check
      _
    $region123: #{jamba_actor_critic_forward.1} parent=1 // pred_check_branch
      %241 = sbr.rel (0) target = $region125
    $region124: #{jamba_actor_critic_forward.1} parent=1 // pred_region
      %242 = dma.done [#allocation8], 16
    $region125: #{jamba_actor_critic_forward.1} parent=1 // pred_fallthru
      _
    // Predicated region
    $region126: #{jamba_actor_critic_forward.1} parent=1 // pred_check
      _
    $region127: #{jamba_actor_critic_forward.1} parent=1 // pred_check_branch
      %244 = sbr.rel (0) target = $region129
    $region128: #{jamba_actor_critic_forward.1} parent=1 // pred_region
      %245 = dma.done [#allocation11], 16
    $region129: #{jamba_actor_critic_forward.1} parent=1 // pred_fallthru
      _
    // Predicated region
    $region130: #{jamba_actor_critic_forward.1} parent=1 // pred_check
      _
    $region131: #{jamba_actor_critic_forward.1} parent=1 // pred_check_branch
      %247 = sbr.rel (0) target = $region133
    $region132: #{jamba_actor_critic_forward.1} parent=1 // pred_region
      %248 = dma.done [#allocation11], 512
    $region133: #{jamba_actor_critic_forward.1} parent=1 // pred_fallthru
      _
    // Predicated region
    $region134: #{jamba_actor_critic_forward.1} parent=1 // pred_check
      _
    $region135: #{jamba_actor_critic_forward.1} parent=1 // pred_check_branch
      %250 = sbr.rel (0) target = $region137
    $region136: #{jamba_actor_critic_forward.1} parent=1 // pred_region
      %251 = dma.done [#allocation14], 16
    $region137: #{jamba_actor_critic_forward.1} parent=1 // pred_fallthru
      _
    // Predicated region
    $region138: #{jamba_actor_critic_forward.1} parent=1 // pred_check
      _
    $region139: #{jamba_actor_critic_forward.1} parent=1 // pred_check_branch
      %253 = sbr.rel (0) target = $region141
    $region140: #{jamba_actor_critic_forward.1} parent=1 // pred_region
      %254 = dma.done [#allocation14], 512
    $region141: #{jamba_actor_critic_forward.1} parent=1 // pred_fallthru
      _
    // Predicated region
    $region142: #{jamba_actor_critic_forward.1} parent=1 // pred_check
      _
    $region143: #{jamba_actor_critic_forward.1} parent=1 // pred_check_branch
      %256 = sbr.rel (0) target = $region145
    $region144: #{jamba_actor_critic_forward.1} parent=1 // pred_region
      %257 = dma.done [#allocation17], 16
    $region145: #{jamba_actor_critic_forward.1} parent=1 // pred_fallthru
      _
    // Predicated region
    $region146: #{jamba_actor_critic_forward.1} parent=1 // pred_check
      _
    $region147: #{jamba_actor_critic_forward.1} parent=1 // pred_check_branch
      %259 = sbr.rel (0) target = $region149
    $region148: #{jamba_actor_critic_forward.1} parent=1 // pred_region
      %260 = dma.done [#allocation17], 512
    $region149: #{jamba_actor_critic_forward.1} parent=1 // pred_fallthru
      _
    // Predicated region
    $region150: #{jamba_actor_critic_forward.1} parent=1 // pred_check
      _
    $region151: #{jamba_actor_critic_forward.1} parent=1 // pred_check_branch
      %262 = sbr.rel (0) target = $region153
    $region152: #{jamba_actor_critic_forward.1} parent=1 // pred_region
      %263 = dma.done [#allocation20], 16
    $region153: #{jamba_actor_critic_forward.1} parent=1 // pred_fallthru
      _
    // Predicated region
    $region154: #{jamba_actor_critic_forward.1} parent=1 // pred_check
      _
    $region155: #{jamba_actor_critic_forward.1} parent=1 // pred_check_branch
      %265 = sbr.rel (0) target = $region157
    $region156: #{jamba_actor_critic_forward.1} parent=1 // pred_region
      %266 = dma.done [#allocation20], 16
    $region157: #{jamba_actor_critic_forward.1} parent=1 // pred_fallthru
      _
    // Predicated region
    $region158: #{jamba_actor_critic_forward.1} parent=1 // pred_check
      _
    $region159: #{jamba_actor_critic_forward.1} parent=1 // pred_check_branch
      %268 = sbr.rel (0) target = $region161
    $region160: #{jamba_actor_critic_forward.1} parent=1 // pred_region
      %269 = dma.done [#allocation23], 512
    $region161: #{jamba_actor_critic_forward.1} parent=1 // pred_fallthru
      _
    // Predicated region
    $region162: #{jamba_actor_critic_forward.1} parent=1 // pred_check
      _
    $region163: #{jamba_actor_critic_forward.1} parent=1 // pred_check_branch
      %271 = sbr.rel (0) target = $region165
    $region164: #{jamba_actor_critic_forward.1} parent=1 // pred_region
      %272 = dma.done [#allocation23], 16
    $region165: #{jamba_actor_critic_forward.1} parent=1 // pred_fallthru
      _
    // Predicated region
    $region166: #{jamba_actor_critic_forward.1} parent=1 // pred_check
      _
    $region167: #{jamba_actor_critic_forward.1} parent=1 // pred_check_branch
      %274 = sbr.rel (0) target = $region169
    $region168: #{jamba_actor_critic_forward.1} parent=1 // pred_region
      %275 = dma.done [#allocation26], 128
    $region169: #{jamba_actor_critic_forward.1} parent=1 // pred_fallthru
      _
    %v276 = vld [vmem:[%s0] sm:$0xff]
    %v277 = vld [vmem:[%s0 + $0x8] sm:$0xff]
    %v278 = vld [vmem:[%s1] sm:$0x1]
    %v279 = vmul.f32 %v276, %v276
    %v280 = vmul.f32 %v277, %v277
    %vm281 = vcmask 261120
    %v282 = vsel %vm281, %v279, 0.0
    %283 = vadd.xlane.f32.xlu0 %v282
    %v284 = vpop.xlane.xlu0 %283
    %v285 = vsel %vm281, %v280, 0.0
    %286 = vadd.xlane.f32.xlu0 %v285
    %v287 = vpop.xlane.xlu0 %286
    %v288 = vrcp.pop 32.0
    %v289 = vmul.f32 %v284, %v288
    %v290 = vmul.f32 %v287, %v288
    %v291 = vadd.f32 %v289, 1e-06
    %v292 = vadd.f32 %v290, 1e-06
    %v293 = vrsqrt.pop %v291
    %v294 = vrsqrt.pop %v292
    %v295 = vmul.f32 %v276, %v293
    %v296 = vmul.f32 %v277, %v294
    %v298 = vlaneseq
    %v299 = vshrl.u32 %v298, 7
    %v300 = vsub.s32 0, %v299
    %v301 = vrot.slane %v278, %v300
    %v303 = vmul.f32 %v295, %v301
    %v304 = vmul.f32 %v296, %v301
    %v305 = vld [vmem:[%s2] sm:$0xff]
    %v306 = vld [vmem:[%s2 + $0x8] sm:$0xff]
    %v307 = vld [vmem:[%s2 + $0x10] sm:$0xff]
    %v308 = vld [vmem:[%s2 + $0x18] sm:$0xff]
    %v309 = vld [vmem:[%s3] sm:$0x1]
    %v311 = vlaneseq
    %v312 = vshrl.u32 %v311, 7
    %v313 = vsub.s32 0, %v312
    %v314 = vrot.slane %v309, %v313
    %v317 = vsel %vm281, %v303, 0
    %v320 = vsel %vm281, %v304, 0
    %322 = vmatprep.subr.mxu0 0.0
    %323 = vmatpush1.msra.mxu0 %v305
    %324 = vmatprep.subr.mxu0 0.0
    %325 = vmatpush1.msra.mxu0 %v306
    %326 = vmatprep.subr.mxu0 0.0
    %327 = vmatpush1.msra.mxu0 %v307
    %328 = vmatprep.subr.mxu0 0.0
    %329 = vmatpush1.msra.mxu0 %v308
    %330 = vmatprep.subr.mxu0 0.0
    %331 = vmatpush1.msra.mxu0 0.0
    %332 = vmatprep.subr.mxu0 0.0
    %333 = vmatpush1.msra.mxu0 0.0
    %334 = vmatprep.subr.mxu0 0.0
    %335 = vmatpush1.msra.mxu0 0.0
    %336 = vmatprep.subr.mxu0 0.0
    %337 = vmatpush1.msra.mxu0 0.0
    %338 = vmatprep.subr.mxu0 0.0
    %339 = vmatpush1.msra.mxu0 0.0
    %340 = vmatprep.subr.mxu0 0.0
    %341 = vmatpush1.msra.mxu0 0.0
    %342 = vmatprep.subr.mxu0 0.0
    %343 = vmatpush1.msra.mxu0 0.0
    %344 = vmatprep.subr.mxu0 0.0
    %345 = vmatpush1.msra.mxu0 0.0
    %346 = vmatprep.subr.mxu0 0.0
    %347 = vmatpush1.msra.mxu0 0.0
    %348 = vmatprep.subr.mxu0 0.0
    %349 = vmatpush1.msra.mxu0 0.0
    %350 = vmatprep.subr.mxu0 0.0
    %351 = vmatpush1.msra.mxu0 0.0
    %352 = vmatprep.subr.mxu0 0.0
    %353 = vmatpush1.msra.mxu0 0.0
    %354 = vmatprep.subr.mxu0 0.0
    %355 = vmatpush1.msra.mxu0 0.0
    %356 = vmatprep.subr.mxu0 0.0
    %357 = vmatpush1.msra.mxu0 0.0
    %358 = vmatprep.subr.mxu0 0.0
    %359 = vmatpush1.msra.mxu0 0.0
    %360 = vmatprep.subr.mxu0 0.0
    %361 = vmatpush1.msra.mxu0 0.0
    %362 = vmatprep.subr.mxu0 0.0
    %363 = vmatpush1.msra.mxu0 0.0
    %364 = vmatprep.subr.mxu0 0.0
    %365 = vmatpush1.msra.mxu0 0.0
    %366 = vmatprep.subr.mxu0 0.0
    %367 = vmatpush1.msra.mxu0 0.0
    %368 = vmatprep.subr.mxu0 0.0
    %369 = vmatpush1.msra.mxu0 0.0
    %370 = vmatprep.subr.mxu0 0.0
    %371 = vmatpush1.msra.mxu0 0.0
    %372 = vmatprep.subr.mxu0 0.0
    %373 = vmatpush1.msra.mxu0 0.0
    %374 = vmatprep.subr.mxu0 0.0
    %375 = vmatpush1.msra.mxu0 0.0
    %376 = vmatprep.subr.mxu0 0.0
    %377 = vmatpush1.msra.mxu0 0.0
    %378 = vmatprep.subr.mxu0 0.0
    %379 = vmatpush1.msra.mxu0 0.0
    %380 = vmatprep.subr.mxu0 0.0
    %381 = vmatpush1.msra.mxu0 0.0
    %382 = vmatprep.subr.mxu0 0.0
    %383 = vmatpush1.msra.mxu0 0.0
    %384 = vmatprep.subr.mxu0 0.0
    %385 = vmatpush1.msra.mxu0 0.0
    %386 = vmatprep.mubr.f32.mxu0 0.0
    %387 = vmatmul.mubr.f32.gmra.mrb[0].mxu0 %v317
    %v388 = vpop.f32.mrb[0].mxu0
    %v389 = vadd.f32 %v314, %v388
    %v390 = vpop.f32.mrb[0].mxu0
    %391 = vmatprep.mubr.f32.mxu0 0.0
    %392 = vmatmul.mubr.f32.gmra.mrb[0].mxu0 %v320
    %v393 = vpop.f32.mrb[0].mxu0
    %v394 = vadd.f32 %v314, %v393
    %v395 = vpop.f32.mrb[0].mxu0
    %396 = vdwg.mxu0
    %v397 = vld [vmem:[#allocation2] sm:$0xf]
    %v398 = vlaneseq
    %v399 = vshrl.u32 %v398, 7
    %v400 = vadd.s32 %v399, 8
    %vm401 = vcmp.lt.s32.totalorder %v399, 0
    %v402 = vsub.s32 0, %v399
    %v403 = vsel %vm401, %v402, %v399
    %v404 = vshrl.u32 %v403, 3
    %v405 = vand.u32 %v403, 7
    %v406 = vsub.s32 0, %v405
    %v407 = vsel %vm401, %v406, %v405
    %vm408 = vcmp.lt.s32.totalorder %v400, 0
    %v409 = vsub.s32 0, %v400
    %v410 = vsel %vm408, %v409, %v400
    %v411 = vshrl.u32 %v410, 3
    %v412 = vand.u32 %v410, 7
    %v413 = vsub.s32 0, %v412
    %v414 = vsel %vm408, %v413, %v412
    %vm415 = vcmp.ne.s32.totalorder %v407, 0
    %vm416 = vcmp.ne.s32.totalorder %v414, 0
    %vm417 = vcmp.lt.s32.totalorder %v407, 0
    %vm418 = vcmp.lt.s32.totalorder %v414, 0
    %vm419 = vmand %vm417, %vm415
    %vm420 = vmand %vm418, %vm416
    %v421 = vadd.s32 %v407, 8
    %v422 = vadd.s32 %v414, 8
    %v423 = vsel %vm419, %v421, %v407
    %v424 = vsel %vm420, %v422, %v414
    %v425 = vlaneseq
    %v426 = vshrl.u32 %v425, 7
    %v427 = vsub.s32 3, %v426
    %v428 = vrot.slane %v397, %v427
    %v429 = vmul.f32 %v389, %v428
    %v430 = vmul.f32 %v394, %v428
    %vm433 = vcmask 1040384
    %v434 = vrot.slane %v389, 7
    %v435 = vrot.slane %v394, 7
    %v436 = vsel %vm433, %v434, %v435
    %v439 = vsel %vm433, 0.0, %v434
    %vm440 = vcmp.ge.s32.totalorder %v423, 1
    %vm441 = vcmp.ge.s32.totalorder %v424, 1
    %v442 = vsel %vm440, %v439, 0.0
    %v443 = vsel %vm441, %v436, 0.0
    %v444 = vlaneseq
    %v445 = vshrl.u32 %v444, 7
    %v446 = vsub.s32 2, %v445
    %v447 = vrot.slane %v397, %v446
    %v448 = vmul.f32 %v442, %v447
    %v449 = vmul.f32 %v443, %v447
    %v450 = vadd.f32 %v429, %v448
    %v451 = vadd.f32 %v430, %v449
    %vm452 = vcmask 1041408
    %v453 = vrot.slane %v389, 6
    %v454 = vrot.slane %v394, 6
    %v455 = vsel %vm452, %v453, %v454
    %v458 = vsel %vm452, 0.0, %v453
    %vm459 = vcmp.ge.s32.totalorder %v423, 2
    %vm460 = vcmp.ge.s32.totalorder %v424, 2
    %v461 = vsel %vm459, %v458, 0.0
    %v462 = vsel %vm460, %v455, 0.0
    %v463 = vlaneseq
    %v464 = vshrl.u32 %v463, 7
    %v465 = vsub.s32 1, %v464
    %v466 = vrot.slane %v397, %v465
    %v467 = vmul.f32 %v461, %v466
    %v468 = vmul.f32 %v462, %v466
    %v469 = vadd.f32 %v450, %v467
    %v470 = vadd.f32 %v451, %v468
    %vm471 = vcmask 1042432
    %v472 = vrot.slane %v389, 5
    %v473 = vrot.slane %v394, 5
    %v474 = vsel %vm471, %v472, %v473
    %v477 = vsel %vm471, 0.0, %v472
    %vm478 = vcmp.ge.s32.totalorder %v423, 3
    %vm479 = vcmp.ge.s32.totalorder %v424, 3
    %v480 = vsel %vm478, %v477, 0.0
    %v481 = vsel %vm479, %v474, 0.0
    %v482 = vlaneseq
    %v483 = vshrl.u32 %v482, 7
    %v484 = vsub.s32 0, %v483
    %v485 = vrot.slane %v397, %v484
    %v486 = vmul.f32 %v480, %v485
    %v487 = vmul.f32 %v481, %v485
    %v488 = vadd.f32 %v469, %v486
    %v489 = vadd.f32 %v470, %v487
    %v490 = vld [vmem:[#allocation4] sm:$0x1]
    %v492 = vlaneseq
    %v493 = vshrl.u32 %v492, 7
    %v494 = vsub.s32 0, %v493
    %v495 = vrot.slane %v490, %v494
    %v497 = vadd.f32 %v488, %v495
    %v498 = vadd.f32 %v489, %v495
    %v499 = vsub.f32 0.0, %v497
    %v500 = vsub.f32 0.0, %v498
    %v501 = vmul.f32 %v499, 1.442695
    %v502 = vpow.pop %v501
    %v503 = vmul.f32 %v500, 1.442695
    %v504 = vpow.pop %v503
    %v505 = vadd.f32 %v502, 1.0
    %v506 = vadd.f32 %v504, 1.0
    %v507 = vrcp.pop %v505
    %v508 = vmul.f32 1.0, %v507
    %v509 = vrcp.pop %v506
    %v510 = vmul.f32 1.0, %v509
    %v511 = vmul.f32 %v497, %v508
    %v512 = vmul.f32 %v498, %v510
    %v513 = vld [vmem:[%s6] sm:$0xff]
    %v514 = vld [vmem:[%s6 + $0x8] sm:$0xff]
    %v515 = vld [vmem:[%s6 + $0x10] sm:$0xff]
    %v516 = vld [vmem:[%s6 + $0x18] sm:$0xff]
    %v517 = vld [vmem:[%s6 + $0x20] sm:$0xff]
    %v518 = vld [vmem:[%s6 + $0x28] sm:$0xff]
    %v519 = vld [vmem:[%s6 + $0x30] sm:$0xff]
    %v520 = vld [vmem:[%s6 + $0x38] sm:$0xff]
    %v521 = vld [vmem:[#allocation6] sm:$0x1]
    %v523 = vlaneseq
    %v524 = vshrl.u32 %v523, 7
    %v525 = vsub.s32 0, %v524
    %v526 = vrot.slane %v521, %v525
    %vm528 = vcmask 523264
    %v530 = vsel %vm528, %v511, 0
    %v533 = vsel %vm528, %v512, 0
    %535 = vmatprep.subr.mxu0 0.0
    %536 = vmatpush1.msra.mxu0 %v513
    %537 = vmatprep.subr.mxu0 0.0
    %538 = vmatpush1.msra.mxu0 %v514
    %539 = vmatprep.subr.mxu0 0.0
    %540 = vmatpush1.msra.mxu0 %v515
    %541 = vmatprep.subr.mxu0 0.0
    %542 = vmatpush1.msra.mxu0 %v516
    %543 = vmatprep.subr.mxu0 0.0
    %544 = vmatpush1.msra.mxu0 %v517
    %545 = vmatprep.subr.mxu0 0.0
    %546 = vmatpush1.msra.mxu0 %v518
    %547 = vmatprep.subr.mxu0 0.0
    %548 = vmatpush1.msra.mxu0 %v519
    %549 = vmatprep.subr.mxu0 0.0
    %550 = vmatpush1.msra.mxu0 %v520
    %551 = vmatprep.subr.mxu0 0.0
    %552 = vmatpush1.msra.mxu0 0.0
    %553 = vmatprep.subr.mxu0 0.0
    %554 = vmatpush1.msra.mxu0 0.0
    %555 = vmatprep.subr.mxu0 0.0
    %556 = vmatpush1.msra.mxu0 0.0
    %557 = vmatprep.subr.mxu0 0.0
    %558 = vmatpush1.msra.mxu0 0.0
    %559 = vmatprep.subr.mxu0 0.0
    %560 = vmatpush1.msra.mxu0 0.0
    %561 = vmatprep.subr.mxu0 0.0
    %562 = vmatpush1.msra.mxu0 0.0
    %563 = vmatprep.subr.mxu0 0.0
    %564 = vmatpush1.msra.mxu0 0.0
    %565 = vmatprep.subr.mxu0 0.0
    %566 = vmatpush1.msra.mxu0 0.0
    %567 = vmatprep.subr.mxu0 0.0
    %568 = vmatpush1.msra.mxu0 0.0
    %569 = vmatprep.subr.mxu0 0.0
    %570 = vmatpush1.msra.mxu0 0.0
    %571 = vmatprep.subr.mxu0 0.0
    %572 = vmatpush1.msra.mxu0 0.0
    %573 = vmatprep.subr.mxu0 0.0
    %574 = vmatpush1.msra.mxu0 0.0
    %575 = vmatprep.subr.mxu0 0.0
    %576 = vmatpush1.msra.mxu0 0.0
    %577 = vmatprep.subr.mxu0 0.0
    %578 = vmatpush1.msra.mxu0 0.0
    %579 = vmatprep.subr.mxu0 0.0
    %580 = vmatpush1.msra.mxu0 0.0
    %581 = vmatprep.subr.mxu0 0.0
    %582 = vmatpush1.msra.mxu0 0.0
    %583 = vmatprep.subr.mxu0 0.0
    %584 = vmatpush1.msra.mxu0 0.0
    %585 = vmatprep.subr.mxu0 0.0
    %586 = vmatpush1.msra.mxu0 0.0
    %587 = vmatprep.subr.mxu0 0.0
    %588 = vmatpush1.msra.mxu0 0.0
    %589 = vmatprep.subr.mxu0 0.0
    %590 = vmatpush1.msra.mxu0 0.0
    %591 = vmatprep.subr.mxu0 0.0
    %592 = vmatpush1.msra.mxu0 0.0
    %593 = vmatprep.subr.mxu0 0.0
    %594 = vmatpush1.msra.mxu0 0.0
    %595 = vmatprep.subr.mxu0 0.0
    %596 = vmatpush1.msra.mxu0 0.0
    %597 = vmatprep.subr.mxu0 0.0
    %598 = vmatpush1.msra.mxu0 0.0
    %599 = vmatprep.mubr.f32.mxu0 0.0
    %600 = vmatmul.mubr.f32.gmra.mrb[0].mxu0 %v530
    %v601 = vpop.f32.mrb[0].mxu0
    %v602 = vadd.f32 %v526, %v601
    %v603 = vpop.f32.mrb[0].mxu0
    %604 = vmatprep.mubr.f32.mxu0 0.0
    %605 = vmatmul.mubr.f32.gmra.mrb[0].mxu0 %v533
    %v606 = vpop.f32.mrb[0].mxu0
    %v607 = vadd.f32 %v526, %v606
    %v608 = vpop.f32.mrb[0].mxu0
    %609 = vdwg.mxu0
    %v610 = vmax.f32 %v602, 0.0
    %v611 = vmax.f32 %v607, 0.0
    %v612 = vand.u32 2147483647, %v602
    %v613 = vand.u32 2147483647, %v607
    %v614 = vsub.f32 0.0, %v612
    %v615 = vsub.f32 0.0, %v613
    %v616 = vmul.f32 %v614, 1.442695
    %v617 = vpow.pop %v616
    %v618 = vmul.f32 %v615, 1.442695
    %v619 = vpow.pop %v618
    %v620 = vadd.f32 %v617, 1.0
    %v621 = vadd.f32 %v619, 1.0
    %v622 = vlog2.pop %v620
    %v623 = vmul.f32 %v622, 0.6931472
    %v624 = vlog2.pop %v621
    %v625 = vmul.f32 %v624, 0.6931472
    %v626 = vadd.f32 %v610, %v623
    %v627 = vadd.f32 %v611, %v625
    %v628 = vmul.f32 %v626, %v511
    %v629 = vmul.f32 %v627, %v512
    %v630 = vsub.f32 0.0, %v389
    %v631 = vsub.f32 0.0, %v394
    %v632 = vmul.f32 %v630, 1.442695
    %v633 = vpow.pop %v632
    %v634 = vmul.f32 %v631, 1.442695
    %v635 = vpow.pop %v634
    %v636 = vadd.f32 %v633, 1.0
    %v637 = vadd.f32 %v635, 1.0
    %v638 = vrcp.pop %v636
    %v639 = vmul.f32 1.0, %v638
    %v640 = vrcp.pop %v637
    %v641 = vmul.f32 1.0, %v640
    %v642 = vmul.f32 %v389, %v639
    %v643 = vmul.f32 %v394, %v641
    %646 = vrot.lane.b32.xlu0 %v602, 64
    %v647 = vpop.permute.xlu0 %646
    %648 = vrot.lane.b32.xlu0 %v607, 64
    %v649 = vpop.permute.xlu0 %648
    %652 = vxpose.xlu0.b32.start [1/16] %v647, 128
    %653 = vxpose.xlu0.b32.cont [2/16] %v649, 128
    %654 = vxpose.xlu0.b32.cont [3/16] 0.0, 128
    %655 = vxpose.xlu0.b32.cont [4/16] 0.0, 128
    %656 = vxpose.xlu0.b32.cont [5/16] 0.0, 128
    %657 = vxpose.xlu0.b32.cont [6/16] 0.0, 128
    %658 = vxpose.xlu0.b32.cont [7/16] 0.0, 128
    %659 = vxpose.xlu0.b32.cont [8/16] 0.0, 128
    %660 = vxpose.xlu0.b32.cont [9/16] 0.0, 128
    %661 = vxpose.xlu0.b32.cont [10/16] 0.0, 128
    %662 = vxpose.xlu0.b32.cont [11/16] 0.0, 128
    %663 = vxpose.xlu0.b32.cont [12/16] 0.0, 128
    %664 = vxpose.xlu0.b32.cont [13/16] 0.0, 128
    %665 = vxpose.xlu0.b32.cont [14/16] 0.0, 128
    %666 = vxpose.xlu0.b32.cont [15/16] 0.0, 128
    %667 = vxpose.xlu0.b32.end [16/16] 0.0, 128
    %v668 = vpop.trf.xlu0
    %v669 = vpop.trf.xlu0
    %v670 = vpop.trf.xlu0
    %v671 = vpop.trf.xlu0
    %v672 = vpop.trf.xlu0
    %v673 = vpop.trf.xlu0
    %v674 = vpop.trf.xlu0
    %v675 = vpop.trf.xlu0
    %v676 = vpop.trf.xlu0
    %v677 = vpop.trf.xlu0
    %v678 = vpop.trf.xlu0
    %v679 = vpop.trf.xlu0
    %v680 = vpop.trf.xlu0
    %v681 = vpop.trf.xlu0
    %v682 = vpop.trf.xlu0
    %v683 = vpop.trf.xlu0
    %v684 = vld [vmem:[%s8] sm:$0xff]
    %v685 = vlaneseq
    %v686 = vshrl.u32 %v685, 7
    %v687 = vsub.s32 0, %v686
    %v688 = vrot.slane %v626, %v687
    %v689 = vmul.f32 %v688, %v684
    %v690 = vmul.f32 %v689, 1.442695
    %v691 = vpow.pop %v690
    %v692 = vlaneseq
    %v693 = vshrl.u32 %v692, 7
    %v694 = vsub.s32 0, %v693
    %v695 = vrot.slane %v628, %v694
    %697 = vset.pattern.permute.xlu0 0
    %698 = vperm.xlu0 %697, %v668
    %v699 = vpop.permute.xlu0 %698
    %v701 = vmul.f32 %v695, %v699
    %v702 = vmul.f32 %v691, 0.0
    %v703 = vadd.f32 %v702, %v701
    %705 = vset.pattern.permute.xlu0 0
    %706 = vperm.xlu0 %705, %v669
    %v707 = vpop.permute.xlu0 %706
    %v709 = vmul.f32 %v703, %v707
    %v710 = vsel %vm528, %v709, 0.0
    %v711 = vrot.slane %v710, 4
    %v712 = vadd.f32 %v710, %v711
    %v713 = vrot.slane %v712, 2
    %v714 = vadd.f32 %v712, %v713
    %v715 = vrot.slane %v714, 1
    %v716 = vadd.f32 %v714, %v715
    %v717 = vlaneseq
    %v718 = vshrl.u32 %v717, 7
    %v719 = vsub.s32 1, %v718
    %v720 = vrot.slane %v626, %v719
    %v721 = vmul.f32 %v720, %v684
    %v722 = vmul.f32 %v721, 1.442695
    %v723 = vpow.pop %v722
    %v724 = vlaneseq
    %v725 = vshrl.u32 %v724, 7
    %v726 = vsub.s32 1, %v725
    %v727 = vrot.slane %v628, %v726
    %728 = vset.pattern.permute.xlu0 1
    %729 = vperm.xlu0 %728, %v668
    %v730 = vpop.permute.xlu0 %729
    %v732 = vmul.f32 %v727, %v730
    %v733 = vmul.f32 %v723, %v703
    %v734 = vadd.f32 %v733, %v732
    %735 = vset.pattern.permute.xlu0 1
    %736 = vperm.xlu0 %735, %v669
    %v737 = vpop.permute.xlu0 %736
    %v739 = vmul.f32 %v734, %v737
    %v740 = vsel %vm528, %v739, 0.0
    %v741 = vrot.slane %v740, 4
    %v742 = vadd.f32 %v740, %v741
    %v743 = vrot.slane %v742, 2
    %v744 = vadd.f32 %v742, %v743
    %v745 = vrot.slane %v744, 1
    %v746 = vadd.f32 %v744, %v745
    %v747 = vlaneseq
    %v748 = vshrl.u32 %v747, 7
    %v749 = vsub.s32 2, %v748
    %v750 = vrot.slane %v626, %v749
    %v751 = vmul.f32 %v750, %v684
    %v752 = vmul.f32 %v751, 1.442695
    %v753 = vpow.pop %v752
    %v754 = vlaneseq
    %v755 = vshrl.u32 %v754, 7
    %v756 = vsub.s32 2, %v755
    %v757 = vrot.slane %v628, %v756
    %758 = vset.pattern.permute.xlu0 2
    %759 = vperm.xlu0 %758, %v668
    %v760 = vpop.permute.xlu0 %759
    %v762 = vmul.f32 %v757, %v760
    %v763 = vmul.f32 %v753, %v734
    %v764 = vadd.f32 %v763, %v762
    %765 = vset.pattern.permute.xlu0 2
    %766 = vperm.xlu0 %765, %v669
    %v767 = vpop.permute.xlu0 %766
    %v769 = vmul.f32 %v764, %v767
    %v770 = vsel %vm528, %v769, 0.0
    %v771 = vrot.slane %v770, 4
    %v772 = vadd.f32 %v770, %v771
    %v773 = vrot.slane %v772, 2
    %v774 = vadd.f32 %v772, %v773
    %v775 = vrot.slane %v774, 1
    %v776 = vadd.f32 %v774, %v775
    %v777 = vlaneseq
    %v778 = vshrl.u32 %v777, 7
    %v779 = vsub.s32 3, %v778
    %v780 = vrot.slane %v626, %v779
    %v781 = vmul.f32 %v780, %v684
    %v782 = vmul.f32 %v781, 1.442695
    %v783 = vpow.pop %v782
    %v784 = vlaneseq
    %v785 = vshrl.u32 %v784, 7
    %v786 = vsub.s32 3, %v785
    %v787 = vrot.slane %v628, %v786
    %788 = vset.pattern.permute.xlu0 3
    %789 = vperm.xlu0 %788, %v668
    %v790 = vpop.permute.xlu0 %789
    %v792 = vmul.f32 %v787, %v790
    %v793 = vmul.f32 %v783, %v764
    %v794 = vadd.f32 %v793, %v792
    %795 = vset.pattern.permute.xlu0 3
    %796 = vperm.xlu0 %795, %v669
    %v797 = vpop.permute.xlu0 %796
    %v799 = vmul.f32 %v794, %v797
    %v800 = vsel %vm528, %v799, 0.0
    %v801 = vrot.slane %v800, 4
    %v802 = vadd.f32 %v800, %v801
    %v803 = vrot.slane %v802, 2
    %v804 = vadd.f32 %v802, %v803
    %v805 = vrot.slane %v804, 1
    %v806 = vadd.f32 %v804, %v805
    %v807 = vlaneseq
    %v808 = vshrl.u32 %v807, 7
    %v809 = vsub.s32 4, %v808
    %v810 = vrot.slane %v626, %v809
    %v811 = vmul.f32 %v810, %v684
    %v812 = vmul.f32 %v811, 1.442695
    %v813 = vpow.pop %v812
    %v814 = vlaneseq
    %v815 = vshrl.u32 %v814, 7
    %v816 = vsub.s32 4, %v815
    %v817 = vrot.slane %v628, %v816
    %818 = vset.pattern.permute.xlu0 4
    %819 = vperm.xlu0 %818, %v668
    %v820 = vpop.permute.xlu0 %819
    %v822 = vmul.f32 %v817, %v820
    %v823 = vmul.f32 %v813, %v794
    %v824 = vadd.f32 %v823, %v822
    %825 = vset.pattern.permute.xlu0 4
    %826 = vperm.xlu0 %825, %v669
    %v827 = vpop.permute.xlu0 %826
    %v829 = vmul.f32 %v824, %v827
    %v830 = vsel %vm528, %v829, 0.0
    %v831 = vrot.slane %v830, 4
    %v832 = vadd.f32 %v830, %v831
    %v833 = vrot.slane %v832, 2
    %v834 = vadd.f32 %v832, %v833
    %v835 = vrot.slane %v834, 1
    %v836 = vadd.f32 %v834, %v835
    %v837 = vlaneseq
    %v838 = vshrl.u32 %v837, 7
    %v839 = vsub.s32 5, %v838
    %v840 = vrot.slane %v626, %v839
    %v841 = vmul.f32 %v840, %v684
    %v842 = vmul.f32 %v841, 1.442695
    %v843 = vpow.pop %v842
    %v844 = vlaneseq
    %v845 = vshrl.u32 %v844, 7
    %v846 = vsub.s32 5, %v845
    %v847 = vrot.slane %v628, %v846
    %848 = vset.pattern.permute.xlu0 5
    %849 = vperm.xlu0 %848, %v668
    %v850 = vpop.permute.xlu0 %849
    %v852 = vmul.f32 %v847, %v850
    %v853 = vmul.f32 %v843, %v824
    %v854 = vadd.f32 %v853, %v852
    %855 = vset.pattern.permute.xlu0 5
    %856 = vperm.xlu0 %855, %v669
    %v857 = vpop.permute.xlu0 %856
    %v859 = vmul.f32 %v854, %v857
    %v860 = vsel %vm528, %v859, 0.0
    %v861 = vrot.slane %v860, 4
    %v862 = vadd.f32 %v860, %v861
    %v863 = vrot.slane %v862, 2
    %v864 = vadd.f32 %v862, %v863
    %v865 = vrot.slane %v864, 1
    %v866 = vadd.f32 %v864, %v865
    %v867 = vlaneseq
    %v868 = vshrl.u32 %v867, 7
    %v869 = vsub.s32 6, %v868
    %v870 = vrot.slane %v626, %v869
    %v871 = vmul.f32 %v870, %v684
    %v872 = vmul.f32 %v871, 1.442695
    %v873 = vpow.pop %v872
    %v874 = vlaneseq
    %v875 = vshrl.u32 %v874, 7
    %v876 = vsub.s32 6, %v875
    %v877 = vrot.slane %v628, %v876
    %878 = vset.pattern.permute.xlu0 6
    %879 = vperm.xlu0 %878, %v668
    %v880 = vpop.permute.xlu0 %879
    %v882 = vmul.f32 %v877, %v880
    %v883 = vmul.f32 %v873, %v854
    %v884 = vadd.f32 %v883, %v882
    %885 = vset.pattern.permute.xlu0 6
    %886 = vperm.xlu0 %885, %v669
    %v887 = vpop.permute.xlu0 %886
    %v889 = vmul.f32 %v884, %v887
    %v890 = vsel %vm528, %v889, 0.0
    %v891 = vrot.slane %v890, 4
    %v892 = vadd.f32 %v890, %v891
    %v893 = vrot.slane %v892, 2
    %v894 = vadd.f32 %v892, %v893
    %v895 = vrot.slane %v894, 1
    %v896 = vadd.f32 %v894, %v895
    %v897 = vlaneseq
    %v898 = vshrl.u32 %v897, 7
    %v899 = vsub.s32 7, %v898
    %v900 = vrot.slane %v626, %v899
    %v901 = vmul.f32 %v900, %v684
    %v902 = vmul.f32 %v901, 1.442695
    %v903 = vpow.pop %v902
    %v904 = vlaneseq
    %v905 = vshrl.u32 %v904, 7
    %v906 = vsub.s32 7, %v905
    %v907 = vrot.slane %v628, %v906
    %908 = vset.pattern.permute.xlu0 7
    %909 = vperm.xlu0 %908, %v668
    %v910 = vpop.permute.xlu0 %909
    %v912 = vmul.f32 %v907, %v910
    %v913 = vmul.f32 %v903, %v884
    %v914 = vadd.f32 %v913, %v912
    %915 = vset.pattern.permute.xlu0 7
    %916 = vperm.xlu0 %915, %v669
    %v917 = vpop.permute.xlu0 %916
    %v919 = vmul.f32 %v914, %v917
    %v920 = vsel %vm528, %v919, 0.0
    %v921 = vrot.slane %v920, 4
    %v922 = vadd.f32 %v920, %v921
    %v923 = vrot.slane %v922, 2
    %v924 = vadd.f32 %v922, %v923
    %v925 = vrot.slane %v924, 1
    %v926 = vadd.f32 %v924, %v925
    %v927 = vlaneseq
    %v928 = vshrl.u32 %v927, 7
    %v929 = vsub.s32 0, %v928
    %v930 = vrot.slane %v627, %v929
    %v931 = vmul.f32 %v930, %v684
    %v932 = vmul.f32 %v931, 1.442695
    %v933 = vpow.pop %v932
    %v934 = vlaneseq
    %v935 = vshrl.u32 %v934, 7
    %v936 = vsub.s32 0, %v935
    %v937 = vrot.slane %v629, %v936
    %938 = vset.pattern.permute.xlu0 8
    %939 = vperm.xlu0 %938, %v668
    %v940 = vpop.permute.xlu0 %939
    %v942 = vmul.f32 %v937, %v940
    %v943 = vmul.f32 %v933, 0.0
    %v944 = vadd.f32 %v943, %v942
    %945 = vset.pattern.permute.xlu0 8
    %946 = vperm.xlu0 %945, %v669
    %v947 = vpop.permute.xlu0 %946
    %v949 = vmul.f32 %v944, %v947
    %v950 = vsel %vm528, %v949, 0.0
    %v951 = vrot.slane %v950, 4
    %v952 = vadd.f32 %v950, %v951
    %v953 = vrot.slane %v952, 2
    %v954 = vadd.f32 %v952, %v953
    %v955 = vrot.slane %v954, 1
    %v956 = vadd.f32 %v954, %v955
    %v957 = vlaneseq
    %v958 = vshrl.u32 %v957, 7
    %v959 = vsub.s32 1, %v958
    %v960 = vrot.slane %v627, %v959
    %v961 = vmul.f32 %v960, %v684
    %v962 = vmul.f32 %v961, 1.442695
    %v963 = vpow.pop %v962
    %v964 = vlaneseq
    %v965 = vshrl.u32 %v964, 7
    %v966 = vsub.s32 1, %v965
    %v967 = vrot.slane %v629, %v966
    %968 = vset.pattern.permute.xlu0 9
    %969 = vperm.xlu0 %968, %v668
    %v970 = vpop.permute.xlu0 %969
    %v972 = vmul.f32 %v967, %v970
    %v973 = vmul.f32 %v963, %v944
    %v974 = vadd.f32 %v973, %v972
    %975 = vset.pattern.permute.xlu0 9
    %976 = vperm.xlu0 %975, %v669
    %v977 = vpop.permute.xlu0 %976
    %v979 = vmul.f32 %v974, %v977
    %v980 = vsel %vm528, %v979, 0.0
    %v981 = vrot.slane %v980, 4
    %v982 = vadd.f32 %v980, %v981
    %v983 = vrot.slane %v982, 2
    %v984 = vadd.f32 %v982, %v983
    %v985 = vrot.slane %v984, 1
    %v986 = vadd.f32 %v984, %v985
    %v987 = vlaneseq
    %v988 = vshrl.u32 %v987, 7
    %v989 = vsub.s32 2, %v988
    %v990 = vrot.slane %v627, %v989
    %v991 = vmul.f32 %v990, %v684
    %v992 = vmul.f32 %v991, 1.442695
    %v993 = vpow.pop %v992
    %v994 = vlaneseq
    %v995 = vshrl.u32 %v994, 7
    %v996 = vsub.s32 2, %v995
    %v997 = vrot.slane %v629, %v996
    %998 = vset.pattern.permute.xlu0 10
    %999 = vperm.xlu0 %998, %v668
    %v1000 = vpop.permute.xlu0 %999
    %v1002 = vmul.f32 %v997, %v1000
    %v1003 = vmul.f32 %v993, %v974
    %v1004 = vadd.f32 %v1003, %v1002
    %1005 = vset.pattern.permute.xlu0 10
    %1006 = vperm.xlu0 %1005, %v669
    %v1007 = vpop.permute.xlu0 %1006
    %v1009 = vmul.f32 %v1004, %v1007
    %v1010 = vsel %vm528, %v1009, 0.0
    %v1011 = vrot.slane %v1010, 4
    %v1012 = vadd.f32 %v1010, %v1011
    %v1013 = vrot.slane %v1012, 2
    %v1014 = vadd.f32 %v1012, %v1013
    %v1015 = vrot.slane %v1014, 1
    %v1016 = vadd.f32 %v1014, %v1015
    %v1017 = vlaneseq
    %v1018 = vshrl.u32 %v1017, 7
    %v1019 = vsub.s32 3, %v1018
    %v1020 = vrot.slane %v627, %v1019
    %v1021 = vmul.f32 %v1020, %v684
    %v1022 = vmul.f32 %v1021, 1.442695
    %v1023 = vpow.pop %v1022
    %v1024 = vlaneseq
    %v1025 = vshrl.u32 %v1024, 7
    %v1026 = vsub.s32 3, %v1025
    %v1027 = vrot.slane %v629, %v1026
    %1028 = vset.pattern.permute.xlu0 11
    %1029 = vperm.xlu0 %1028, %v668
    %v1030 = vpop.permute.xlu0 %1029
    %v1032 = vmul.f32 %v1027, %v1030
    %v1033 = vmul.f32 %v1023, %v1004
    %v1034 = vadd.f32 %v1033, %v1032
    %1035 = vset.pattern.permute.xlu0 11
    %1036 = vperm.xlu0 %1035, %v669
    %v1037 = vpop.permute.xlu0 %1036
    %v1039 = vmul.f32 %v1034, %v1037
    %v1040 = vsel %vm528, %v1039, 0.0
    %v1041 = vrot.slane %v1040, 4
    %v1042 = vadd.f32 %v1040, %v1041
    %v1043 = vrot.slane %v1042, 2
    %v1044 = vadd.f32 %v1042, %v1043
    %v1045 = vrot.slane %v1044, 1
    %v1046 = vadd.f32 %v1044, %v1045
    %v1047 = vlaneseq
    %v1048 = vshrl.u32 %v1047, 7
    %v1049 = vsub.s32 4, %v1048
    %v1050 = vrot.slane %v627, %v1049
    %v1051 = vmul.f32 %v1050, %v684
    %v1052 = vmul.f32 %v1051, 1.442695
    %v1053 = vpow.pop %v1052
    %v1054 = vlaneseq
    %v1055 = vshrl.u32 %v1054, 7
    %v1056 = vsub.s32 4, %v1055
    %v1057 = vrot.slane %v629, %v1056
    %1058 = vset.pattern.permute.xlu0 12
    %1059 = vperm.xlu0 %1058, %v668
    %v1060 = vpop.permute.xlu0 %1059
    %v1062 = vmul.f32 %v1057, %v1060
    %v1063 = vmul.f32 %v1053, %v1034
    %v1064 = vadd.f32 %v1063, %v1062
    %1065 = vset.pattern.permute.xlu0 12
    %1066 = vperm.xlu0 %1065, %v669
    %v1067 = vpop.permute.xlu0 %1066
    %v1069 = vmul.f32 %v1064, %v1067
    %v1070 = vsel %vm528, %v1069, 0.0
    %v1071 = vrot.slane %v1070, 4
    %v1072 = vadd.f32 %v1070, %v1071
    %v1073 = vrot.slane %v1072, 2
    %v1074 = vadd.f32 %v1072, %v1073
    %v1075 = vrot.slane %v1074, 1
    %v1076 = vadd.f32 %v1074, %v1075
    %v1077 = vlaneseq
    %v1078 = vshrl.u32 %v1077, 7
    %v1079 = vsub.s32 5, %v1078
    %v1080 = vrot.slane %v627, %v1079
    %v1081 = vmul.f32 %v1080, %v684
    %v1082 = vmul.f32 %v1081, 1.442695
    %v1083 = vpow.pop %v1082
    %v1084 = vlaneseq
    %v1085 = vshrl.u32 %v1084, 7
    %v1086 = vsub.s32 5, %v1085
    %v1087 = vrot.slane %v629, %v1086
    %1088 = vset.pattern.permute.xlu0 13
    %1089 = vperm.xlu0 %1088, %v668
    %v1090 = vpop.permute.xlu0 %1089
    %v1092 = vmul.f32 %v1087, %v1090
    %v1093 = vmul.f32 %v1083, %v1064
    %v1094 = vadd.f32 %v1093, %v1092
    %1095 = vset.pattern.permute.xlu0 13
    %1096 = vperm.xlu0 %1095, %v669
    %v1097 = vpop.permute.xlu0 %1096
    %v1099 = vmul.f32 %v1094, %v1097
    %v1100 = vsel %vm528, %v1099, 0.0
    %v1101 = vrot.slane %v1100, 4
    %v1102 = vadd.f32 %v1100, %v1101
    %v1103 = vrot.slane %v1102, 2
    %v1104 = vadd.f32 %v1102, %v1103
    %v1105 = vrot.slane %v1104, 1
    %v1106 = vadd.f32 %v1104, %v1105
    %v1107 = vlaneseq
    %v1108 = vshrl.u32 %v1107, 7
    %v1109 = vsub.s32 6, %v1108
    %v1110 = vrot.slane %v627, %v1109
    %v1111 = vmul.f32 %v1110, %v684
    %v1112 = vmul.f32 %v1111, 1.442695
    %v1113 = vpow.pop %v1112
    %v1114 = vlaneseq
    %v1115 = vshrl.u32 %v1114, 7
    %v1116 = vsub.s32 6, %v1115
    %v1117 = vrot.slane %v629, %v1116
    %1118 = vset.pattern.permute.xlu0 14
    %1119 = vperm.xlu0 %1118, %v668
    %v1120 = vpop.permute.xlu0 %1119
    %v1122 = vmul.f32 %v1117, %v1120
    %v1123 = vmul.f32 %v1113, %v1094
    %v1124 = vadd.f32 %v1123, %v1122
    %1125 = vset.pattern.permute.xlu0 14
    %1126 = vperm.xlu0 %1125, %v669
    %v1127 = vpop.permute.xlu0 %1126
    %v1129 = vmul.f32 %v1124, %v1127
    %v1130 = vsel %vm528, %v1129, 0.0
    %v1131 = vrot.slane %v1130, 4
    %v1132 = vadd.f32 %v1130, %v1131
    %v1133 = vrot.slane %v1132, 2
    %v1134 = vadd.f32 %v1132, %v1133
    %v1135 = vrot.slane %v1134, 1
    %v1136 = vadd.f32 %v1134, %v1135
    %v1137 = vlaneseq
    %v1138 = vshrl.u32 %v1137, 7
    %v1139 = vsub.s32 7, %v1138
    %v1140 = vrot.slane %v627, %v1139
    %v1141 = vmul.f32 %v1140, %v684
    %v1142 = vmul.f32 %v1141, 1.442695
    %v1143 = vpow.pop %v1142
    %v1144 = vlaneseq
    %v1145 = vshrl.u32 %v1144, 7
    %v1146 = vsub.s32 7, %v1145
    %v1147 = vrot.slane %v629, %v1146
    %1148 = vset.pattern.permute.xlu0 15
    %1149 = vperm.xlu0 %1148, %v668
    %v1150 = vpop.permute.xlu0 %1149
    %v1152 = vmul.f32 %v1147, %v1150
    %v1153 = vmul.f32 %v1143, %v1124
    %v1154 = vadd.f32 %v1153, %v1152
    %1155 = vset.pattern.permute.xlu0 15
    %1156 = vperm.xlu0 %1155, %v669
    %v1157 = vpop.permute.xlu0 %1156
    %v1159 = vmul.f32 %v1154, %v1157
    %v1160 = vsel %vm528, %v1159, 0.0
    %v1161 = vrot.slane %v1160, 4
    %v1162 = vadd.f32 %v1160, %v1161
    %v1163 = vrot.slane %v1162, 2
    %v1164 = vadd.f32 %v1162, %v1163
    %v1165 = vrot.slane %v1164, 1
    %v1166 = vadd.f32 %v1164, %v1165
    %v1167 = vsel %vm433, %v716, %v746
    %v1168 = vsel %vm452, %v1167, %v776
    %v1169 = vsel %vm471, %v1168, %v806
    %vm1170 = vcmask 1043456
    %v1171 = vsel %vm1170, %v1169, %v836
    %vm1172 = vcmask 1044480
    %v1173 = vsel %vm1172, %v1171, %v866
    %vm1174 = vcmask 1045504
    %v1175 = vsel %vm1174, %v1173, %v896
    %vm1176 = vcmask 1046528
    %v1177 = vsel %vm1176, %v1175, %v926
    %v1178 = vsel %vm433, %v956, %v986
    %v1179 = vsel %vm452, %v1178, %v1016
    %v1180 = vsel %vm471, %v1179, %v1046
    %v1181 = vsel %vm1170, %v1180, %v1076
    %v1182 = vsel %vm1172, %v1181, %v1106
    %v1183 = vsel %vm1174, %v1182, %v1136
    %v1184 = vsel %vm1176, %v1183, %v1166
    %v1185 = vld [vmem:[#allocation7] sm:$0x1]
    %v1187 = vlaneseq
    %v1188 = vshrl.u32 %v1187, 7
    %v1189 = vsub.s32 0, %v1188
    %v1190 = vrot.slane %v1185, %v1189
    %v1192 = vmul.f32 %v511, %v1190
    %v1193 = vmul.f32 %v512, %v1190
    %v1194 = vadd.f32 %v1177, %v1192
    %v1195 = vadd.f32 %v1184, %v1193
    %1198 = vrot.lane.b32.xlu0 %v642, 64
    %v1199 = vpop.permute.xlu0 %1198
    %1200 = vrot.lane.b32.xlu0 %v643, 64
    %v1201 = vpop.permute.xlu0 %1200
    %v1204 = vmul.f32 %v1194, %v1199
    %v1205 = vmul.f32 %v1195, %v1201
    %v1206 = vld [vmem:[%s10] sm:$0xff]
    %v1207 = vld [vmem:[%s10 + $0x8] sm:$0xff]
    %v1208 = vld [vmem:[%s10 + $0x10] sm:$0xff]
    %v1209 = vld [vmem:[%s10 + $0x18] sm:$0xff]
    %v1210 = vld [vmem:[%s10 + $0x20] sm:$0xff]
    %v1211 = vld [vmem:[%s10 + $0x28] sm:$0xff]
    %v1212 = vld [vmem:[%s10 + $0x30] sm:$0xff]
    %v1213 = vld [vmem:[%s10 + $0x38] sm:$0xff]
    %v1215 = vsel %vm528, %v1204, 0
    %v1218 = vsel %vm528, %v1205, 0
    %1220 = vmatprep.subr.mxu0 0.0
    %1221 = vmatpush1.msra.mxu0 %v1206
    %1222 = vmatprep.subr.mxu0 0.0
    %1223 = vmatpush1.msra.mxu0 %v1207
    %1224 = vmatprep.subr.mxu0 0.0
    %1225 = vmatpush1.msra.mxu0 %v1208
    %1226 = vmatprep.subr.mxu0 0.0
    %1227 = vmatpush1.msra.mxu0 %v1209
    %1228 = vmatprep.subr.mxu0 0.0
    %1229 = vmatpush1.msra.mxu0 %v1210
    %1230 = vmatprep.subr.mxu0 0.0
    %1231 = vmatpush1.msra.mxu0 %v1211
    %1232 = vmatprep.subr.mxu0 0.0
    %1233 = vmatpush1.msra.mxu0 %v1212
    %1234 = vmatprep.subr.mxu0 0.0
    %1235 = vmatpush1.msra.mxu0 %v1213
    %1236 = vmatprep.subr.mxu0 0.0
    %1237 = vmatpush1.msra.mxu0 0.0
    %1238 = vmatprep.subr.mxu0 0.0
    %1239 = vmatpush1.msra.mxu0 0.0
    %1240 = vmatprep.subr.mxu0 0.0
    %1241 = vmatpush1.msra.mxu0 0.0
    %1242 = vmatprep.subr.mxu0 0.0
    %1243 = vmatpush1.msra.mxu0 0.0
    %1244 = vmatprep.subr.mxu0 0.0
    %1245 = vmatpush1.msra.mxu0 0.0
    %1246 = vmatprep.subr.mxu0 0.0
    %1247 = vmatpush1.msra.mxu0 0.0
    %1248 = vmatprep.subr.mxu0 0.0
    %1249 = vmatpush1.msra.mxu0 0.0
    %1250 = vmatprep.subr.mxu0 0.0
    %1251 = vmatpush1.msra.mxu0 0.0
    %1252 = vmatprep.subr.mxu0 0.0
    %1253 = vmatpush1.msra.mxu0 0.0
    %1254 = vmatprep.subr.mxu0 0.0
    %1255 = vmatpush1.msra.mxu0 0.0
    %1256 = vmatprep.subr.mxu0 0.0
    %1257 = vmatpush1.msra.mxu0 0.0
    %1258 = vmatprep.subr.mxu0 0.0
    %1259 = vmatpush1.msra.mxu0 0.0
    %1260 = vmatprep.subr.mxu0 0.0
    %1261 = vmatpush1.msra.mxu0 0.0
    %1262 = vmatprep.subr.mxu0 0.0
    %1263 = vmatpush1.msra.mxu0 0.0
    %1264 = vmatprep.subr.mxu0 0.0
    %1265 = vmatpush1.msra.mxu0 0.0
    %1266 = vmatprep.subr.mxu0 0.0
    %1267 = vmatpush1.msra.mxu0 0.0
    %1268 = vmatprep.subr.mxu0 0.0
    %1269 = vmatpush1.msra.mxu0 0.0
    %1270 = vmatprep.subr.mxu0 0.0
    %1271 = vmatpush1.msra.mxu0 0.0
    %1272 = vmatprep.subr.mxu0 0.0
    %1273 = vmatpush1.msra.mxu0 0.0
    %1274 = vmatprep.subr.mxu0 0.0
    %1275 = vmatpush1.msra.mxu0 0.0
    %1276 = vmatprep.subr.mxu0 0.0
    %1277 = vmatpush1.msra.mxu0 0.0
    %1278 = vmatprep.subr.mxu0 0.0
    %1279 = vmatpush1.msra.mxu0 0.0
    %1280 = vmatprep.subr.mxu0 0.0
    %1281 = vmatpush1.msra.mxu0 0.0
    %1282 = vmatprep.subr.mxu0 0.0
    %1283 = vmatpush1.msra.mxu0 0.0
    %1284 = vmatprep.mubr.f32.mxu0 0.0
    %1285 = vmatmul.mubr.f32.gmra.mrb[0].mxu0 %v1215
    %v1286 = vpop.f32.mrb[0].mxu0
    %v1287 = vadd.f32 0.0, %v1286
    %v1288 = vpop.f32.mrb[0].mxu0
    %1289 = vmatprep.mubr.f32.mxu0 0.0
    %1290 = vmatmul.mubr.f32.gmra.mrb[0].mxu0 %v1218
    %v1291 = vpop.f32.mrb[0].mxu0
    %v1292 = vadd.f32 0.0, %v1291
    %v1293 = vpop.f32.mrb[0].mxu0
    %1294 = vdwg.mxu0
    %v1295 = vadd.f32 %v276, %v1287
    %v1296 = vadd.f32 %v277, %v1292
    %v1297 = vld [vmem:[#allocation9] sm:$0x1]
    %v1299 = vlaneseq
    %v1300 = vshrl.u32 %v1299, 7
    %v1301 = vsub.s32 0, %v1300
    %v1302 = vrot.slane %v1297, %v1301
    %v1304 = vadd.f32 %v1295, %v1302
    %v1305 = vadd.f32 %v1296, %v1302
    %v1306 = vld [vmem:[#allocation10] sm:$0x1]
    %v1307 = vmul.f32 %v1304, %v1304
    %v1308 = vmul.f32 %v1305, %v1305
    %v1309 = vsel %vm281, %v1307, 0.0
    %1310 = vadd.xlane.f32.xlu0 %v1309
    %v1311 = vpop.xlane.xlu0 %1310
    %v1312 = vsel %vm281, %v1308, 0.0
    %1313 = vadd.xlane.f32.xlu0 %v1312
    %v1314 = vpop.xlane.xlu0 %1313
    %v1315 = vmul.f32 %v1311, %v288
    %v1316 = vmul.f32 %v1314, %v288
    %v1317 = vadd.f32 %v1315, 1e-06
    %v1318 = vadd.f32 %v1316, 1e-06
    %v1319 = vrsqrt.pop %v1317
    %v1320 = vrsqrt.pop %v1318
    %v1321 = vmul.f32 %v1304, %v1319
    %v1322 = vmul.f32 %v1305, %v1320
    %v1324 = vlaneseq
    %v1325 = vshrl.u32 %v1324, 7
    %v1326 = vsub.s32 0, %v1325
    %v1327 = vrot.slane %v1306, %v1326
    %v1329 = vmul.f32 %v1321, %v1327
    %v1330 = vmul.f32 %v1322, %v1327
    %v1331 = vld [vmem:[#allocation12] sm:$0xff]
    %v1332 = vld [vmem:[#allocation12 + $0x8] sm:$0xff]
    %v1333 = vld [vmem:[#allocation12 + $0x10] sm:$0xff]
    %v1334 = vld [vmem:[#allocation12 + $0x18] sm:$0xff]
    %v1336 = vsel %vm281, %v1329, 0
    %v1339 = vsel %vm281, %v1330, 0
    %1341 = vmatprep.subr.mxu0 0.0
    %1342 = vmatpush1.msra.mxu0 %v1331
    %1343 = vmatprep.subr.mxu0 0.0
    %1344 = vmatpush1.msra.mxu0 %v1332
    %1345 = vmatprep.subr.mxu0 0.0
    %1346 = vmatpush1.msra.mxu0 %v1333
    %1347 = vmatprep.subr.mxu0 0.0
    %1348 = vmatpush1.msra.mxu0 %v1334
    %1349 = vmatprep.subr.mxu0 0.0
    %1350 = vmatpush1.msra.mxu0 0.0
    %1351 = vmatprep.subr.mxu0 0.0
    %1352 = vmatpush1.msra.mxu0 0.0
    %1353 = vmatprep.subr.mxu0 0.0
    %1354 = vmatpush1.msra.mxu0 0.0
    %1355 = vmatprep.subr.mxu0 0.0
    %1356 = vmatpush1.msra.mxu0 0.0
    %1357 = vmatprep.subr.mxu0 0.0
    %1358 = vmatpush1.msra.mxu0 0.0
    %1359 = vmatprep.subr.mxu0 0.0
    %1360 = vmatpush1.msra.mxu0 0.0
    %1361 = vmatprep.subr.mxu0 0.0
    %1362 = vmatpush1.msra.mxu0 0.0
    %1363 = vmatprep.subr.mxu0 0.0
    %1364 = vmatpush1.msra.mxu0 0.0
    %1365 = vmatprep.subr.mxu0 0.0
    %1366 = vmatpush1.msra.mxu0 0.0
    %1367 = vmatprep.subr.mxu0 0.0
    %1368 = vmatpush1.msra.mxu0 0.0
    %1369 = vmatprep.subr.mxu0 0.0
    %1370 = vmatpush1.msra.mxu0 0.0
    %1371 = vmatprep.subr.mxu0 0.0
    %1372 = vmatpush1.msra.mxu0 0.0
    %1373 = vmatprep.subr.mxu0 0.0
    %1374 = vmatpush1.msra.mxu0 0.0
    %1375 = vmatprep.subr.mxu0 0.0
    %1376 = vmatpush1.msra.mxu0 0.0
    %1377 = vmatprep.subr.mxu0 0.0
    %1378 = vmatpush1.msra.mxu0 0.0
    %1379 = vmatprep.subr.mxu0 0.0
    %1380 = vmatpush1.msra.mxu0 0.0
    %1381 = vmatprep.subr.mxu0 0.0
    %1382 = vmatpush1.msra.mxu0 0.0
    %1383 = vmatprep.subr.mxu0 0.0
    %1384 = vmatpush1.msra.mxu0 0.0
    %1385 = vmatprep.subr.mxu0 0.0
    %1386 = vmatpush1.msra.mxu0 0.0
    %1387 = vmatprep.subr.mxu0 0.0
    %1388 = vmatpush1.msra.mxu0 0.0
    %1389 = vmatprep.subr.mxu0 0.0
    %1390 = vmatpush1.msra.mxu0 0.0
    %1391 = vmatprep.subr.mxu0 0.0
    %1392 = vmatpush1.msra.mxu0 0.0
    %1393 = vmatprep.subr.mxu0 0.0
    %1394 = vmatpush1.msra.mxu0 0.0
    %1395 = vmatprep.subr.mxu0 0.0
    %1396 = vmatpush1.msra.mxu0 0.0
    %1397 = vmatprep.subr.mxu0 0.0
    %1398 = vmatpush1.msra.mxu0 0.0
    %1399 = vmatprep.subr.mxu0 0.0
    %1400 = vmatpush1.msra.mxu0 0.0
    %1401 = vmatprep.subr.mxu0 0.0
    %1402 = vmatpush1.msra.mxu0 0.0
    %1403 = vmatprep.subr.mxu0 0.0
    %1404 = vmatpush1.msra.mxu0 0.0
    %1405 = vmatprep.mubr.f32.mxu0 0.0
    %1406 = vmatmul.mubr.f32.gmra.mrb[0].mxu0 %v1336
    %v1407 = vpop.f32.mrb[0].mxu0
    %v1408 = vadd.f32 0.0, %v1407
    %v1409 = vpop.f32.mrb[0].mxu0
    %1410 = vmatprep.mubr.f32.mxu0 0.0
    %1411 = vmatmul.mubr.f32.gmra.mrb[0].mxu0 %v1339
    %v1412 = vpop.f32.mrb[0].mxu0
    %v1413 = vadd.f32 0.0, %v1412
    %v1414 = vpop.f32.mrb[0].mxu0
    %1415 = vdwg.mxu0
    %v1416 = vsub.f32 0.0, %v1408
    %v1417 = vsub.f32 0.0, %v1413
    %v1418 = vmul.f32 %v1416, 1.442695
    %v1419 = vpow.pop %v1418
    %v1420 = vmul.f32 %v1417, 1.442695
    %v1421 = vpow.pop %v1420
    %v1422 = vadd.f32 %v1419, 1.0
    %v1423 = vadd.f32 %v1421, 1.0
    %v1424 = vrcp.pop %v1422
    %v1425 = vmul.f32 1.0, %v1424
    %v1426 = vrcp.pop %v1423
    %v1427 = vmul.f32 1.0, %v1426
    %v1428 = vmul.f32 %v1408, %v1425
    %v1429 = vmul.f32 %v1413, %v1427
    %1432 = vrot.lane.b32.xlu0 %v1408, 64
    %v1433 = vpop.permute.xlu0 %1432
    %1434 = vrot.lane.b32.xlu0 %v1413, 64
    %v1435 = vpop.permute.xlu0 %1434
    %v1438 = vmul.f32 %v1428, %v1433
    %v1439 = vmul.f32 %v1429, %v1435
    %v1440 = vld [vmem:[%s14] sm:$0xff]
    %v1441 = vld [vmem:[%s14 + $0x8] sm:$0xff]
    %v1442 = vld [vmem:[%s14 + $0x10] sm:$0xff]
    %v1443 = vld [vmem:[%s14 + $0x18] sm:$0xff]
    %v1444 = vld [vmem:[%s14 + $0x20] sm:$0xff]
    %v1445 = vld [vmem:[%s14 + $0x28] sm:$0xff]
    %v1446 = vld [vmem:[%s14 + $0x30] sm:$0xff]
    %v1447 = vld [vmem:[%s14 + $0x38] sm:$0xff]
    %v1449 = vsel %vm528, %v1438, 0
    %v1452 = vsel %vm528, %v1439, 0
    %1454 = vmatprep.subr.mxu0 0.0
    %1455 = vmatpush1.msra.mxu0 %v1440
    %1456 = vmatprep.subr.mxu0 0.0
    %1457 = vmatpush1.msra.mxu0 %v1441
    %1458 = vmatprep.subr.mxu0 0.0
    %1459 = vmatpush1.msra.mxu0 %v1442
    %1460 = vmatprep.subr.mxu0 0.0
    %1461 = vmatpush1.msra.mxu0 %v1443
    %1462 = vmatprep.subr.mxu0 0.0
    %1463 = vmatpush1.msra.mxu0 %v1444
    %1464 = vmatprep.subr.mxu0 0.0
    %1465 = vmatpush1.msra.mxu0 %v1445
    %1466 = vmatprep.subr.mxu0 0.0
    %1467 = vmatpush1.msra.mxu0 %v1446
    %1468 = vmatprep.subr.mxu0 0.0
    %1469 = vmatpush1.msra.mxu0 %v1447
    %1470 = vmatprep.subr.mxu0 0.0
    %1471 = vmatpush1.msra.mxu0 0.0
    %1472 = vmatprep.subr.mxu0 0.0
    %1473 = vmatpush1.msra.mxu0 0.0
    %1474 = vmatprep.subr.mxu0 0.0
    %1475 = vmatpush1.msra.mxu0 0.0
    %1476 = vmatprep.subr.mxu0 0.0
    %1477 = vmatpush1.msra.mxu0 0.0
    %1478 = vmatprep.subr.mxu0 0.0
    %1479 = vmatpush1.msra.mxu0 0.0
    %1480 = vmatprep.subr.mxu0 0.0
    %1481 = vmatpush1.msra.mxu0 0.0
    %1482 = vmatprep.subr.mxu0 0.0
    %1483 = vmatpush1.msra.mxu0 0.0
    %1484 = vmatprep.subr.mxu0 0.0
    %1485 = vmatpush1.msra.mxu0 0.0
    %1486 = vmatprep.subr.mxu0 0.0
    %1487 = vmatpush1.msra.mxu0 0.0
    %1488 = vmatprep.subr.mxu0 0.0
    %1489 = vmatpush1.msra.mxu0 0.0
    %1490 = vmatprep.subr.mxu0 0.0
    %1491 = vmatpush1.msra.mxu0 0.0
    %1492 = vmatprep.subr.mxu0 0.0
    %1493 = vmatpush1.msra.mxu0 0.0
    %1494 = vmatprep.subr.mxu0 0.0
    %1495 = vmatpush1.msra.mxu0 0.0
    %1496 = vmatprep.subr.mxu0 0.0
    %1497 = vmatpush1.msra.mxu0 0.0
    %1498 = vmatprep.subr.mxu0 0.0
    %1499 = vmatpush1.msra.mxu0 0.0
    %1500 = vmatprep.subr.mxu0 0.0
    %1501 = vmatpush1.msra.mxu0 0.0
    %1502 = vmatprep.subr.mxu0 0.0
    %1503 = vmatpush1.msra.mxu0 0.0
    %1504 = vmatprep.subr.mxu0 0.0
    %1505 = vmatpush1.msra.mxu0 0.0
    %1506 = vmatprep.subr.mxu0 0.0
    %1507 = vmatpush1.msra.mxu0 0.0
    %1508 = vmatprep.subr.mxu0 0.0
    %1509 = vmatpush1.msra.mxu0 0.0
    %1510 = vmatprep.subr.mxu0 0.0
    %1511 = vmatpush1.msra.mxu0 0.0
    %1512 = vmatprep.subr.mxu0 0.0
    %1513 = vmatpush1.msra.mxu0 0.0
    %1514 = vmatprep.subr.mxu0 0.0
    %1515 = vmatpush1.msra.mxu0 0.0
    %1516 = vmatprep.subr.mxu0 0.0
    %1517 = vmatpush1.msra.mxu0 0.0
    %1518 = vmatprep.mubr.f32.mxu0 0.0
    %1519 = vmatmul.mubr.f32.gmra.mrb[0].mxu0 %v1449
    %v1520 = vpop.f32.mrb[0].mxu0
    %v1521 = vadd.f32 0.0, %v1520
    %v1522 = vpop.f32.mrb[0].mxu0
    %1523 = vmatprep.mubr.f32.mxu0 0.0
    %1524 = vmatmul.mubr.f32.gmra.mrb[0].mxu0 %v1452
    %v1525 = vpop.f32.mrb[0].mxu0
    %v1526 = vadd.f32 0.0, %v1525
    %v1527 = vpop.f32.mrb[0].mxu0
    %1528 = vdwg.mxu0
    %v1529 = vadd.f32 %v1304, %v1521
    %v1530 = vadd.f32 %v1305, %v1526
    %v1531 = vld [vmem:[#allocation13] sm:$0x1]
    %v1532 = vmul.f32 %v1529, %v1529
    %v1533 = vmul.f32 %v1530, %v1530
    %v1534 = vsel %vm281, %v1532, 0.0
    %1535 = vadd.xlane.f32.xlu0 %v1534
    %v1536 = vpop.xlane.xlu0 %1535
    %v1537 = vsel %vm281, %v1533, 0.0
    %1538 = vadd.xlane.f32.xlu0 %v1537
    %v1539 = vpop.xlane.xlu0 %1538
    %v1540 = vmul.f32 %v1536, %v288
    %v1541 = vmul.f32 %v1539, %v288
    %v1542 = vadd.f32 %v1540, 1e-06
    %v1543 = vadd.f32 %v1541, 1e-06
    %v1544 = vrsqrt.pop %v1542
    %v1545 = vrsqrt.pop %v1543
    %v1546 = vmul.f32 %v1529, %v1544
    %v1547 = vmul.f32 %v1530, %v1545
    %v1549 = vlaneseq
    %v1550 = vshrl.u32 %v1549, 7
    %v1551 = vsub.s32 0, %v1550
    %v1552 = vrot.slane %v1531, %v1551
    %v1554 = vmul.f32 %v1546, %v1552
    %v1555 = vmul.f32 %v1547, %v1552
    %v1556 = vld [vmem:[#allocation15] sm:$0xff]
    %v1557 = vld [vmem:[#allocation15 + $0x8] sm:$0xff]
    %v1558 = vld [vmem:[#allocation15 + $0x10] sm:$0xff]
    %v1559 = vld [vmem:[#allocation15 + $0x18] sm:$0xff]
    %v1560 = vld [vmem:[#allocation16] sm:$0x1]
    %v1562 = vlaneseq
    %v1563 = vshrl.u32 %v1562, 7
    %v1564 = vsub.s32 0, %v1563
    %v1565 = vrot.slane %v1560, %v1564
    %v1568 = vsel %vm281, %v1554, 0
    %v1571 = vsel %vm281, %v1555, 0
    %1573 = vmatprep.subr.mxu0 0.0
    %1574 = vmatpush1.msra.mxu0 %v1556
    %1575 = vmatprep.subr.mxu0 0.0
    %1576 = vmatpush1.msra.mxu0 %v1557
    %1577 = vmatprep.subr.mxu0 0.0
    %1578 = vmatpush1.msra.mxu0 %v1558
    %1579 = vmatprep.subr.mxu0 0.0
    %1580 = vmatpush1.msra.mxu0 %v1559
    %1581 = vmatprep.subr.mxu0 0.0
    %1582 = vmatpush1.msra.mxu0 0.0
    %1583 = vmatprep.subr.mxu0 0.0
    %1584 = vmatpush1.msra.mxu0 0.0
    %1585 = vmatprep.subr.mxu0 0.0
    %1586 = vmatpush1.msra.mxu0 0.0
    %1587 = vmatprep.subr.mxu0 0.0
    %1588 = vmatpush1.msra.mxu0 0.0
    %1589 = vmatprep.subr.mxu0 0.0
    %1590 = vmatpush1.msra.mxu0 0.0
    %1591 = vmatprep.subr.mxu0 0.0
    %1592 = vmatpush1.msra.mxu0 0.0
    %1593 = vmatprep.subr.mxu0 0.0
    %1594 = vmatpush1.msra.mxu0 0.0
    %1595 = vmatprep.subr.mxu0 0.0
    %1596 = vmatpush1.msra.mxu0 0.0
    %1597 = vmatprep.subr.mxu0 0.0
    %1598 = vmatpush1.msra.mxu0 0.0
    %1599 = vmatprep.subr.mxu0 0.0
    %1600 = vmatpush1.msra.mxu0 0.0
    %1601 = vmatprep.subr.mxu0 0.0
    %1602 = vmatpush1.msra.mxu0 0.0
    %1603 = vmatprep.subr.mxu0 0.0
    %1604 = vmatpush1.msra.mxu0 0.0
    %1605 = vmatprep.subr.mxu0 0.0
    %1606 = vmatpush1.msra.mxu0 0.0
    %1607 = vmatprep.subr.mxu0 0.0
    %1608 = vmatpush1.msra.mxu0 0.0
    %1609 = vmatprep.subr.mxu0 0.0
    %1610 = vmatpush1.msra.mxu0 0.0
    %1611 = vmatprep.subr.mxu0 0.0
    %1612 = vmatpush1.msra.mxu0 0.0
    %1613 = vmatprep.subr.mxu0 0.0
    %1614 = vmatpush1.msra.mxu0 0.0
    %1615 = vmatprep.subr.mxu0 0.0
    %1616 = vmatpush1.msra.mxu0 0.0
    %1617 = vmatprep.subr.mxu0 0.0
    %1618 = vmatpush1.msra.mxu0 0.0
    %1619 = vmatprep.subr.mxu0 0.0
    %1620 = vmatpush1.msra.mxu0 0.0
    %1621 = vmatprep.subr.mxu0 0.0
    %1622 = vmatpush1.msra.mxu0 0.0
    %1623 = vmatprep.subr.mxu0 0.0
    %1624 = vmatpush1.msra.mxu0 0.0
    %1625 = vmatprep.subr.mxu0 0.0
    %1626 = vmatpush1.msra.mxu0 0.0
    %1627 = vmatprep.subr.mxu0 0.0
    %1628 = vmatpush1.msra.mxu0 0.0
    %1629 = vmatprep.subr.mxu0 0.0
    %1630 = vmatpush1.msra.mxu0 0.0
    %1631 = vmatprep.subr.mxu0 0.0
    %1632 = vmatpush1.msra.mxu0 0.0
    %1633 = vmatprep.subr.mxu0 0.0
    %1634 = vmatpush1.msra.mxu0 0.0
    %1635 = vmatprep.subr.mxu0 0.0
    %1636 = vmatpush1.msra.mxu0 0.0
    %1637 = vmatprep.mubr.f32.mxu0 0.0
    %1638 = vmatmul.mubr.f32.gmra.mrb[0].mxu0 %v1568
    %v1639 = vpop.f32.mrb[0].mxu0
    %v1640 = vadd.f32 %v1565, %v1639
    %v1641 = vpop.f32.mrb[0].mxu0
    %1642 = vmatprep.mubr.f32.mxu0 0.0
    %1643 = vmatmul.mubr.f32.gmra.mrb[0].mxu0 %v1571
    %v1644 = vpop.f32.mrb[0].mxu0
    %v1645 = vadd.f32 %v1565, %v1644
    %v1646 = vpop.f32.mrb[0].mxu0
    %1647 = vdwg.mxu0
    %v1648 = vlaneseq
    %v1649 = vand.u32 %v1648, 127
    %vm1650 = vcmp.le.s32.totalorder %v1649, %v399
    %1652 = vrot.lane.b32.xlu0 %v1640, 96
    %v1653 = vpop.permute.xlu0 %1652
    %vm1654 = vcmask 64512
    %v1655 = vsel %vm1654, %v1640, 0
    %v1657 = vsel %vm1654, %v1653, 0
    %1659 = vmatprep.subr.mxu0 0.0
    %1660 = vmatpush1.xpose.msra.mxu0 %v1657
    %1661 = vmatprep.subr.mxu0 0.0
    %1662 = vmatpush1.xpose.msra.mxu0 0.0
    %1663 = vmatprep.subr.mxu0 0.0
    %1664 = vmatpush1.xpose.msra.mxu0 0.0
    %1665 = vmatprep.subr.mxu0 0.0
    %1666 = vmatpush1.xpose.msra.mxu0 0.0
    %1667 = vmatprep.subr.mxu0 0.0
    %1668 = vmatpush1.xpose.msra.mxu0 0.0
    %1669 = vmatprep.subr.mxu0 0.0
    %1670 = vmatpush1.xpose.msra.mxu0 0.0
    %1671 = vmatprep.subr.mxu0 0.0
    %1672 = vmatpush1.xpose.msra.mxu0 0.0
    %1673 = vmatprep.subr.mxu0 0.0
    %1674 = vmatpush1.xpose.msra.mxu0 0.0
    %1675 = vmatprep.subr.mxu0 0.0
    %1676 = vmatpush1.xpose.msra.mxu0 0.0
    %1677 = vmatprep.subr.mxu0 0.0
    %1678 = vmatpush1.xpose.msra.mxu0 0.0
    %1679 = vmatprep.subr.mxu0 0.0
    %1680 = vmatpush1.xpose.msra.mxu0 0.0
    %1681 = vmatprep.subr.mxu0 0.0
    %1682 = vmatpush1.xpose.msra.mxu0 0.0
    %1683 = vmatprep.subr.mxu0 0.0
    %1684 = vmatpush1.xpose.msra.mxu0 0.0
    %1685 = vmatprep.subr.mxu0 0.0
    %1686 = vmatpush1.xpose.msra.mxu0 0.0
    %1687 = vmatprep.subr.mxu0 0.0
    %1688 = vmatpush1.xpose.msra.mxu0 0.0
    %1689 = vmatprep.subr.mxu0 0.0
    %1690 = vmatpush1.xpose.msra.mxu0 0.0
    %1691 = vmatprep.subr.mxu0 0.0
    %1692 = vmatpush1.xpose.msra.mxu0 0.0
    %1693 = vmatprep.subr.mxu0 0.0
    %1694 = vmatpush1.xpose.msra.mxu0 0.0
    %1695 = vmatprep.subr.mxu0 0.0
    %1696 = vmatpush1.xpose.msra.mxu0 0.0
    %1697 = vmatprep.subr.mxu0 0.0
    %1698 = vmatpush1.xpose.msra.mxu0 0.0
    %1699 = vmatprep.subr.mxu0 0.0
    %1700 = vmatpush1.xpose.msra.mxu0 0.0
    %1701 = vmatprep.subr.mxu0 0.0
    %1702 = vmatpush1.xpose.msra.mxu0 0.0
    %1703 = vmatprep.subr.mxu0 0.0
    %1704 = vmatpush1.xpose.msra.mxu0 0.0
    %1705 = vmatprep.subr.mxu0 0.0
    %1706 = vmatpush1.xpose.msra.mxu0 0.0
    %1707 = vmatprep.subr.mxu0 0.0
    %1708 = vmatpush1.xpose.msra.mxu0 0.0
    %1709 = vmatprep.subr.mxu0 0.0
    %1710 = vmatpush1.xpose.msra.mxu0 0.0
    %1711 = vmatprep.subr.mxu0 0.0
    %1712 = vmatpush1.xpose.msra.mxu0 0.0
    %1713 = vmatprep.subr.mxu0 0.0
    %1714 = vmatpush1.xpose.msra.mxu0 0.0
    %1715 = vmatprep.subr.mxu0 0.0
    %1716 = vmatpush1.xpose.msra.mxu0 0.0
    %1717 = vmatprep.subr.mxu0 0.0
    %1718 = vmatpush1.xpose.msra.mxu0 0.0
    %1719 = vmatprep.subr.mxu0 0.0
    %1720 = vmatpush1.xpose.msra.mxu0 0.0
    %1721 = vmatprep.subr.mxu0 0.0
    %1722 = vmatpush1.xpose.msra.mxu0 0.0
    %1723 = vmatprep.mubr.f32.mxu0 0.0
    %1724 = vmatmul.mubr.f32.gmra.mrb[0].mxu0 %v1655
    %v1725 = vpop.f32.mrb[0].mxu0
    %v1726 = vadd.f32 0.0, %v1725
    %v1727 = vpop.f32.mrb[0].mxu0
    %1728 = vdwg.mxu0
    %v1729 = vmul.f32 %v1726, 0.35355338
    %v1730 = vsel %vm1650, %v1729, -3.4028235e+38
    %v1731 = vsel %vm1654, %v1730, -inf
    %1732 = vmax.xlane.f32.xlu0 %v1731
    %v1733 = vpop.xlane.xlu0 %1732
    %v1734 = vsub.f32 %v1730, %v1733
    %v1735 = vmul.f32 %v1734, 1.442695
    %v1736 = vpow.pop %v1735
    %v1737 = vsel %vm1654, %v1736, 0.0
    %1738 = vadd.xlane.f32.xlu0 %v1737
    %v1739 = vpop.xlane.xlu0 %1738
    %v1740 = vrcp.pop %v1739
    %v1741 = vmul.f32 %v1736, %v1740
    %1742 = vrot.lane.b32.xlu0 %v1640, 64
    %v1743 = vpop.permute.xlu0 %1742
    %v1746 = vsel %vm1654, %v1741, 0
    %1748 = vmatprep.subr.mxu0 0.0
    %1749 = vmatpush1.msra.mxu0 %v1743
    %1750 = vmatprep.subr.mxu0 0.0
    %1751 = vmatpush1.msra.mxu0 0.0
    %1752 = vmatprep.subr.mxu0 0.0
    %1753 = vmatpush1.msra.mxu0 0.0
    %1754 = vmatprep.subr.mxu0 0.0
    %1755 = vmatpush1.msra.mxu0 0.0
    %1756 = vmatprep.subr.mxu0 0.0
    %1757 = vmatpush1.msra.mxu0 0.0
    %1758 = vmatprep.subr.mxu0 0.0
    %1759 = vmatpush1.msra.mxu0 0.0
    %1760 = vmatprep.subr.mxu0 0.0
    %1761 = vmatpush1.msra.mxu0 0.0
    %1762 = vmatprep.subr.mxu0 0.0
    %1763 = vmatpush1.msra.mxu0 0.0
    %1764 = vmatprep.subr.mxu0 0.0
    %1765 = vmatpush1.msra.mxu0 0.0
    %1766 = vmatprep.subr.mxu0 0.0
    %1767 = vmatpush1.msra.mxu0 0.0
    %1768 = vmatprep.subr.mxu0 0.0
    %1769 = vmatpush1.msra.mxu0 0.0
    %1770 = vmatprep.subr.mxu0 0.0
    %1771 = vmatpush1.msra.mxu0 0.0
    %1772 = vmatprep.subr.mxu0 0.0
    %1773 = vmatpush1.msra.mxu0 0.0
    %1774 = vmatprep.subr.mxu0 0.0
    %1775 = vmatpush1.msra.mxu0 0.0
    %1776 = vmatprep.subr.mxu0 0.0
    %1777 = vmatpush1.msra.mxu0 0.0
    %1778 = vmatprep.subr.mxu0 0.0
    %1779 = vmatpush1.msra.mxu0 0.0
    %1780 = vmatprep.subr.mxu0 0.0
    %1781 = vmatpush1.msra.mxu0 0.0
    %1782 = vmatprep.subr.mxu0 0.0
    %1783 = vmatpush1.msra.mxu0 0.0
    %1784 = vmatprep.subr.mxu0 0.0
    %1785 = vmatpush1.msra.mxu0 0.0
    %1786 = vmatprep.subr.mxu0 0.0
    %1787 = vmatpush1.msra.mxu0 0.0
    %1788 = vmatprep.subr.mxu0 0.0
    %1789 = vmatpush1.msra.mxu0 0.0
    %1790 = vmatprep.subr.mxu0 0.0
    %1791 = vmatpush1.msra.mxu0 0.0
    %1792 = vmatprep.subr.mxu0 0.0
    %1793 = vmatpush1.msra.mxu0 0.0
    %1794 = vmatprep.subr.mxu0 0.0
    %1795 = vmatpush1.msra.mxu0 0.0
    %1796 = vmatprep.subr.mxu0 0.0
    %1797 = vmatpush1.msra.mxu0 0.0
    %1798 = vmatprep.subr.mxu0 0.0
    %1799 = vmatpush1.msra.mxu0 0.0
    %1800 = vmatprep.subr.mxu0 0.0
    %1801 = vmatpush1.msra.mxu0 0.0
    %1802 = vmatprep.subr.mxu0 0.0
    %1803 = vmatpush1.msra.mxu0 0.0
    %1804 = vmatprep.subr.mxu0 0.0
    %1805 = vmatpush1.msra.mxu0 0.0
    %1806 = vmatprep.subr.mxu0 0.0
    %1807 = vmatpush1.msra.mxu0 0.0
    %1808 = vmatprep.subr.mxu0 0.0
    %1809 = vmatpush1.msra.mxu0 0.0
    %1810 = vmatprep.subr.mxu0 0.0
    %1811 = vmatpush1.msra.mxu0 0.0
    %1812 = vmatprep.mubr.f32.mxu0 0.0
    %1813 = vmatmul.mubr.f32.gmra.mrb[0].mxu0 %v1746
    %v1814 = vpop.f32.mrb[0].mxu0
    %v1815 = vadd.f32 0.0, %v1814
    %v1816 = vpop.f32.mrb[0].mxu0
    %1817 = vdwg.mxu0
    %1818 = vrot.lane.b32.xlu0 %v1640, 120
    %v1819 = vpop.permute.xlu0 %1818
    %1820 = vrot.lane.b32.xlu0 %v1640, 88
    %v1821 = vpop.permute.xlu0 %1820
    %v1822 = vsel %vm1654, %v1819, 0
    %v1824 = vsel %vm1654, %v1821, 0
    %1826 = vmatprep.subr.mxu0 0.0
    %1827 = vmatpush1.xpose.msra.mxu0 %v1824
    %1828 = vmatprep.subr.mxu0 0.0
    %1829 = vmatpush1.xpose.msra.mxu0 0.0
    %1830 = vmatprep.subr.mxu0 0.0
    %1831 = vmatpush1.xpose.msra.mxu0 0.0
    %1832 = vmatprep.subr.mxu0 0.0
    %1833 = vmatpush1.xpose.msra.mxu0 0.0
    %1834 = vmatprep.subr.mxu0 0.0
    %1835 = vmatpush1.xpose.msra.mxu0 0.0
    %1836 = vmatprep.subr.mxu0 0.0
    %1837 = vmatpush1.xpose.msra.mxu0 0.0
    %1838 = vmatprep.subr.mxu0 0.0
    %1839 = vmatpush1.xpose.msra.mxu0 0.0
    %1840 = vmatprep.subr.mxu0 0.0
    %1841 = vmatpush1.xpose.msra.mxu0 0.0
    %1842 = vmatprep.subr.mxu0 0.0
    %1843 = vmatpush1.xpose.msra.mxu0 0.0
    %1844 = vmatprep.subr.mxu0 0.0
    %1845 = vmatpush1.xpose.msra.mxu0 0.0
    %1846 = vmatprep.subr.mxu0 0.0
    %1847 = vmatpush1.xpose.msra.mxu0 0.0
    %1848 = vmatprep.subr.mxu0 0.0
    %1849 = vmatpush1.xpose.msra.mxu0 0.0
    %1850 = vmatprep.subr.mxu0 0.0
    %1851 = vmatpush1.xpose.msra.mxu0 0.0
    %1852 = vmatprep.subr.mxu0 0.0
    %1853 = vmatpush1.xpose.msra.mxu0 0.0
    %1854 = vmatprep.subr.mxu0 0.0
    %1855 = vmatpush1.xpose.msra.mxu0 0.0
    %1856 = vmatprep.subr.mxu0 0.0
    %1857 = vmatpush1.xpose.msra.mxu0 0.0
    %1858 = vmatprep.subr.mxu0 0.0
    %1859 = vmatpush1.xpose.msra.mxu0 0.0
    %1860 = vmatprep.subr.mxu0 0.0
    %1861 = vmatpush1.xpose.msra.mxu0 0.0
    %1862 = vmatprep.subr.mxu0 0.0
    %1863 = vmatpush1.xpose.msra.mxu0 0.0
    %1864 = vmatprep.subr.mxu0 0.0
    %1865 = vmatpush1.xpose.msra.mxu0 0.0
    %1866 = vmatprep.subr.mxu0 0.0
    %1867 = vmatpush1.xpose.msra.mxu0 0.0
    %1868 = vmatprep.subr.mxu0 0.0
    %1869 = vmatpush1.xpose.msra.mxu0 0.0
    %1870 = vmatprep.subr.mxu0 0.0
    %1871 = vmatpush1.xpose.msra.mxu0 0.0
    %1872 = vmatprep.subr.mxu0 0.0
    %1873 = vmatpush1.xpose.msra.mxu0 0.0
    %1874 = vmatprep.subr.mxu0 0.0
    %1875 = vmatpush1.xpose.msra.mxu0 0.0
    %1876 = vmatprep.subr.mxu0 0.0
    %1877 = vmatpush1.xpose.msra.mxu0 0.0
    %1878 = vmatprep.subr.mxu0 0.0
    %1879 = vmatpush1.xpose.msra.mxu0 0.0
    %1880 = vmatprep.subr.mxu0 0.0
    %1881 = vmatpush1.xpose.msra.mxu0 0.0
    %1882 = vmatprep.subr.mxu0 0.0
    %1883 = vmatpush1.xpose.msra.mxu0 0.0
    %1884 = vmatprep.subr.mxu0 0.0
    %1885 = vmatpush1.xpose.msra.mxu0 0.0
    %1886 = vmatprep.subr.mxu0 0.0
    %1887 = vmatpush1.xpose.msra.mxu0 0.0
    %1888 = vmatprep.subr.mxu0 0.0
    %1889 = vmatpush1.xpose.msra.mxu0 0.0
    %1890 = vmatprep.mubr.f32.mxu0 0.0
    %1891 = vmatmul.mubr.f32.gmra.mrb[0].mxu0 %v1822
    %v1892 = vpop.f32.mrb[0].mxu0
    %v1893 = vadd.f32 0.0, %v1892
    %v1894 = vpop.f32.mrb[0].mxu0
    %1895 = vdwg.mxu0
    %v1896 = vmul.f32 %v1893, 0.35355338
    %v1897 = vsel %vm1650, %v1896, -3.4028235e+38
    %v1898 = vsel %vm1654, %v1897, -inf
    %1899 = vmax.xlane.f32.xlu0 %v1898
    %v1900 = vpop.xlane.xlu0 %1899
    %v1901 = vsub.f32 %v1897, %v1900
    %v1902 = vmul.f32 %v1901, 1.442695
    %v1903 = vpow.pop %v1902
    %v1904 = vsel %vm1654, %v1903, 0.0
    %1905 = vadd.xlane.f32.xlu0 %v1904
    %v1906 = vpop.xlane.xlu0 %1905
    %v1907 = vrcp.pop %v1906
    %v1908 = vmul.f32 %v1903, %v1907
    %1909 = vrot.lane.b32.xlu0 %v1640, 56
    %v1910 = vpop.permute.xlu0 %1909
    %v1913 = vsel %vm1654, %v1908, 0
    %1915 = vmatprep.subr.mxu0 0.0
    %1916 = vmatpush1.msra.mxu0 %v1910
    %1917 = vmatprep.subr.mxu0 0.0
    %1918 = vmatpush1.msra.mxu0 0.0
    %1919 = vmatprep.subr.mxu0 0.0
    %1920 = vmatpush1.msra.mxu0 0.0
    %1921 = vmatprep.subr.mxu0 0.0
    %1922 = vmatpush1.msra.mxu0 0.0
    %1923 = vmatprep.subr.mxu0 0.0
    %1924 = vmatpush1.msra.mxu0 0.0
    %1925 = vmatprep.subr.mxu0 0.0
    %1926 = vmatpush1.msra.mxu0 0.0
    %1927 = vmatprep.subr.mxu0 0.0
    %1928 = vmatpush1.msra.mxu0 0.0
    %1929 = vmatprep.subr.mxu0 0.0
    %1930 = vmatpush1.msra.mxu0 0.0
    %1931 = vmatprep.subr.mxu0 0.0
    %1932 = vmatpush1.msra.mxu0 0.0
    %1933 = vmatprep.subr.mxu0 0.0
    %1934 = vmatpush1.msra.mxu0 0.0
    %1935 = vmatprep.subr.mxu0 0.0
    %1936 = vmatpush1.msra.mxu0 0.0
    %1937 = vmatprep.subr.mxu0 0.0
    %1938 = vmatpush1.msra.mxu0 0.0
    %1939 = vmatprep.subr.mxu0 0.0
    %1940 = vmatpush1.msra.mxu0 0.0
    %1941 = vmatprep.subr.mxu0 0.0
    %1942 = vmatpush1.msra.mxu0 0.0
    %1943 = vmatprep.subr.mxu0 0.0
    %1944 = vmatpush1.msra.mxu0 0.0
    %1945 = vmatprep.subr.mxu0 0.0
    %1946 = vmatpush1.msra.mxu0 0.0
    %1947 = vmatprep.subr.mxu0 0.0
    %1948 = vmatpush1.msra.mxu0 0.0
    %1949 = vmatprep.subr.mxu0 0.0
    %1950 = vmatpush1.msra.mxu0 0.0
    %1951 = vmatprep.subr.mxu0 0.0
    %1952 = vmatpush1.msra.mxu0 0.0
    %1953 = vmatprep.subr.mxu0 0.0
    %1954 = vmatpush1.msra.mxu0 0.0
    %1955 = vmatprep.subr.mxu0 0.0
    %1956 = vmatpush1.msra.mxu0 0.0
    %1957 = vmatprep.subr.mxu0 0.0
    %1958 = vmatpush1.msra.mxu0 0.0
    %1959 = vmatprep.subr.mxu0 0.0
    %1960 = vmatpush1.msra.mxu0 0.0
    %1961 = vmatprep.subr.mxu0 0.0
    %1962 = vmatpush1.msra.mxu0 0.0
    %1963 = vmatprep.subr.mxu0 0.0
    %1964 = vmatpush1.msra.mxu0 0.0
    %1965 = vmatprep.subr.mxu0 0.0
    %1966 = vmatpush1.msra.mxu0 0.0
    %1967 = vmatprep.subr.mxu0 0.0
    %1968 = vmatpush1.msra.mxu0 0.0
    %1969 = vmatprep.subr.mxu0 0.0
    %1970 = vmatpush1.msra.mxu0 0.0
    %1971 = vmatprep.subr.mxu0 0.0
    %1972 = vmatpush1.msra.mxu0 0.0
    %1973 = vmatprep.subr.mxu0 0.0
    %1974 = vmatpush1.msra.mxu0 0.0
    %1975 = vmatprep.subr.mxu0 0.0
    %1976 = vmatpush1.msra.mxu0 0.0
    %1977 = vmatprep.subr.mxu0 0.0
    %1978 = vmatpush1.msra.mxu0 0.0
    %1979 = vmatprep.mubr.f32.mxu0 0.0
    %1980 = vmatmul.mubr.f32.gmra.mrb[0].mxu0 %v1913
    %v1981 = vpop.f32.mrb[0].mxu0
    %v1982 = vadd.f32 0.0, %v1981
    %v1983 = vpop.f32.mrb[0].mxu0
    %1984 = vdwg.mxu0
    %1985 = vrot.lane.b32.xlu0 %v1640, 112
    %v1986 = vpop.permute.xlu0 %1985
    %1987 = vrot.lane.b32.xlu0 %v1640, 80
    %v1988 = vpop.permute.xlu0 %1987
    %v1989 = vsel %vm1654, %v1986, 0
    %v1991 = vsel %vm1654, %v1988, 0
    %1993 = vmatprep.subr.mxu0 0.0
    %1994 = vmatpush1.xpose.msra.mxu0 %v1991
    %1995 = vmatprep.subr.mxu0 0.0
    %1996 = vmatpush1.xpose.msra.mxu0 0.0
    %1997 = vmatprep.subr.mxu0 0.0
    %1998 = vmatpush1.xpose.msra.mxu0 0.0
    %1999 = vmatprep.subr.mxu0 0.0
    %2000 = vmatpush1.xpose.msra.mxu0 0.0
    %2001 = vmatprep.subr.mxu0 0.0
    %2002 = vmatpush1.xpose.msra.mxu0 0.0
    %2003 = vmatprep.subr.mxu0 0.0
    %2004 = vmatpush1.xpose.msra.mxu0 0.0
    %2005 = vmatprep.subr.mxu0 0.0
    %2006 = vmatpush1.xpose.msra.mxu0 0.0
    %2007 = vmatprep.subr.mxu0 0.0
    %2008 = vmatpush1.xpose.msra.mxu0 0.0
    %2009 = vmatprep.subr.mxu0 0.0
    %2010 = vmatpush1.xpose.msra.mxu0 0.0
    %2011 = vmatprep.subr.mxu0 0.0
    %2012 = vmatpush1.xpose.msra.mxu0 0.0
    %2013 = vmatprep.subr.mxu0 0.0
    %2014 = vmatpush1.xpose.msra.mxu0 0.0
    %2015 = vmatprep.subr.mxu0 0.0
    %2016 = vmatpush1.xpose.msra.mxu0 0.0
    %2017 = vmatprep.subr.mxu0 0.0
    %2018 = vmatpush1.xpose.msra.mxu0 0.0
    %2019 = vmatprep.subr.mxu0 0.0
    %2020 = vmatpush1.xpose.msra.mxu0 0.0
    %2021 = vmatprep.subr.mxu0 0.0
    %2022 = vmatpush1.xpose.msra.mxu0 0.0
    %2023 = vmatprep.subr.mxu0 0.0
    %2024 = vmatpush1.xpose.msra.mxu0 0.0
    %2025 = vmatprep.subr.mxu0 0.0
    %2026 = vmatpush1.xpose.msra.mxu0 0.0
    %2027 = vmatprep.subr.mxu0 0.0
    %2028 = vmatpush1.xpose.msra.mxu0 0.0
    %2029 = vmatprep.subr.mxu0 0.0
    %2030 = vmatpush1.xpose.msra.mxu0 0.0
    %2031 = vmatprep.subr.mxu0 0.0
    %2032 = vmatpush1.xpose.msra.mxu0 0.0
    %2033 = vmatprep.subr.mxu0 0.0
    %2034 = vmatpush1.xpose.msra.mxu0 0.0
    %2035 = vmatprep.subr.mxu0 0.0
    %2036 = vmatpush1.xpose.msra.mxu0 0.0
    %2037 = vmatprep.subr.mxu0 0.0
    %2038 = vmatpush1.xpose.msra.mxu0 0.0
    %2039 = vmatprep.subr.mxu0 0.0
    %2040 = vmatpush1.xpose.msra.mxu0 0.0
    %2041 = vmatprep.subr.mxu0 0.0
    %2042 = vmatpush1.xpose.msra.mxu0 0.0
    %2043 = vmatprep.subr.mxu0 0.0
    %2044 = vmatpush1.xpose.msra.mxu0 0.0
    %2045 = vmatprep.subr.mxu0 0.0
    %2046 = vmatpush1.xpose.msra.mxu0 0.0
    %2047 = vmatprep.subr.mxu0 0.0
    %2048 = vmatpush1.xpose.msra.mxu0 0.0
    %2049 = vmatprep.subr.mxu0 0.0
    %2050 = vmatpush1.xpose.msra.mxu0 0.0
    %2051 = vmatprep.subr.mxu0 0.0
    %2052 = vmatpush1.xpose.msra.mxu0 0.0
    %2053 = vmatprep.subr.mxu0 0.0
    %2054 = vmatpush1.xpose.msra.mxu0 0.0
    %2055 = vmatprep.subr.mxu0 0.0
    %2056 = vmatpush1.xpose.msra.mxu0 0.0
    %2057 = vmatprep.mubr.f32.mxu0 0.0
    %2058 = vmatmul.mubr.f32.gmra.mrb[0].mxu0 %v1989
    %v2059 = vpop.f32.mrb[0].mxu0
    %v2060 = vadd.f32 0.0, %v2059
    %v2061 = vpop.f32.mrb[0].mxu0
    %2062 = vdwg.mxu0
    %v2063 = vmul.f32 %v2060, 0.35355338
    %v2064 = vsel %vm1650, %v2063, -3.4028235e+38
    %v2065 = vsel %vm1654, %v2064, -inf
    %2066 = vmax.xlane.f32.xlu0 %v2065
    %v2067 = vpop.xlane.xlu0 %2066
    %v2068 = vsub.f32 %v2064, %v2067
    %v2069 = vmul.f32 %v2068, 1.442695
    %v2070 = vpow.pop %v2069
    %v2071 = vsel %vm1654, %v2070, 0.0
    %2072 = vadd.xlane.f32.xlu0 %v2071
    %v2073 = vpop.xlane.xlu0 %2072
    %v2074 = vrcp.pop %v2073
    %v2075 = vmul.f32 %v2070, %v2074
    %2076 = vrot.lane.b32.xlu0 %v1640, 48
    %v2077 = vpop.permute.xlu0 %2076
    %v2080 = vsel %vm1654, %v2075, 0
    %2082 = vmatprep.subr.mxu0 0.0
    %2083 = vmatpush1.msra.mxu0 %v2077
    %2084 = vmatprep.subr.mxu0 0.0
    %2085 = vmatpush1.msra.mxu0 0.0
    %2086 = vmatprep.subr.mxu0 0.0
    %2087 = vmatpush1.msra.mxu0 0.0
    %2088 = vmatprep.subr.mxu0 0.0
    %2089 = vmatpush1.msra.mxu0 0.0
    %2090 = vmatprep.subr.mxu0 0.0
    %2091 = vmatpush1.msra.mxu0 0.0
    %2092 = vmatprep.subr.mxu0 0.0
    %2093 = vmatpush1.msra.mxu0 0.0
    %2094 = vmatprep.subr.mxu0 0.0
    %2095 = vmatpush1.msra.mxu0 0.0
    %2096 = vmatprep.subr.mxu0 0.0
    %2097 = vmatpush1.msra.mxu0 0.0
    %2098 = vmatprep.subr.mxu0 0.0
    %2099 = vmatpush1.msra.mxu0 0.0
    %2100 = vmatprep.subr.mxu0 0.0
    %2101 = vmatpush1.msra.mxu0 0.0
    %2102 = vmatprep.subr.mxu0 0.0
    %2103 = vmatpush1.msra.mxu0 0.0
    %2104 = vmatprep.subr.mxu0 0.0
    %2105 = vmatpush1.msra.mxu0 0.0
    %2106 = vmatprep.subr.mxu0 0.0
    %2107 = vmatpush1.msra.mxu0 0.0
    %2108 = vmatprep.subr.mxu0 0.0
    %2109 = vmatpush1.msra.mxu0 0.0
    %2110 = vmatprep.subr.mxu0 0.0
    %2111 = vmatpush1.msra.mxu0 0.0
    %2112 = vmatprep.subr.mxu0 0.0
    %2113 = vmatpush1.msra.mxu0 0.0
    %2114 = vmatprep.subr.mxu0 0.0
    %2115 = vmatpush1.msra.mxu0 0.0
    %2116 = vmatprep.subr.mxu0 0.0
    %2117 = vmatpush1.msra.mxu0 0.0
    %2118 = vmatprep.subr.mxu0 0.0
    %2119 = vmatpush1.msra.mxu0 0.0
    %2120 = vmatprep.subr.mxu0 0.0
    %2121 = vmatpush1.msra.mxu0 0.0
    %2122 = vmatprep.subr.mxu0 0.0
    %2123 = vmatpush1.msra.mxu0 0.0
    %2124 = vmatprep.subr.mxu0 0.0
    %2125 = vmatpush1.msra.mxu0 0.0
    %2126 = vmatprep.subr.mxu0 0.0
    %2127 = vmatpush1.msra.mxu0 0.0
    %2128 = vmatprep.subr.mxu0 0.0
    %2129 = vmatpush1.msra.mxu0 0.0
    %2130 = vmatprep.subr.mxu0 0.0
    %2131 = vmatpush1.msra.mxu0 0.0
    %2132 = vmatprep.subr.mxu0 0.0
    %2133 = vmatpush1.msra.mxu0 0.0
    %2134 = vmatprep.subr.mxu0 0.0
    %2135 = vmatpush1.msra.mxu0 0.0
    %2136 = vmatprep.subr.mxu0 0.0
    %2137 = vmatpush1.msra.mxu0 0.0
    %2138 = vmatprep.subr.mxu0 0.0
    %2139 = vmatpush1.msra.mxu0 0.0
    %2140 = vmatprep.subr.mxu0 0.0
    %2141 = vmatpush1.msra.mxu0 0.0
    %2142 = vmatprep.subr.mxu0 0.0
    %2143 = vmatpush1.msra.mxu0 0.0
    %2144 = vmatprep.subr.mxu0 0.0
    %2145 = vmatpush1.msra.mxu0 0.0
    %2146 = vmatprep.mubr.f32.mxu0 0.0
    %2147 = vmatmul.mubr.f32.gmra.mrb[0].mxu0 %v2080
    %v2148 = vpop.f32.mrb[0].mxu0
    %v2149 = vadd.f32 0.0, %v2148
    %v2150 = vpop.f32.mrb[0].mxu0
    %2151 = vdwg.mxu0
    %2152 = vrot.lane.b32.xlu0 %v1640, 104
    %v2153 = vpop.permute.xlu0 %2152
    %2154 = vrot.lane.b32.xlu0 %v1640, 72
    %v2155 = vpop.permute.xlu0 %2154
    %v2156 = vsel %vm1654, %v2153, 0
    %v2158 = vsel %vm1654, %v2155, 0
    %2160 = vmatprep.subr.mxu0 0.0
    %2161 = vmatpush1.xpose.msra.mxu0 %v2158
    %2162 = vmatprep.subr.mxu0 0.0
    %2163 = vmatpush1.xpose.msra.mxu0 0.0
    %2164 = vmatprep.subr.mxu0 0.0
    %2165 = vmatpush1.xpose.msra.mxu0 0.0
    %2166 = vmatprep.subr.mxu0 0.0
    %2167 = vmatpush1.xpose.msra.mxu0 0.0
    %2168 = vmatprep.subr.mxu0 0.0
    %2169 = vmatpush1.xpose.msra.mxu0 0.0
    %2170 = vmatprep.subr.mxu0 0.0
    %2171 = vmatpush1.xpose.msra.mxu0 0.0
    %2172 = vmatprep.subr.mxu0 0.0
    %2173 = vmatpush1.xpose.msra.mxu0 0.0
    %2174 = vmatprep.subr.mxu0 0.0
    %2175 = vmatpush1.xpose.msra.mxu0 0.0
    %2176 = vmatprep.subr.mxu0 0.0
    %2177 = vmatpush1.xpose.msra.mxu0 0.0
    %2178 = vmatprep.subr.mxu0 0.0
    %2179 = vmatpush1.xpose.msra.mxu0 0.0
    %2180 = vmatprep.subr.mxu0 0.0
    %2181 = vmatpush1.xpose.msra.mxu0 0.0
    %2182 = vmatprep.subr.mxu0 0.0
    %2183 = vmatpush1.xpose.msra.mxu0 0.0
    %2184 = vmatprep.subr.mxu0 0.0
    %2185 = vmatpush1.xpose.msra.mxu0 0.0
    %2186 = vmatprep.subr.mxu0 0.0
    %2187 = vmatpush1.xpose.msra.mxu0 0.0
    %2188 = vmatprep.subr.mxu0 0.0
    %2189 = vmatpush1.xpose.msra.mxu0 0.0
    %2190 = vmatprep.subr.mxu0 0.0
    %2191 = vmatpush1.xpose.msra.mxu0 0.0
    %2192 = vmatprep.subr.mxu0 0.0
    %2193 = vmatpush1.xpose.msra.mxu0 0.0
    %2194 = vmatprep.subr.mxu0 0.0
    %2195 = vmatpush1.xpose.msra.mxu0 0.0
    %2196 = vmatprep.subr.mxu0 0.0
    %2197 = vmatpush1.xpose.msra.mxu0 0.0
    %2198 = vmatprep.subr.mxu0 0.0
    %2199 = vmatpush1.xpose.msra.mxu0 0.0
    %2200 = vmatprep.subr.mxu0 0.0
    %2201 = vmatpush1.xpose.msra.mxu0 0.0
    %2202 = vmatprep.subr.mxu0 0.0
    %2203 = vmatpush1.xpose.msra.mxu0 0.0
    %2204 = vmatprep.subr.mxu0 0.0
    %2205 = vmatpush1.xpose.msra.mxu0 0.0
    %2206 = vmatprep.subr.mxu0 0.0
    %2207 = vmatpush1.xpose.msra.mxu0 0.0
    %2208 = vmatprep.subr.mxu0 0.0
    %2209 = vmatpush1.xpose.msra.mxu0 0.0
    %2210 = vmatprep.subr.mxu0 0.0
    %2211 = vmatpush1.xpose.msra.mxu0 0.0
    %2212 = vmatprep.subr.mxu0 0.0
    %2213 = vmatpush1.xpose.msra.mxu0 0.0
    %2214 = vmatprep.subr.mxu0 0.0
    %2215 = vmatpush1.xpose.msra.mxu0 0.0
    %2216 = vmatprep.subr.mxu0 0.0
    %2217 = vmatpush1.xpose.msra.mxu0 0.0
    %2218 = vmatprep.subr.mxu0 0.0
    %2219 = vmatpush1.xpose.msra.mxu0 0.0
    %2220 = vmatprep.subr.mxu0 0.0
    %2221 = vmatpush1.xpose.msra.mxu0 0.0
    %2222 = vmatprep.subr.mxu0 0.0
    %2223 = vmatpush1.xpose.msra.mxu0 0.0
    %2224 = vmatprep.mubr.f32.mxu0 0.0
    %2225 = vmatmul.mubr.f32.gmra.mrb[0].mxu0 %v2156
    %v2226 = vpop.f32.mrb[0].mxu0
    %v2227 = vadd.f32 0.0, %v2226
    %v2228 = vpop.f32.mrb[0].mxu0
    %2229 = vdwg.mxu0
    %v2230 = vmul.f32 %v2227, 0.35355338
    %v2231 = vsel %vm1650, %v2230, -3.4028235e+38
    %v2232 = vsel %vm1654, %v2231, -inf
    %2233 = vmax.xlane.f32.xlu0 %v2232
    %v2234 = vpop.xlane.xlu0 %2233
    %v2235 = vsub.f32 %v2231, %v2234
    %v2236 = vmul.f32 %v2235, 1.442695
    %v2237 = vpow.pop %v2236
    %v2238 = vsel %vm1654, %v2237, 0.0
    %2239 = vadd.xlane.f32.xlu0 %v2238
    %v2240 = vpop.xlane.xlu0 %2239
    %v2241 = vrcp.pop %v2240
    %v2242 = vmul.f32 %v2237, %v2241
    %2243 = vrot.lane.b32.xlu0 %v1640, 40
    %v2244 = vpop.permute.xlu0 %2243
    %v2247 = vsel %vm1654, %v2242, 0
    %2249 = vmatprep.subr.mxu0 0.0
    %2250 = vmatpush1.msra.mxu0 %v2244
    %2251 = vmatprep.subr.mxu0 0.0
    %2252 = vmatpush1.msra.mxu0 0.0
    %2253 = vmatprep.subr.mxu0 0.0
    %2254 = vmatpush1.msra.mxu0 0.0
    %2255 = vmatprep.subr.mxu0 0.0
    %2256 = vmatpush1.msra.mxu0 0.0
    %2257 = vmatprep.subr.mxu0 0.0
    %2258 = vmatpush1.msra.mxu0 0.0
    %2259 = vmatprep.subr.mxu0 0.0
    %2260 = vmatpush1.msra.mxu0 0.0
    %2261 = vmatprep.subr.mxu0 0.0
    %2262 = vmatpush1.msra.mxu0 0.0
    %2263 = vmatprep.subr.mxu0 0.0
    %2264 = vmatpush1.msra.mxu0 0.0
    %2265 = vmatprep.subr.mxu0 0.0
    %2266 = vmatpush1.msra.mxu0 0.0
    %2267 = vmatprep.subr.mxu0 0.0
    %2268 = vmatpush1.msra.mxu0 0.0
    %2269 = vmatprep.subr.mxu0 0.0
    %2270 = vmatpush1.msra.mxu0 0.0
    %2271 = vmatprep.subr.mxu0 0.0
    %2272 = vmatpush1.msra.mxu0 0.0
    %2273 = vmatprep.subr.mxu0 0.0
    %2274 = vmatpush1.msra.mxu0 0.0
    %2275 = vmatprep.subr.mxu0 0.0
    %2276 = vmatpush1.msra.mxu0 0.0
    %2277 = vmatprep.subr.mxu0 0.0
    %2278 = vmatpush1.msra.mxu0 0.0
    %2279 = vmatprep.subr.mxu0 0.0
    %2280 = vmatpush1.msra.mxu0 0.0
    %2281 = vmatprep.subr.mxu0 0.0
    %2282 = vmatpush1.msra.mxu0 0.0
    %2283 = vmatprep.subr.mxu0 0.0
    %2284 = vmatpush1.msra.mxu0 0.0
    %2285 = vmatprep.subr.mxu0 0.0
    %2286 = vmatpush1.msra.mxu0 0.0
    %2287 = vmatprep.subr.mxu0 0.0
    %2288 = vmatpush1.msra.mxu0 0.0
    %2289 = vmatprep.subr.mxu0 0.0
    %2290 = vmatpush1.msra.mxu0 0.0
    %2291 = vmatprep.subr.mxu0 0.0
    %2292 = vmatpush1.msra.mxu0 0.0
    %2293 = vmatprep.subr.mxu0 0.0
    %2294 = vmatpush1.msra.mxu0 0.0
    %2295 = vmatprep.subr.mxu0 0.0
    %2296 = vmatpush1.msra.mxu0 0.0
    %2297 = vmatprep.subr.mxu0 0.0
    %2298 = vmatpush1.msra.mxu0 0.0
    %2299 = vmatprep.subr.mxu0 0.0
    %2300 = vmatpush1.msra.mxu0 0.0
    %2301 = vmatprep.subr.mxu0 0.0
    %2302 = vmatpush1.msra.mxu0 0.0
    %2303 = vmatprep.subr.mxu0 0.0
    %2304 = vmatpush1.msra.mxu0 0.0
    %2305 = vmatprep.subr.mxu0 0.0
    %2306 = vmatpush1.msra.mxu0 0.0
    %2307 = vmatprep.subr.mxu0 0.0
    %2308 = vmatpush1.msra.mxu0 0.0
    %2309 = vmatprep.subr.mxu0 0.0
    %2310 = vmatpush1.msra.mxu0 0.0
    %2311 = vmatprep.subr.mxu0 0.0
    %2312 = vmatpush1.msra.mxu0 0.0
    %2313 = vmatprep.mubr.f32.mxu0 0.0
    %2314 = vmatmul.mubr.f32.gmra.mrb[0].mxu0 %v2247
    %v2315 = vpop.f32.mrb[0].mxu0
    %v2316 = vadd.f32 0.0, %v2315
    %v2317 = vpop.f32.mrb[0].mxu0
    %2318 = vdwg.mxu0
    %2320 = vrot.lane.b32.xlu0 %v1982, 8
    %v2321 = vpop.permute.xlu0 %2320
    %2324 = vrot.lane.b32.xlu0 %v2149, 16
    %v2325 = vpop.permute.xlu0 %2324
    %2328 = vrot.lane.b32.xlu0 %v2316, 24
    %v2329 = vpop.permute.xlu0 %2328
    %v2331 = vsel %vm1654, %v1815, %v2321
    %vm2332 = vcmask 130048
    %v2333 = vsel %vm2332, %v2331, %v2325
    %vm2334 = vcmask 195584
    %v2335 = vsel %vm2334, %v2333, %v2329
    %2337 = vrot.lane.b32.xlu0 %v1645, 96
    %v2338 = vpop.permute.xlu0 %2337
    %v2339 = vsel %vm1654, %v1645, 0
    %v2341 = vsel %vm1654, %v2338, 0
    %2343 = vmatprep.subr.mxu0 0.0
    %2344 = vmatpush1.xpose.msra.mxu0 %v2341
    %2345 = vmatprep.subr.mxu0 0.0
    %2346 = vmatpush1.xpose.msra.mxu0 0.0
    %2347 = vmatprep.subr.mxu0 0.0
    %2348 = vmatpush1.xpose.msra.mxu0 0.0
    %2349 = vmatprep.subr.mxu0 0.0
    %2350 = vmatpush1.xpose.msra.mxu0 0.0
    %2351 = vmatprep.subr.mxu0 0.0
    %2352 = vmatpush1.xpose.msra.mxu0 0.0
    %2353 = vmatprep.subr.mxu0 0.0
    %2354 = vmatpush1.xpose.msra.mxu0 0.0
    %2355 = vmatprep.subr.mxu0 0.0
    %2356 = vmatpush1.xpose.msra.mxu0 0.0
    %2357 = vmatprep.subr.mxu0 0.0
    %2358 = vmatpush1.xpose.msra.mxu0 0.0
    %2359 = vmatprep.subr.mxu0 0.0
    %2360 = vmatpush1.xpose.msra.mxu0 0.0
    %2361 = vmatprep.subr.mxu0 0.0
    %2362 = vmatpush1.xpose.msra.mxu0 0.0
    %2363 = vmatprep.subr.mxu0 0.0
    %2364 = vmatpush1.xpose.msra.mxu0 0.0
    %2365 = vmatprep.subr.mxu0 0.0
    %2366 = vmatpush1.xpose.msra.mxu0 0.0
    %2367 = vmatprep.subr.mxu0 0.0
    %2368 = vmatpush1.xpose.msra.mxu0 0.0
    %2369 = vmatprep.subr.mxu0 0.0
    %2370 = vmatpush1.xpose.msra.mxu0 0.0
    %2371 = vmatprep.subr.mxu0 0.0
    %2372 = vmatpush1.xpose.msra.mxu0 0.0
    %2373 = vmatprep.subr.mxu0 0.0
    %2374 = vmatpush1.xpose.msra.mxu0 0.0
    %2375 = vmatprep.subr.mxu0 0.0
    %2376 = vmatpush1.xpose.msra.mxu0 0.0
    %2377 = vmatprep.subr.mxu0 0.0
    %2378 = vmatpush1.xpose.msra.mxu0 0.0
    %2379 = vmatprep.subr.mxu0 0.0
    %2380 = vmatpush1.xpose.msra.mxu0 0.0
    %2381 = vmatprep.subr.mxu0 0.0
    %2382 = vmatpush1.xpose.msra.mxu0 0.0
    %2383 = vmatprep.subr.mxu0 0.0
    %2384 = vmatpush1.xpose.msra.mxu0 0.0
    %2385 = vmatprep.subr.mxu0 0.0
    %2386 = vmatpush1.xpose.msra.mxu0 0.0
    %2387 = vmatprep.subr.mxu0 0.0
    %2388 = vmatpush1.xpose.msra.mxu0 0.0
    %2389 = vmatprep.subr.mxu0 0.0
    %2390 = vmatpush1.xpose.msra.mxu0 0.0
    %2391 = vmatprep.subr.mxu0 0.0
    %2392 = vmatpush1.xpose.msra.mxu0 0.0
    %2393 = vmatprep.subr.mxu0 0.0
    %2394 = vmatpush1.xpose.msra.mxu0 0.0
    %2395 = vmatprep.subr.mxu0 0.0
    %2396 = vmatpush1.xpose.msra.mxu0 0.0
    %2397 = vmatprep.subr.mxu0 0.0
    %2398 = vmatpush1.xpose.msra.mxu0 0.0
    %2399 = vmatprep.subr.mxu0 0.0
    %2400 = vmatpush1.xpose.msra.mxu0 0.0
    %2401 = vmatprep.subr.mxu0 0.0
    %2402 = vmatpush1.xpose.msra.mxu0 0.0
    %2403 = vmatprep.subr.mxu0 0.0
    %2404 = vmatpush1.xpose.msra.mxu0 0.0
    %2405 = vmatprep.subr.mxu0 0.0
    %2406 = vmatpush1.xpose.msra.mxu0 0.0
    %2407 = vmatprep.mubr.f32.mxu0 0.0
    %2408 = vmatmul.mubr.f32.gmra.mrb[0].mxu0 %v2339
    %v2409 = vpop.f32.mrb[0].mxu0
    %v2410 = vadd.f32 0.0, %v2409
    %v2411 = vpop.f32.mrb[0].mxu0
    %2412 = vdwg.mxu0
    %v2413 = vmul.f32 %v2410, 0.35355338
    %v2414 = vsel %vm1650, %v2413, -3.4028235e+38
    %v2415 = vsel %vm1654, %v2414, -inf
    %2416 = vmax.xlane.f32.xlu0 %v2415
    %v2417 = vpop.xlane.xlu0 %2416
    %v2418 = vsub.f32 %v2414, %v2417
    %v2419 = vmul.f32 %v2418, 1.442695
    %v2420 = vpow.pop %v2419
    %v2421 = vsel %vm1654, %v2420, 0.0
    %2422 = vadd.xlane.f32.xlu0 %v2421
    %v2423 = vpop.xlane.xlu0 %2422
    %v2424 = vrcp.pop %v2423
    %v2425 = vmul.f32 %v2420, %v2424
    %2426 = vrot.lane.b32.xlu0 %v1645, 64
    %v2427 = vpop.permute.xlu0 %2426
    %v2430 = vsel %vm1654, %v2425, 0
    %2432 = vmatprep.subr.mxu0 0.0
    %2433 = vmatpush1.msra.mxu0 %v2427
    %2434 = vmatprep.subr.mxu0 0.0
    %2435 = vmatpush1.msra.mxu0 0.0
    %2436 = vmatprep.subr.mxu0 0.0
    %2437 = vmatpush1.msra.mxu0 0.0
    %2438 = vmatprep.subr.mxu0 0.0
    %2439 = vmatpush1.msra.mxu0 0.0
    %2440 = vmatprep.subr.mxu0 0.0
    %2441 = vmatpush1.msra.mxu0 0.0
    %2442 = vmatprep.subr.mxu0 0.0
    %2443 = vmatpush1.msra.mxu0 0.0
    %2444 = vmatprep.subr.mxu0 0.0
    %2445 = vmatpush1.msra.mxu0 0.0
    %2446 = vmatprep.subr.mxu0 0.0
    %2447 = vmatpush1.msra.mxu0 0.0
    %2448 = vmatprep.subr.mxu0 0.0
    %2449 = vmatpush1.msra.mxu0 0.0
    %2450 = vmatprep.subr.mxu0 0.0
    %2451 = vmatpush1.msra.mxu0 0.0
    %2452 = vmatprep.subr.mxu0 0.0
    %2453 = vmatpush1.msra.mxu0 0.0
    %2454 = vmatprep.subr.mxu0 0.0
    %2455 = vmatpush1.msra.mxu0 0.0
    %2456 = vmatprep.subr.mxu0 0.0
    %2457 = vmatpush1.msra.mxu0 0.0
    %2458 = vmatprep.subr.mxu0 0.0
    %2459 = vmatpush1.msra.mxu0 0.0
    %2460 = vmatprep.subr.mxu0 0.0
    %2461 = vmatpush1.msra.mxu0 0.0
    %2462 = vmatprep.subr.mxu0 0.0
    %2463 = vmatpush1.msra.mxu0 0.0
    %2464 = vmatprep.subr.mxu0 0.0
    %2465 = vmatpush1.msra.mxu0 0.0
    %2466 = vmatprep.subr.mxu0 0.0
    %2467 = vmatpush1.msra.mxu0 0.0
    %2468 = vmatprep.subr.mxu0 0.0
    %2469 = vmatpush1.msra.mxu0 0.0
    %2470 = vmatprep.subr.mxu0 0.0
    %2471 = vmatpush1.msra.mxu0 0.0
    %2472 = vmatprep.subr.mxu0 0.0
    %2473 = vmatpush1.msra.mxu0 0.0
    %2474 = vmatprep.subr.mxu0 0.0
    %2475 = vmatpush1.msra.mxu0 0.0
    %2476 = vmatprep.subr.mxu0 0.0
    %2477 = vmatpush1.msra.mxu0 0.0
    %2478 = vmatprep.subr.mxu0 0.0
    %2479 = vmatpush1.msra.mxu0 0.0
    %2480 = vmatprep.subr.mxu0 0.0
    %2481 = vmatpush1.msra.mxu0 0.0
    %2482 = vmatprep.subr.mxu0 0.0
    %2483 = vmatpush1.msra.mxu0 0.0
    %2484 = vmatprep.subr.mxu0 0.0
    %2485 = vmatpush1.msra.mxu0 0.0
    %2486 = vmatprep.subr.mxu0 0.0
    %2487 = vmatpush1.msra.mxu0 0.0
    %2488 = vmatprep.subr.mxu0 0.0
    %2489 = vmatpush1.msra.mxu0 0.0
    %2490 = vmatprep.subr.mxu0 0.0
    %2491 = vmatpush1.msra.mxu0 0.0
    %2492 = vmatprep.subr.mxu0 0.0
    %2493 = vmatpush1.msra.mxu0 0.0
    %2494 = vmatprep.subr.mxu0 0.0
    %2495 = vmatpush1.msra.mxu0 0.0
    %2496 = vmatprep.mubr.f32.mxu0 0.0
    %2497 = vmatmul.mubr.f32.gmra.mrb[0].mxu0 %v2430
    %v2498 = vpop.f32.mrb[0].mxu0
    %v2499 = vadd.f32 0.0, %v2498
    %v2500 = vpop.f32.mrb[0].mxu0
    %2501 = vdwg.mxu0
    %2502 = vrot.lane.b32.xlu0 %v1645, 120
    %v2503 = vpop.permute.xlu0 %2502
    %2504 = vrot.lane.b32.xlu0 %v1645, 88
    %v2505 = vpop.permute.xlu0 %2504
    %v2506 = vsel %vm1654, %v2503, 0
    %v2508 = vsel %vm1654, %v2505, 0
    %2510 = vmatprep.subr.mxu0 0.0
    %2511 = vmatpush1.xpose.msra.mxu0 %v2508
    %2512 = vmatprep.subr.mxu0 0.0
    %2513 = vmatpush1.xpose.msra.mxu0 0.0
    %2514 = vmatprep.subr.mxu0 0.0
    %2515 = vmatpush1.xpose.msra.mxu0 0.0
    %2516 = vmatprep.subr.mxu0 0.0
    %2517 = vmatpush1.xpose.msra.mxu0 0.0
    %2518 = vmatprep.subr.mxu0 0.0
    %2519 = vmatpush1.xpose.msra.mxu0 0.0
    %2520 = vmatprep.subr.mxu0 0.0
    %2521 = vmatpush1.xpose.msra.mxu0 0.0
    %2522 = vmatprep.subr.mxu0 0.0
    %2523 = vmatpush1.xpose.msra.mxu0 0.0
    %2524 = vmatprep.subr.mxu0 0.0
    %2525 = vmatpush1.xpose.msra.mxu0 0.0
    %2526 = vmatprep.subr.mxu0 0.0
    %2527 = vmatpush1.xpose.msra.mxu0 0.0
    %2528 = vmatprep.subr.mxu0 0.0
    %2529 = vmatpush1.xpose.msra.mxu0 0.0
    %2530 = vmatprep.subr.mxu0 0.0
    %2531 = vmatpush1.xpose.msra.mxu0 0.0
    %2532 = vmatprep.subr.mxu0 0.0
    %2533 = vmatpush1.xpose.msra.mxu0 0.0
    %2534 = vmatprep.subr.mxu0 0.0
    %2535 = vmatpush1.xpose.msra.mxu0 0.0
    %2536 = vmatprep.subr.mxu0 0.0
    %2537 = vmatpush1.xpose.msra.mxu0 0.0
    %2538 = vmatprep.subr.mxu0 0.0
    %2539 = vmatpush1.xpose.msra.mxu0 0.0
    %2540 = vmatprep.subr.mxu0 0.0
    %2541 = vmatpush1.xpose.msra.mxu0 0.0
    %2542 = vmatprep.subr.mxu0 0.0
    %2543 = vmatpush1.xpose.msra.mxu0 0.0
    %2544 = vmatprep.subr.mxu0 0.0
    %2545 = vmatpush1.xpose.msra.mxu0 0.0
    %2546 = vmatprep.subr.mxu0 0.0
    %2547 = vmatpush1.xpose.msra.mxu0 0.0
    %2548 = vmatprep.subr.mxu0 0.0
    %2549 = vmatpush1.xpose.msra.mxu0 0.0
    %2550 = vmatprep.subr.mxu0 0.0
    %2551 = vmatpush1.xpose.msra.mxu0 0.0
    %2552 = vmatprep.subr.mxu0 0.0
    %2553 = vmatpush1.xpose.msra.mxu0 0.0
    %2554 = vmatprep.subr.mxu0 0.0
    %2555 = vmatpush1.xpose.msra.mxu0 0.0
    %2556 = vmatprep.subr.mxu0 0.0
    %2557 = vmatpush1.xpose.msra.mxu0 0.0
    %2558 = vmatprep.subr.mxu0 0.0
    %2559 = vmatpush1.xpose.msra.mxu0 0.0
    %2560 = vmatprep.subr.mxu0 0.0
    %2561 = vmatpush1.xpose.msra.mxu0 0.0
    %2562 = vmatprep.subr.mxu0 0.0
    %2563 = vmatpush1.xpose.msra.mxu0 0.0
    %2564 = vmatprep.subr.mxu0 0.0
    %2565 = vmatpush1.xpose.msra.mxu0 0.0
    %2566 = vmatprep.subr.mxu0 0.0
    %2567 = vmatpush1.xpose.msra.mxu0 0.0
    %2568 = vmatprep.subr.mxu0 0.0
    %2569 = vmatpush1.xpose.msra.mxu0 0.0
    %2570 = vmatprep.subr.mxu0 0.0
    %2571 = vmatpush1.xpose.msra.mxu0 0.0
    %2572 = vmatprep.subr.mxu0 0.0
    %2573 = vmatpush1.xpose.msra.mxu0 0.0
    %2574 = vmatprep.mubr.f32.mxu0 0.0
    %2575 = vmatmul.mubr.f32.gmra.mrb[0].mxu0 %v2506
    %v2576 = vpop.f32.mrb[0].mxu0
    %v2577 = vadd.f32 0.0, %v2576
    %v2578 = vpop.f32.mrb[0].mxu0
    %2579 = vdwg.mxu0
    %v2580 = vmul.f32 %v2577, 0.35355338
    %v2581 = vsel %vm1650, %v2580, -3.4028235e+38
    %v2582 = vsel %vm1654, %v2581, -inf
    %2583 = vmax.xlane.f32.xlu0 %v2582
    %v2584 = vpop.xlane.xlu0 %2583
    %v2585 = vsub.f32 %v2581, %v2584
    %v2586 = vmul.f32 %v2585, 1.442695
    %v2587 = vpow.pop %v2586
    %v2588 = vsel %vm1654, %v2587, 0.0
    %2589 = vadd.xlane.f32.xlu0 %v2588
    %v2590 = vpop.xlane.xlu0 %2589
    %v2591 = vrcp.pop %v2590
    %v2592 = vmul.f32 %v2587, %v2591
    %2593 = vrot.lane.b32.xlu0 %v1645, 56
    %v2594 = vpop.permute.xlu0 %2593
    %v2597 = vsel %vm1654, %v2592, 0
    %2599 = vmatprep.subr.mxu0 0.0
    %2600 = vmatpush1.msra.mxu0 %v2594
    %2601 = vmatprep.subr.mxu0 0.0
    %2602 = vmatpush1.msra.mxu0 0.0
    %2603 = vmatprep.subr.mxu0 0.0
    %2604 = vmatpush1.msra.mxu0 0.0
    %2605 = vmatprep.subr.mxu0 0.0
    %2606 = vmatpush1.msra.mxu0 0.0
    %2607 = vmatprep.subr.mxu0 0.0
    %2608 = vmatpush1.msra.mxu0 0.0
    %2609 = vmatprep.subr.mxu0 0.0
    %2610 = vmatpush1.msra.mxu0 0.0
    %2611 = vmatprep.subr.mxu0 0.0
    %2612 = vmatpush1.msra.mxu0 0.0
    %2613 = vmatprep.subr.mxu0 0.0
    %2614 = vmatpush1.msra.mxu0 0.0
    %2615 = vmatprep.subr.mxu0 0.0
    %2616 = vmatpush1.msra.mxu0 0.0
    %2617 = vmatprep.subr.mxu0 0.0
    %2618 = vmatpush1.msra.mxu0 0.0
    %2619 = vmatprep.subr.mxu0 0.0
    %2620 = vmatpush1.msra.mxu0 0.0
    %2621 = vmatprep.subr.mxu0 0.0
    %2622 = vmatpush1.msra.mxu0 0.0
    %2623 = vmatprep.subr.mxu0 0.0
    %2624 = vmatpush1.msra.mxu0 0.0
    %2625 = vmatprep.subr.mxu0 0.0
    %2626 = vmatpush1.msra.mxu0 0.0
    %2627 = vmatprep.subr.mxu0 0.0
    %2628 = vmatpush1.msra.mxu0 0.0
    %2629 = vmatprep.subr.mxu0 0.0
    %2630 = vmatpush1.msra.mxu0 0.0
    %2631 = vmatprep.subr.mxu0 0.0
    %2632 = vmatpush1.msra.mxu0 0.0
    %2633 = vmatprep.subr.mxu0 0.0
    %2634 = vmatpush1.msra.mxu0 0.0
    %2635 = vmatprep.subr.mxu0 0.0
    %2636 = vmatpush1.msra.mxu0 0.0
    %2637 = vmatprep.subr.mxu0 0.0
    %2638 = vmatpush1.msra.mxu0 0.0
    %2639 = vmatprep.subr.mxu0 0.0
    %2640 = vmatpush1.msra.mxu0 0.0
    %2641 = vmatprep.subr.mxu0 0.0
    %2642 = vmatpush1.msra.mxu0 0.0
    %2643 = vmatprep.subr.mxu0 0.0
    %2644 = vmatpush1.msra.mxu0 0.0
    %2645 = vmatprep.subr.mxu0 0.0
    %2646 = vmatpush1.msra.mxu0 0.0
    %2647 = vmatprep.subr.mxu0 0.0
    %2648 = vmatpush1.msra.mxu0 0.0
    %2649 = vmatprep.subr.mxu0 0.0
    %2650 = vmatpush1.msra.mxu0 0.0
    %2651 = vmatprep.subr.mxu0 0.0
    %2652 = vmatpush1.msra.mxu0 0.0
    %2653 = vmatprep.subr.mxu0 0.0
    %2654 = vmatpush1.msra.mxu0 0.0
    %2655 = vmatprep.subr.mxu0 0.0
    %2656 = vmatpush1.msra.mxu0 0.0
    %2657 = vmatprep.subr.mxu0 0.0
    %2658 = vmatpush1.msra.mxu0 0.0
    %2659 = vmatprep.subr.mxu0 0.0
    %2660 = vmatpush1.msra.mxu0 0.0
    %2661 = vmatprep.subr.mxu0 0.0
    %2662 = vmatpush1.msra.mxu0 0.0
    %2663 = vmatprep.mubr.f32.mxu0 0.0
    %2664 = vmatmul.mubr.f32.gmra.mrb[0].mxu0 %v2597
    %v2665 = vpop.f32.mrb[0].mxu0
    %v2666 = vadd.f32 0.0, %v2665
    %v2667 = vpop.f32.mrb[0].mxu0
    %2668 = vdwg.mxu0
    %2669 = vrot.lane.b32.xlu0 %v1645, 112
    %v2670 = vpop.permute.xlu0 %2669
    %2671 = vrot.lane.b32.xlu0 %v1645, 80
    %v2672 = vpop.permute.xlu0 %2671
    %v2673 = vsel %vm1654, %v2670, 0
    %v2675 = vsel %vm1654, %v2672, 0
    %2677 = vmatprep.subr.mxu0 0.0
    %2678 = vmatpush1.xpose.msra.mxu0 %v2675
    %2679 = vmatprep.subr.mxu0 0.0
    %2680 = vmatpush1.xpose.msra.mxu0 0.0
    %2681 = vmatprep.subr.mxu0 0.0
    %2682 = vmatpush1.xpose.msra.mxu0 0.0
    %2683 = vmatprep.subr.mxu0 0.0
    %2684 = vmatpush1.xpose.msra.mxu0 0.0
    %2685 = vmatprep.subr.mxu0 0.0
    %2686 = vmatpush1.xpose.msra.mxu0 0.0
    %2687 = vmatprep.subr.mxu0 0.0
    %2688 = vmatpush1.xpose.msra.mxu0 0.0
    %2689 = vmatprep.subr.mxu0 0.0
    %2690 = vmatpush1.xpose.msra.mxu0 0.0
    %2691 = vmatprep.subr.mxu0 0.0
    %2692 = vmatpush1.xpose.msra.mxu0 0.0
    %2693 = vmatprep.subr.mxu0 0.0
    %2694 = vmatpush1.xpose.msra.mxu0 0.0
    %2695 = vmatprep.subr.mxu0 0.0
    %2696 = vmatpush1.xpose.msra.mxu0 0.0
    %2697 = vmatprep.subr.mxu0 0.0
    %2698 = vmatpush1.xpose.msra.mxu0 0.0
    %2699 = vmatprep.subr.mxu0 0.0
    %2700 = vmatpush1.xpose.msra.mxu0 0.0
    %2701 = vmatprep.subr.mxu0 0.0
    %2702 = vmatpush1.xpose.msra.mxu0 0.0
    %2703 = vmatprep.subr.mxu0 0.0
    %2704 = vmatpush1.xpose.msra.mxu0 0.0
    %2705 = vmatprep.subr.mxu0 0.0
    %2706 = vmatpush1.xpose.msra.mxu0 0.0
    %2707 = vmatprep.subr.mxu0 0.0
    %2708 = vmatpush1.xpose.msra.mxu0 0.0
    %2709 = vmatprep.subr.mxu0 0.0
    %2710 = vmatpush1.xpose.msra.mxu0 0.0
    %2711 = vmatprep.subr.mxu0 0.0
    %2712 = vmatpush1.xpose.msra.mxu0 0.0
    %2713 = vmatprep.subr.mxu0 0.0
    %2714 = vmatpush1.xpose.msra.mxu0 0.0
    %2715 = vmatprep.subr.mxu0 0.0
    %2716 = vmatpush1.xpose.msra.mxu0 0.0
    %2717 = vmatprep.subr.mxu0 0.0
    %2718 = vmatpush1.xpose.msra.mxu0 0.0
    %2719 = vmatprep.subr.mxu0 0.0
    %2720 = vmatpush1.xpose.msra.mxu0 0.0
    %2721 = vmatprep.subr.mxu0 0.0
    %2722 = vmatpush1.xpose.msra.mxu0 0.0
    %2723 = vmatprep.subr.mxu0 0.0
    %2724 = vmatpush1.xpose.msra.mxu0 0.0
    %2725 = vmatprep.subr.mxu0 0.0
    %2726 = vmatpush1.xpose.msra.mxu0 0.0
    %2727 = vmatprep.subr.mxu0 0.0
    %2728 = vmatpush1.xpose.msra.mxu0 0.0
    %2729 = vmatprep.subr.mxu0 0.0
    %2730 = vmatpush1.xpose.msra.mxu0 0.0
    %2731 = vmatprep.subr.mxu0 0.0
    %2732 = vmatpush1.xpose.msra.mxu0 0.0
    %2733 = vmatprep.subr.mxu0 0.0
    %2734 = vmatpush1.xpose.msra.mxu0 0.0
    %2735 = vmatprep.subr.mxu0 0.0
    %2736 = vmatpush1.xpose.msra.mxu0 0.0
    %2737 = vmatprep.subr.mxu0 0.0
    %2738 = vmatpush1.xpose.msra.mxu0 0.0
    %2739 = vmatprep.subr.mxu0 0.0
    %2740 = vmatpush1.xpose.msra.mxu0 0.0
    %2741 = vmatprep.mubr.f32.mxu0 0.0
    %2742 = vmatmul.mubr.f32.gmra.mrb[0].mxu0 %v2673
    %v2743 = vpop.f32.mrb[0].mxu0
    %v2744 = vadd.f32 0.0, %v2743
    %v2745 = vpop.f32.mrb[0].mxu0
    %2746 = vdwg.mxu0
    %v2747 = vmul.f32 %v2744, 0.35355338
    %v2748 = vsel %vm1650, %v2747, -3.4028235e+38
    %v2749 = vsel %vm1654, %v2748, -inf
    %2750 = vmax.xlane.f32.xlu0 %v2749
    %v2751 = vpop.xlane.xlu0 %2750
    %v2752 = vsub.f32 %v2748, %v2751
    %v2753 = vmul.f32 %v2752, 1.442695
    %v2754 = vpow.pop %v2753
    %v2755 = vsel %vm1654, %v2754, 0.0
    %2756 = vadd.xlane.f32.xlu0 %v2755
    %v2757 = vpop.xlane.xlu0 %2756
    %v2758 = vrcp.pop %v2757
    %v2759 = vmul.f32 %v2754, %v2758
    %2760 = vrot.lane.b32.xlu0 %v1645, 48
    %v2761 = vpop.permute.xlu0 %2760
    %v2764 = vsel %vm1654, %v2759, 0
    %2766 = vmatprep.subr.mxu0 0.0
    %2767 = vmatpush1.msra.mxu0 %v2761
    %2768 = vmatprep.subr.mxu0 0.0
    %2769 = vmatpush1.msra.mxu0 0.0
    %2770 = vmatprep.subr.mxu0 0.0
    %2771 = vmatpush1.msra.mxu0 0.0
    %2772 = vmatprep.subr.mxu0 0.0
    %2773 = vmatpush1.msra.mxu0 0.0
    %2774 = vmatprep.subr.mxu0 0.0
    %2775 = vmatpush1.msra.mxu0 0.0
    %2776 = vmatprep.subr.mxu0 0.0
    %2777 = vmatpush1.msra.mxu0 0.0
    %2778 = vmatprep.subr.mxu0 0.0
    %2779 = vmatpush1.msra.mxu0 0.0
    %2780 = vmatprep.subr.mxu0 0.0
    %2781 = vmatpush1.msra.mxu0 0.0
    %2782 = vmatprep.subr.mxu0 0.0
    %2783 = vmatpush1.msra.mxu0 0.0
    %2784 = vmatprep.subr.mxu0 0.0
    %2785 = vmatpush1.msra.mxu0 0.0
    %2786 = vmatprep.subr.mxu0 0.0
    %2787 = vmatpush1.msra.mxu0 0.0
    %2788 = vmatprep.subr.mxu0 0.0
    %2789 = vmatpush1.msra.mxu0 0.0
    %2790 = vmatprep.subr.mxu0 0.0
    %2791 = vmatpush1.msra.mxu0 0.0
    %2792 = vmatprep.subr.mxu0 0.0
    %2793 = vmatpush1.msra.mxu0 0.0
    %2794 = vmatprep.subr.mxu0 0.0
    %2795 = vmatpush1.msra.mxu0 0.0
    %2796 = vmatprep.subr.mxu0 0.0
    %2797 = vmatpush1.msra.mxu0 0.0
    %2798 = vmatprep.subr.mxu0 0.0
    %2799 = vmatpush1.msra.mxu0 0.0
    %2800 = vmatprep.subr.mxu0 0.0
    %2801 = vmatpush1.msra.mxu0 0.0
    %2802 = vmatprep.subr.mxu0 0.0
    %2803 = vmatpush1.msra.mxu0 0.0
    %2804 = vmatprep.subr.mxu0 0.0
    %2805 = vmatpush1.msra.mxu0 0.0
    %2806 = vmatprep.subr.mxu0 0.0
    %2807 = vmatpush1.msra.mxu0 0.0
    %2808 = vmatprep.subr.mxu0 0.0
    %2809 = vmatpush1.msra.mxu0 0.0
    %2810 = vmatprep.subr.mxu0 0.0
    %2811 = vmatpush1.msra.mxu0 0.0
    %2812 = vmatprep.subr.mxu0 0.0
    %2813 = vmatpush1.msra.mxu0 0.0
    %2814 = vmatprep.subr.mxu0 0.0
    %2815 = vmatpush1.msra.mxu0 0.0
    %2816 = vmatprep.subr.mxu0 0.0
    %2817 = vmatpush1.msra.mxu0 0.0
    %2818 = vmatprep.subr.mxu0 0.0
    %2819 = vmatpush1.msra.mxu0 0.0
    %2820 = vmatprep.subr.mxu0 0.0
    %2821 = vmatpush1.msra.mxu0 0.0
    %2822 = vmatprep.subr.mxu0 0.0
    %2823 = vmatpush1.msra.mxu0 0.0
    %2824 = vmatprep.subr.mxu0 0.0
    %2825 = vmatpush1.msra.mxu0 0.0
    %2826 = vmatprep.subr.mxu0 0.0
    %2827 = vmatpush1.msra.mxu0 0.0
    %2828 = vmatprep.subr.mxu0 0.0
    %2829 = vmatpush1.msra.mxu0 0.0
    %2830 = vmatprep.mubr.f32.mxu0 0.0
    %2831 = vmatmul.mubr.f32.gmra.mrb[0].mxu0 %v2764
    %v2832 = vpop.f32.mrb[0].mxu0
    %v2833 = vadd.f32 0.0, %v2832
    %v2834 = vpop.f32.mrb[0].mxu0
    %2835 = vdwg.mxu0
    %2836 = vrot.lane.b32.xlu0 %v1645, 104
    %v2837 = vpop.permute.xlu0 %2836
    %2838 = vrot.lane.b32.xlu0 %v1645, 72
    %v2839 = vpop.permute.xlu0 %2838
    %v2840 = vsel %vm1654, %v2837, 0
    %v2842 = vsel %vm1654, %v2839, 0
    %2844 = vmatprep.subr.mxu0 0.0
    %2845 = vmatpush1.xpose.msra.mxu0 %v2842
    %2846 = vmatprep.subr.mxu0 0.0
    %2847 = vmatpush1.xpose.msra.mxu0 0.0
    %2848 = vmatprep.subr.mxu0 0.0
    %2849 = vmatpush1.xpose.msra.mxu0 0.0
    %2850 = vmatprep.subr.mxu0 0.0
    %2851 = vmatpush1.xpose.msra.mxu0 0.0
    %2852 = vmatprep.subr.mxu0 0.0
    %2853 = vmatpush1.xpose.msra.mxu0 0.0
    %2854 = vmatprep.subr.mxu0 0.0
    %2855 = vmatpush1.xpose.msra.mxu0 0.0
    %2856 = vmatprep.subr.mxu0 0.0
    %2857 = vmatpush1.xpose.msra.mxu0 0.0
    %2858 = vmatprep.subr.mxu0 0.0
    %2859 = vmatpush1.xpose.msra.mxu0 0.0
    %2860 = vmatprep.subr.mxu0 0.0
    %2861 = vmatpush1.xpose.msra.mxu0 0.0
    %2862 = vmatprep.subr.mxu0 0.0
    %2863 = vmatpush1.xpose.msra.mxu0 0.0
    %2864 = vmatprep.subr.mxu0 0.0
    %2865 = vmatpush1.xpose.msra.mxu0 0.0
    %2866 = vmatprep.subr.mxu0 0.0
    %2867 = vmatpush1.xpose.msra.mxu0 0.0
    %2868 = vmatprep.subr.mxu0 0.0
    %2869 = vmatpush1.xpose.msra.mxu0 0.0
    %2870 = vmatprep.subr.mxu0 0.0
    %2871 = vmatpush1.xpose.msra.mxu0 0.0
    %2872 = vmatprep.subr.mxu0 0.0
    %2873 = vmatpush1.xpose.msra.mxu0 0.0
    %2874 = vmatprep.subr.mxu0 0.0
    %2875 = vmatpush1.xpose.msra.mxu0 0.0
    %2876 = vmatprep.subr.mxu0 0.0
    %2877 = vmatpush1.xpose.msra.mxu0 0.0
    %2878 = vmatprep.subr.mxu0 0.0
    %2879 = vmatpush1.xpose.msra.mxu0 0.0
    %2880 = vmatprep.subr.mxu0 0.0
    %2881 = vmatpush1.xpose.msra.mxu0 0.0
    %2882 = vmatprep.subr.mxu0 0.0
    %2883 = vmatpush1.xpose.msra.mxu0 0.0
    %2884 = vmatprep.subr.mxu0 0.0
    %2885 = vmatpush1.xpose.msra.mxu0 0.0
    %2886 = vmatprep.subr.mxu0 0.0
    %2887 = vmatpush1.xpose.msra.mxu0 0.0
    %2888 = vmatprep.subr.mxu0 0.0
    %2889 = vmatpush1.xpose.msra.mxu0 0.0
    %2890 = vmatprep.subr.mxu0 0.0
    %2891 = vmatpush1.xpose.msra.mxu0 0.0
    %2892 = vmatprep.subr.mxu0 0.0
    %2893 = vmatpush1.xpose.msra.mxu0 0.0
    %2894 = vmatprep.subr.mxu0 0.0
    %2895 = vmatpush1.xpose.msra.mxu0 0.0
    %2896 = vmatprep.subr.mxu0 0.0
    %2897 = vmatpush1.xpose.msra.mxu0 0.0
    %2898 = vmatprep.subr.mxu0 0.0
    %2899 = vmatpush1.xpose.msra.mxu0 0.0
    %2900 = vmatprep.subr.mxu0 0.0
    %2901 = vmatpush1.xpose.msra.mxu0 0.0
    %2902 = vmatprep.subr.mxu0 0.0
    %2903 = vmatpush1.xpose.msra.mxu0 0.0
    %2904 = vmatprep.subr.mxu0 0.0
    %2905 = vmatpush1.xpose.msra.mxu0 0.0
    %2906 = vmatprep.subr.mxu0 0.0
    %2907 = vmatpush1.xpose.msra.mxu0 0.0
    %2908 = vmatprep.mubr.f32.mxu0 0.0
    %2909 = vmatmul.mubr.f32.gmra.mrb[0].mxu0 %v2840
    %v2910 = vpop.f32.mrb[0].mxu0
    %v2911 = vadd.f32 0.0, %v2910
    %v2912 = vpop.f32.mrb[0].mxu0
    %2913 = vdwg.mxu0
    %v2914 = vmul.f32 %v2911, 0.35355338
    %v2915 = vsel %vm1650, %v2914, -3.4028235e+38
    %v2916 = vsel %vm1654, %v2915, -inf
    %2917 = vmax.xlane.f32.xlu0 %v2916
    %v2918 = vpop.xlane.xlu0 %2917
    %v2919 = vsub.f32 %v2915, %v2918
    %v2920 = vmul.f32 %v2919, 1.442695
    %v2921 = vpow.pop %v2920
    %v2922 = vsel %vm1654, %v2921, 0.0
    %2923 = vadd.xlane.f32.xlu0 %v2922
    %v2924 = vpop.xlane.xlu0 %2923
    %v2925 = vrcp.pop %v2924
    %v2926 = vmul.f32 %v2921, %v2925
    %2927 = vrot.lane.b32.xlu0 %v1645, 40
    %v2928 = vpop.permute.xlu0 %2927
    %v2931 = vsel %vm1654, %v2926, 0
    %2933 = vmatprep.subr.mxu0 0.0
    %2934 = vmatpush1.msra.mxu0 %v2928
    %2935 = vmatprep.subr.mxu0 0.0
    %2936 = vmatpush1.msra.mxu0 0.0
    %2937 = vmatprep.subr.mxu0 0.0
    %2938 = vmatpush1.msra.mxu0 0.0
    %2939 = vmatprep.subr.mxu0 0.0
    %2940 = vmatpush1.msra.mxu0 0.0
    %2941 = vmatprep.subr.mxu0 0.0
    %2942 = vmatpush1.msra.mxu0 0.0
    %2943 = vmatprep.subr.mxu0 0.0
    %2944 = vmatpush1.msra.mxu0 0.0
    %2945 = vmatprep.subr.mxu0 0.0
    %2946 = vmatpush1.msra.mxu0 0.0
    %2947 = vmatprep.subr.mxu0 0.0
    %2948 = vmatpush1.msra.mxu0 0.0
    %2949 = vmatprep.subr.mxu0 0.0
    %2950 = vmatpush1.msra.mxu0 0.0
    %2951 = vmatprep.subr.mxu0 0.0
    %2952 = vmatpush1.msra.mxu0 0.0
    %2953 = vmatprep.subr.mxu0 0.0
    %2954 = vmatpush1.msra.mxu0 0.0
    %2955 = vmatprep.subr.mxu0 0.0
    %2956 = vmatpush1.msra.mxu0 0.0
    %2957 = vmatprep.subr.mxu0 0.0
    %2958 = vmatpush1.msra.mxu0 0.0
    %2959 = vmatprep.subr.mxu0 0.0
    %2960 = vmatpush1.msra.mxu0 0.0
    %2961 = vmatprep.subr.mxu0 0.0
    %2962 = vmatpush1.msra.mxu0 0.0
    %2963 = vmatprep.subr.mxu0 0.0
    %2964 = vmatpush1.msra.mxu0 0.0
    %2965 = vmatprep.subr.mxu0 0.0
    %2966 = vmatpush1.msra.mxu0 0.0
    %2967 = vmatprep.subr.mxu0 0.0
    %2968 = vmatpush1.msra.mxu0 0.0
    %2969 = vmatprep.subr.mxu0 0.0
    %2970 = vmatpush1.msra.mxu0 0.0
    %2971 = vmatprep.subr.mxu0 0.0
    %2972 = vmatpush1.msra.mxu0 0.0
    %2973 = vmatprep.subr.mxu0 0.0
    %2974 = vmatpush1.msra.mxu0 0.0
    %2975 = vmatprep.subr.mxu0 0.0
    %2976 = vmatpush1.msra.mxu0 0.0
    %2977 = vmatprep.subr.mxu0 0.0
    %2978 = vmatpush1.msra.mxu0 0.0
    %2979 = vmatprep.subr.mxu0 0.0
    %2980 = vmatpush1.msra.mxu0 0.0
    %2981 = vmatprep.subr.mxu0 0.0
    %2982 = vmatpush1.msra.mxu0 0.0
    %2983 = vmatprep.subr.mxu0 0.0
    %2984 = vmatpush1.msra.mxu0 0.0
    %2985 = vmatprep.subr.mxu0 0.0
    %2986 = vmatpush1.msra.mxu0 0.0
    %2987 = vmatprep.subr.mxu0 0.0
    %2988 = vmatpush1.msra.mxu0 0.0
    %2989 = vmatprep.subr.mxu0 0.0
    %2990 = vmatpush1.msra.mxu0 0.0
    %2991 = vmatprep.subr.mxu0 0.0
    %2992 = vmatpush1.msra.mxu0 0.0
    %2993 = vmatprep.subr.mxu0 0.0
    %2994 = vmatpush1.msra.mxu0 0.0
    %2995 = vmatprep.subr.mxu0 0.0
    %2996 = vmatpush1.msra.mxu0 0.0
    %2997 = vmatprep.mubr.f32.mxu0 0.0
    %2998 = vmatmul.mubr.f32.gmra.mrb[0].mxu0 %v2931
    %v2999 = vpop.f32.mrb[0].mxu0
    %v3000 = vadd.f32 0.0, %v2999
    %v3001 = vpop.f32.mrb[0].mxu0
    %3002 = vdwg.mxu0
    %3004 = vrot.lane.b32.xlu0 %v2666, 8
    %v3005 = vpop.permute.xlu0 %3004
    %3008 = vrot.lane.b32.xlu0 %v2833, 16
    %v3009 = vpop.permute.xlu0 %3008
    %3012 = vrot.lane.b32.xlu0 %v3000, 24
    %v3013 = vpop.permute.xlu0 %3012
    %v3015 = vsel %vm1654, %v2499, %v3005
    %v3016 = vsel %vm2332, %v3015, %v3009
    %v3017 = vsel %vm2334, %v3016, %v3013
    %v3018 = vld [vmem:[#allocation18] sm:$0xff]
    %v3019 = vld [vmem:[#allocation18 + $0x8] sm:$0xff]
    %v3020 = vld [vmem:[#allocation18 + $0x10] sm:$0xff]
    %v3021 = vld [vmem:[#allocation18 + $0x18] sm:$0xff]
    %v3023 = vsel %vm281, %v2335, 0
    %v3026 = vsel %vm281, %v3017, 0
    %3028 = vmatprep.subr.mxu0 0.0
    %3029 = vmatpush1.msra.mxu0 %v3018
    %3030 = vmatprep.subr.mxu0 0.0
    %3031 = vmatpush1.msra.mxu0 %v3019
    %3032 = vmatprep.subr.mxu0 0.0
    %3033 = vmatpush1.msra.mxu0 %v3020
    %3034 = vmatprep.subr.mxu0 0.0
    %3035 = vmatpush1.msra.mxu0 %v3021
    %3036 = vmatprep.subr.mxu0 0.0
    %3037 = vmatpush1.msra.mxu0 0.0
    %3038 = vmatprep.subr.mxu0 0.0
    %3039 = vmatpush1.msra.mxu0 0.0
    %3040 = vmatprep.subr.mxu0 0.0
    %3041 = vmatpush1.msra.mxu0 0.0
    %3042 = vmatprep.subr.mxu0 0.0
    %3043 = vmatpush1.msra.mxu0 0.0
    %3044 = vmatprep.subr.mxu0 0.0
    %3045 = vmatpush1.msra.mxu0 0.0
    %3046 = vmatprep.subr.mxu0 0.0
    %3047 = vmatpush1.msra.mxu0 0.0
    %3048 = vmatprep.subr.mxu0 0.0
    %3049 = vmatpush1.msra.mxu0 0.0
    %3050 = vmatprep.subr.mxu0 0.0
    %3051 = vmatpush1.msra.mxu0 0.0
    %3052 = vmatprep.subr.mxu0 0.0
    %3053 = vmatpush1.msra.mxu0 0.0
    %3054 = vmatprep.subr.mxu0 0.0
    %3055 = vmatpush1.msra.mxu0 0.0
    %3056 = vmatprep.subr.mxu0 0.0
    %3057 = vmatpush1.msra.mxu0 0.0
    %3058 = vmatprep.subr.mxu0 0.0
    %3059 = vmatpush1.msra.mxu0 0.0
    %3060 = vmatprep.subr.mxu0 0.0
    %3061 = vmatpush1.msra.mxu0 0.0
    %3062 = vmatprep.subr.mxu0 0.0
    %3063 = vmatpush1.msra.mxu0 0.0
    %3064 = vmatprep.subr.mxu0 0.0
    %3065 = vmatpush1.msra.mxu0 0.0
    %3066 = vmatprep.subr.mxu0 0.0
    %3067 = vmatpush1.msra.mxu0 0.0
    %3068 = vmatprep.subr.mxu0 0.0
    %3069 = vmatpush1.msra.mxu0 0.0
    %3070 = vmatprep.subr.mxu0 0.0
    %3071 = vmatpush1.msra.mxu0 0.0
    %3072 = vmatprep.subr.mxu0 0.0
    %3073 = vmatpush1.msra.mxu0 0.0
    %3074 = vmatprep.subr.mxu0 0.0
    %3075 = vmatpush1.msra.mxu0 0.0
    %3076 = vmatprep.subr.mxu0 0.0
    %3077 = vmatpush1.msra.mxu0 0.0
    %3078 = vmatprep.subr.mxu0 0.0
    %3079 = vmatpush1.msra.mxu0 0.0
    %3080 = vmatprep.subr.mxu0 0.0
    %3081 = vmatpush1.msra.mxu0 0.0
    %3082 = vmatprep.subr.mxu0 0.0
    %3083 = vmatpush1.msra.mxu0 0.0
    %3084 = vmatprep.subr.mxu0 0.0
    %3085 = vmatpush1.msra.mxu0 0.0
    %3086 = vmatprep.subr.mxu0 0.0
    %3087 = vmatpush1.msra.mxu0 0.0
    %3088 = vmatprep.subr.mxu0 0.0
    %3089 = vmatpush1.msra.mxu0 0.0
    %3090 = vmatprep.subr.mxu0 0.0
    %3091 = vmatpush1.msra.mxu0 0.0
    %3092 = vmatprep.mubr.f32.mxu0 0.0
    %3093 = vmatmul.mubr.f32.gmra.mrb[0].mxu0 %v3023
    %v3094 = vpop.f32.mrb[0].mxu0
    %v3095 = vadd.f32 0.0, %v3094
    %v3096 = vpop.f32.mrb[0].mxu0
    %3097 = vmatprep.mubr.f32.mxu0 0.0
    %3098 = vmatmul.mubr.f32.gmra.mrb[0].mxu0 %v3026
    %v3099 = vpop.f32.mrb[0].mxu0
    %v3100 = vadd.f32 0.0, %v3099
    %v3101 = vpop.f32.mrb[0].mxu0
    %3102 = vdwg.mxu0
    %v3103 = vadd.f32 %v1529, %v3095
    %v3104 = vadd.f32 %v1530, %v3100
    %v3105 = vld [vmem:[#allocation19] sm:$0x1]
    %v3107 = vlaneseq
    %v3108 = vshrl.u32 %v3107, 7
    %v3109 = vsub.s32 0, %v3108
    %v3110 = vrot.slane %v3105, %v3109
    %v3112 = vadd.f32 %v3103, %v3110
    %v3113 = vadd.f32 %v3104, %v3110
    %v3114 = vld [vmem:[#allocation21] sm:$0x1]
    %v3115 = vmul.f32 %v3112, %v3112
    %v3116 = vmul.f32 %v3113, %v3113
    %v3117 = vsel %vm281, %v3115, 0.0
    %3118 = vadd.xlane.f32.xlu0 %v3117
    %v3119 = vpop.xlane.xlu0 %3118
    %v3120 = vsel %vm281, %v3116, 0.0
    %3121 = vadd.xlane.f32.xlu0 %v3120
    %v3122 = vpop.xlane.xlu0 %3121
    %v3123 = vmul.f32 %v3119, %v288
    %v3124 = vmul.f32 %v3122, %v288
    %v3125 = vadd.f32 %v3123, 1e-06
    %v3126 = vadd.f32 %v3124, 1e-06
    %v3127 = vrsqrt.pop %v3125
    %v3128 = vrsqrt.pop %v3126
    %v3129 = vmul.f32 %v3112, %v3127
    %v3130 = vmul.f32 %v3113, %v3128
    %v3132 = vlaneseq
    %v3133 = vshrl.u32 %v3132, 7
    %v3134 = vsub.s32 0, %v3133
    %v3135 = vrot.slane %v3114, %v3134
    %v3137 = vmul.f32 %v3129, %v3135
    %v3138 = vmul.f32 %v3130, %v3135
    %v3139 = vld [vmem:[#allocation22] sm:$0xff]
    %v3140 = vld [vmem:[#allocation22 + $0x8] sm:$0xff]
    %v3141 = vld [vmem:[#allocation22 + $0x10] sm:$0xff]
    %v3142 = vld [vmem:[#allocation22 + $0x18] sm:$0xff]
    %v3144 = vsel %vm281, %v3137, 0
    %v3147 = vsel %vm281, %v3138, 0
    %3149 = vmatprep.subr.mxu0 0.0
    %3150 = vmatpush1.msra.mxu0 %v3139
    %3151 = vmatprep.subr.mxu0 0.0
    %3152 = vmatpush1.msra.mxu0 %v3140
    %3153 = vmatprep.subr.mxu0 0.0
    %3154 = vmatpush1.msra.mxu0 %v3141
    %3155 = vmatprep.subr.mxu0 0.0
    %3156 = vmatpush1.msra.mxu0 %v3142
    %3157 = vmatprep.subr.mxu0 0.0
    %3158 = vmatpush1.msra.mxu0 0.0
    %3159 = vmatprep.subr.mxu0 0.0
    %3160 = vmatpush1.msra.mxu0 0.0
    %3161 = vmatprep.subr.mxu0 0.0
    %3162 = vmatpush1.msra.mxu0 0.0
    %3163 = vmatprep.subr.mxu0 0.0
    %3164 = vmatpush1.msra.mxu0 0.0
    %3165 = vmatprep.subr.mxu0 0.0
    %3166 = vmatpush1.msra.mxu0 0.0
    %3167 = vmatprep.subr.mxu0 0.0
    %3168 = vmatpush1.msra.mxu0 0.0
    %3169 = vmatprep.subr.mxu0 0.0
    %3170 = vmatpush1.msra.mxu0 0.0
    %3171 = vmatprep.subr.mxu0 0.0
    %3172 = vmatpush1.msra.mxu0 0.0
    %3173 = vmatprep.subr.mxu0 0.0
    %3174 = vmatpush1.msra.mxu0 0.0
    %3175 = vmatprep.subr.mxu0 0.0
    %3176 = vmatpush1.msra.mxu0 0.0
    %3177 = vmatprep.subr.mxu0 0.0
    %3178 = vmatpush1.msra.mxu0 0.0
    %3179 = vmatprep.subr.mxu0 0.0
    %3180 = vmatpush1.msra.mxu0 0.0
    %3181 = vmatprep.subr.mxu0 0.0
    %3182 = vmatpush1.msra.mxu0 0.0
    %3183 = vmatprep.subr.mxu0 0.0
    %3184 = vmatpush1.msra.mxu0 0.0
    %3185 = vmatprep.subr.mxu0 0.0
    %3186 = vmatpush1.msra.mxu0 0.0
    %3187 = vmatprep.subr.mxu0 0.0
    %3188 = vmatpush1.msra.mxu0 0.0
    %3189 = vmatprep.subr.mxu0 0.0
    %3190 = vmatpush1.msra.mxu0 0.0
    %3191 = vmatprep.subr.mxu0 0.0
    %3192 = vmatpush1.msra.mxu0 0.0
    %3193 = vmatprep.subr.mxu0 0.0
    %3194 = vmatpush1.msra.mxu0 0.0
    %3195 = vmatprep.subr.mxu0 0.0
    %3196 = vmatpush1.msra.mxu0 0.0
    %3197 = vmatprep.subr.mxu0 0.0
    %3198 = vmatpush1.msra.mxu0 0.0
    %3199 = vmatprep.subr.mxu0 0.0
    %3200 = vmatpush1.msra.mxu0 0.0
    %3201 = vmatprep.subr.mxu0 0.0
    %3202 = vmatpush1.msra.mxu0 0.0
    %3203 = vmatprep.subr.mxu0 0.0
    %3204 = vmatpush1.msra.mxu0 0.0
    %3205 = vmatprep.subr.mxu0 0.0
    %3206 = vmatpush1.msra.mxu0 0.0
    %3207 = vmatprep.subr.mxu0 0.0
    %3208 = vmatpush1.msra.mxu0 0.0
    %3209 = vmatprep.subr.mxu0 0.0
    %3210 = vmatpush1.msra.mxu0 0.0
    %3211 = vmatprep.subr.mxu0 0.0
    %3212 = vmatpush1.msra.mxu0 0.0
    %3213 = vmatprep.mubr.f32.mxu0 0.0
    %3214 = vmatmul.mubr.f32.gmra.mrb[0].mxu0 %v3144
    %v3215 = vpop.f32.mrb[0].mxu0
    %v3216 = vadd.f32 0.0, %v3215
    %v3217 = vpop.f32.mrb[0].mxu0
    %3218 = vmatprep.mubr.f32.mxu0 0.0
    %3219 = vmatmul.mubr.f32.gmra.mrb[0].mxu0 %v3147
    %v3220 = vpop.f32.mrb[0].mxu0
    %v3221 = vadd.f32 0.0, %v3220
    %v3222 = vpop.f32.mrb[0].mxu0
    %3223 = vdwg.mxu0
    %v3224 = vsub.f32 0.0, %v3216
    %v3225 = vsub.f32 0.0, %v3221
    %v3226 = vmul.f32 %v3224, 1.442695
    %v3227 = vpow.pop %v3226
    %v3228 = vmul.f32 %v3225, 1.442695
    %v3229 = vpow.pop %v3228
    %v3230 = vadd.f32 %v3227, 1.0
    %v3231 = vadd.f32 %v3229, 1.0
    %v3232 = vrcp.pop %v3230
    %v3233 = vmul.f32 1.0, %v3232
    %v3234 = vrcp.pop %v3231
    %v3235 = vmul.f32 1.0, %v3234
    %v3236 = vmul.f32 %v3216, %v3233
    %v3237 = vmul.f32 %v3221, %v3235
    %3240 = vrot.lane.b32.xlu0 %v3216, 64
    %v3241 = vpop.permute.xlu0 %3240
    %3242 = vrot.lane.b32.xlu0 %v3221, 64
    %v3243 = vpop.permute.xlu0 %3242
    %v3246 = vmul.f32 %v3236, %v3241
    %v3247 = vmul.f32 %v3237, %v3243
    %v3248 = vld [vmem:[%s22] sm:$0xff]
    %v3249 = vld [vmem:[%s22 + $0x8] sm:$0xff]
    %v3250 = vld [vmem:[%s22 + $0x10] sm:$0xff]
    %v3251 = vld [vmem:[%s22 + $0x18] sm:$0xff]
    %v3252 = vld [vmem:[%s22 + $0x20] sm:$0xff]
    %v3253 = vld [vmem:[%s22 + $0x28] sm:$0xff]
    %v3254 = vld [vmem:[%s22 + $0x30] sm:$0xff]
    %v3255 = vld [vmem:[%s22 + $0x38] sm:$0xff]
    %v3257 = vsel %vm528, %v3246, 0
    %v3260 = vsel %vm528, %v3247, 0
    %3262 = vmatprep.subr.mxu0 0.0
    %3263 = vmatpush1.msra.mxu0 %v3248
    %3264 = vmatprep.subr.mxu0 0.0
    %3265 = vmatpush1.msra.mxu0 %v3249
    %3266 = vmatprep.subr.mxu0 0.0
    %3267 = vmatpush1.msra.mxu0 %v3250
    %3268 = vmatprep.subr.mxu0 0.0
    %3269 = vmatpush1.msra.mxu0 %v3251
    %3270 = vmatprep.subr.mxu0 0.0
    %3271 = vmatpush1.msra.mxu0 %v3252
    %3272 = vmatprep.subr.mxu0 0.0
    %3273 = vmatpush1.msra.mxu0 %v3253
    %3274 = vmatprep.subr.mxu0 0.0
    %3275 = vmatpush1.msra.mxu0 %v3254
    %3276 = vmatprep.subr.mxu0 0.0
    %3277 = vmatpush1.msra.mxu0 %v3255
    %3278 = vmatprep.subr.mxu0 0.0
    %3279 = vmatpush1.msra.mxu0 0.0
    %3280 = vmatprep.subr.mxu0 0.0
    %3281 = vmatpush1.msra.mxu0 0.0
    %3282 = vmatprep.subr.mxu0 0.0
    %3283 = vmatpush1.msra.mxu0 0.0
    %3284 = vmatprep.subr.mxu0 0.0
    %3285 = vmatpush1.msra.mxu0 0.0
    %3286 = vmatprep.subr.mxu0 0.0
    %3287 = vmatpush1.msra.mxu0 0.0
    %3288 = vmatprep.subr.mxu0 0.0
    %3289 = vmatpush1.msra.mxu0 0.0
    %3290 = vmatprep.subr.mxu0 0.0
    %3291 = vmatpush1.msra.mxu0 0.0
    %3292 = vmatprep.subr.mxu0 0.0
    %3293 = vmatpush1.msra.mxu0 0.0
    %3294 = vmatprep.subr.mxu0 0.0
    %3295 = vmatpush1.msra.mxu0 0.0
    %3296 = vmatprep.subr.mxu0 0.0
    %3297 = vmatpush1.msra.mxu0 0.0
    %3298 = vmatprep.subr.mxu0 0.0
    %3299 = vmatpush1.msra.mxu0 0.0
    %3300 = vmatprep.subr.mxu0 0.0
    %3301 = vmatpush1.msra.mxu0 0.0
    %3302 = vmatprep.subr.mxu0 0.0
    %3303 = vmatpush1.msra.mxu0 0.0
    %3304 = vmatprep.subr.mxu0 0.0
    %3305 = vmatpush1.msra.mxu0 0.0
    %3306 = vmatprep.subr.mxu0 0.0
    %3307 = vmatpush1.msra.mxu0 0.0
    %3308 = vmatprep.subr.mxu0 0.0
    %3309 = vmatpush1.msra.mxu0 0.0
    %3310 = vmatprep.subr.mxu0 0.0
    %3311 = vmatpush1.msra.mxu0 0.0
    %3312 = vmatprep.subr.mxu0 0.0
    %3313 = vmatpush1.msra.mxu0 0.0
    %3314 = vmatprep.subr.mxu0 0.0
    %3315 = vmatpush1.msra.mxu0 0.0
    %3316 = vmatprep.subr.mxu0 0.0
    %3317 = vmatpush1.msra.mxu0 0.0
    %3318 = vmatprep.subr.mxu0 0.0
    %3319 = vmatpush1.msra.mxu0 0.0
    %3320 = vmatprep.subr.mxu0 0.0
    %3321 = vmatpush1.msra.mxu0 0.0
    %3322 = vmatprep.subr.mxu0 0.0
    %3323 = vmatpush1.msra.mxu0 0.0
    %3324 = vmatprep.subr.mxu0 0.0
    %3325 = vmatpush1.msra.mxu0 0.0
    %3326 = vmatprep.mubr.f32.mxu0 0.0
    %3327 = vmatmul.mubr.f32.gmra.mrb[0].mxu0 %v3257
    %v3328 = vpop.f32.mrb[0].mxu0
    %v3329 = vadd.f32 0.0, %v3328
    %v3330 = vpop.f32.mrb[0].mxu0
    %3331 = vmatprep.mubr.f32.mxu0 0.0
    %3332 = vmatmul.mubr.f32.gmra.mrb[0].mxu0 %v3260
    %v3333 = vpop.f32.mrb[0].mxu0
    %v3334 = vadd.f32 0.0, %v3333
    %v3335 = vpop.f32.mrb[0].mxu0
    %3336 = vdwg.mxu0
    %v3337 = vadd.f32 %v3112, %v3329
    %v3338 = vadd.f32 %v3113, %v3334
    %v3340 = vrot.slane %v3337, 7
    %v3343 = vrot.slane %v3338, 6
    %v3345 = vsel %vm433, %v3340, %v3343
    %v3346 = vld [vmem:[#allocation24] sm:$0x1]
    %v3347 = vmul.f32 %v3345, %v3345
    %vm3348 = vcmask 254976
    %v3349 = vsel %vm3348, %v3347, 0.0
    %3350 = vadd.xlane.f32.xlu0 %v3349
    %v3351 = vpop.xlane.xlu0 %3350
    %v3352 = vmul.f32 %v3351, %v288
    %v3353 = vadd.f32 %v3352, 1e-06
    %v3354 = vrsqrt.pop %v3353
    %v3355 = vmul.f32 %v3345, %v3354
    %v3357 = vlaneseq
    %v3358 = vshrl.u32 %v3357, 7
    %v3359 = vsub.s32 0, %v3358
    %v3360 = vrot.slane %v3346, %v3359
    %v3362 = vmul.f32 %v3355, %v3360
    %v3363 = vld [vmem:[%s24] sm:$0xff]
    %v3364 = vld [vmem:[%s24 + $0x8] sm:$0xff]
    %v3365 = vld [vmem:[%s24 + $0x10] sm:$0xff]
    %v3366 = vld [vmem:[%s24 + $0x18] sm:$0xff]
    %v3367 = vld [vmem:[%s24 + $0x20] sm:$0xff]
    %v3368 = vld [vmem:[%s24 + $0x28] sm:$0xff]
    %v3369 = vld [vmem:[%s24 + $0x30] sm:$0xff]
    %v3370 = vld [vmem:[%s24 + $0x38] sm:$0xff]
    %v3371 = vld [vmem:[%s24 + $0x40] sm:$0xff]
    %v3372 = vld [vmem:[%s24 + $0x48] sm:$0xff]
    %v3373 = vld [vmem:[%s24 + $0x50] sm:$0xff]
    %v3374 = vld [vmem:[%s24 + $0x58] sm:$0xff]
    %v3375 = vld [vmem:[%s24 + $0x60] sm:$0xff]
    %v3376 = vld [vmem:[%s24 + $0x68] sm:$0xff]
    %v3377 = vld [vmem:[%s24 + $0x70] sm:$0xff]
    %v3378 = vld [vmem:[%s24 + $0x78] sm:$0xff]
    %v3379 = vld [vmem:[%s24 + $0x80] sm:$0xff]
    %v3380 = vld [vmem:[%s24 + $0x88] sm:$0xff]
    %v3381 = vld [vmem:[%s24 + $0x90] sm:$0xff]
    %v3382 = vld [vmem:[%s24 + $0x98] sm:$0xff]
    %v3383 = vld [vmem:[%s24 + $0xa0] sm:$0xff]
    %v3384 = vld [vmem:[%s24 + $0xa8] sm:$0xff]
    %v3385 = vld [vmem:[%s24 + $0xb0] sm:$0xff]
    %v3386 = vld [vmem:[%s24 + $0xb8] sm:$0xff]
    %v3387 = vld [vmem:[%s24 + $0xc0] sm:$0xff]
    %v3388 = vld [vmem:[%s24 + $0xc8] sm:$0xff]
    %v3389 = vld [vmem:[%s24 + $0xd0] sm:$0xff]
    %v3390 = vld [vmem:[%s24 + $0xd8] sm:$0xff]
    %v3391 = vld [vmem:[%s24 + $0xe0] sm:$0xff]
    %v3392 = vld [vmem:[%s24 + $0xe8] sm:$0xff]
    %v3393 = vld [vmem:[%s24 + $0xf0] sm:$0xff]
    %v3394 = vld [vmem:[%s24 + $0xf8] sm:$0xff]
    %v3395 = vld [vmem:[#allocation25] sm:$0xff]
    %v3397 = vlaneseq
    %v3398 = vshrl.u32 %v3397, 7
    %v3399 = vsub.s32 0, %v3398
    %v3400 = vrot.slane %v3395, %v3399
    %v3401 = vlaneseq
    %v3402 = vshrl.u32 %v3401, 7
    %v3403 = vsub.s32 1, %v3402
    %v3404 = vrot.slane %v3395, %v3403
    %v3405 = vlaneseq
    %v3406 = vshrl.u32 %v3405, 7
    %v3407 = vsub.s32 2, %v3406
    %v3408 = vrot.slane %v3395, %v3407
    %v3409 = vlaneseq
    %v3410 = vshrl.u32 %v3409, 7
    %v3411 = vsub.s32 3, %v3410
    %v3412 = vrot.slane %v3395, %v3411
    %v3413 = vlaneseq
    %v3414 = vshrl.u32 %v3413, 7
    %v3415 = vsub.s32 4, %v3414
    %v3416 = vrot.slane %v3395, %v3415
    %v3417 = vlaneseq
    %v3418 = vshrl.u32 %v3417, 7
    %v3419 = vsub.s32 5, %v3418
    %v3420 = vrot.slane %v3395, %v3419
    %v3421 = vlaneseq
    %v3422 = vshrl.u32 %v3421, 7
    %v3423 = vsub.s32 6, %v3422
    %v3424 = vrot.slane %v3395, %v3423
    %v3425 = vlaneseq
    %v3426 = vshrl.u32 %v3425, 7
    %v3427 = vsub.s32 7, %v3426
    %v3428 = vrot.slane %v3395, %v3427
    %v3438 = vsel %vm281, %v3362, 0
    %3440 = vmatprep.subr.mxu0 %v3364
    %3441 = vmatpush1.msra.mxu0 %v3363
    %3442 = vmatprep.subr.mxu0 %v3372
    %3443 = vmatpush1.msra.mxu0 %v3371
    %3444 = vmatprep.subr.mxu0 %v3380
    %3445 = vmatpush1.msra.mxu0 %v3379
    %3446 = vmatprep.subr.mxu0 %v3388
    %3447 = vmatpush1.msra.mxu0 %v3387
    %3448 = vmatprep.subr.mxu0 0.0
    %3449 = vmatpush1.msra.mxu0 0.0
    %3450 = vmatprep.subr.mxu0 0.0
    %3451 = vmatpush1.msra.mxu0 0.0
    %3452 = vmatprep.subr.mxu0 0.0
    %3453 = vmatpush1.msra.mxu0 0.0
    %3454 = vmatprep.subr.mxu0 0.0
    %3455 = vmatpush1.msra.mxu0 0.0
    %3456 = vmatprep.subr.mxu0 0.0
    %3457 = vmatpush1.msra.mxu0 0.0
    %3458 = vmatprep.subr.mxu0 0.0
    %3459 = vmatpush1.msra.mxu0 0.0
    %3460 = vmatprep.subr.mxu0 0.0
    %3461 = vmatpush1.msra.mxu0 0.0
    %3462 = vmatprep.subr.mxu0 0.0
    %3463 = vmatpush1.msra.mxu0 0.0
    %3464 = vmatprep.subr.mxu0 0.0
    %3465 = vmatpush1.msra.mxu0 0.0
    %3466 = vmatprep.subr.mxu0 0.0
    %3467 = vmatpush1.msra.mxu0 0.0
    %3468 = vmatprep.subr.mxu0 0.0
    %3469 = vmatpush1.msra.mxu0 0.0
    %3470 = vmatprep.subr.mxu0 0.0
    %3471 = vmatpush1.msra.mxu0 0.0
    %3472 = vmatprep.subr.mxu0 0.0
    %3473 = vmatpush1.msra.mxu0 0.0
    %3474 = vmatprep.subr.mxu0 0.0
    %3475 = vmatpush1.msra.mxu0 0.0
    %3476 = vmatprep.subr.mxu0 0.0
    %3477 = vmatpush1.msra.mxu0 0.0
    %3478 = vmatprep.subr.mxu0 0.0
    %3479 = vmatpush1.msra.mxu0 0.0
    %3480 = vmatprep.subr.mxu0 0.0
    %3481 = vmatpush1.msra.mxu0 0.0
    %3482 = vmatprep.subr.mxu0 0.0
    %3483 = vmatpush1.msra.mxu0 0.0
    %3484 = vmatprep.subr.mxu0 0.0
    %3485 = vmatpush1.msra.mxu0 0.0
    %3486 = vmatprep.subr.mxu0 0.0
    %3487 = vmatpush1.msra.mxu0 0.0
    %3488 = vmatprep.subr.mxu0 0.0
    %3489 = vmatpush1.msra.mxu0 0.0
    %3490 = vmatprep.subr.mxu0 0.0
    %3491 = vmatpush1.msra.mxu0 0.0
    %3492 = vmatprep.subr.mxu0 0.0
    %3493 = vmatpush1.msra.mxu0 0.0
    %3494 = vmatprep.subr.mxu0 0.0
    %3495 = vmatpush1.msra.mxu0 0.0
    %3496 = vmatprep.subr.mxu0 0.0
    %3497 = vmatpush1.msra.mxu0 0.0
    %3498 = vmatprep.subr.mxu0 0.0
    %3499 = vmatpush1.msra.mxu0 0.0
    %3500 = vmatprep.subr.mxu0 0.0
    %3501 = vmatpush1.msra.mxu0 0.0
    %3502 = vmatprep.subr.mxu0 0.0
    %3503 = vmatpush1.msra.mxu0 0.0
    %3504 = vmatprep.mubr.f32.mxu0 0.0
    %3505 = vmatmul.mubr.f32.gmra.mrb[0].mxu0 %v3438
    %v3506 = vpop.f32.mrb[0].mxu0
    %v3507 = vadd.f32 %v3400, %v3506
    %v3508 = vpop.f32.mrb[0].mxu0
    %v3509 = vadd.f32 %v3404, %v3508
    %3510 = vdwg.mxu0
    %3511 = vmatprep.subr.mxu0 %v3366
    %3512 = vmatpush1.msra.mxu0 %v3365
    %3513 = vmatprep.subr.mxu0 %v3374
    %3514 = vmatpush1.msra.mxu0 %v3373
    %3515 = vmatprep.subr.mxu0 %v3382
    %3516 = vmatpush1.msra.mxu0 %v3381
    %3517 = vmatprep.subr.mxu0 %v3390
    %3518 = vmatpush1.msra.mxu0 %v3389
    %3519 = vmatprep.subr.mxu0 0.0
    %3520 = vmatpush1.msra.mxu0 0.0
    %3521 = vmatprep.subr.mxu0 0.0
    %3522 = vmatpush1.msra.mxu0 0.0
    %3523 = vmatprep.subr.mxu0 0.0
    %3524 = vmatpush1.msra.mxu0 0.0
    %3525 = vmatprep.subr.mxu0 0.0
    %3526 = vmatpush1.msra.mxu0 0.0
    %3527 = vmatprep.subr.mxu0 0.0
    %3528 = vmatpush1.msra.mxu0 0.0
    %3529 = vmatprep.subr.mxu0 0.0
    %3530 = vmatpush1.msra.mxu0 0.0
    %3531 = vmatprep.subr.mxu0 0.0
    %3532 = vmatpush1.msra.mxu0 0.0
    %3533 = vmatprep.subr.mxu0 0.0
    %3534 = vmatpush1.msra.mxu0 0.0
    %3535 = vmatprep.subr.mxu0 0.0
    %3536 = vmatpush1.msra.mxu0 0.0
    %3537 = vmatprep.subr.mxu0 0.0
    %3538 = vmatpush1.msra.mxu0 0.0
    %3539 = vmatprep.subr.mxu0 0.0
    %3540 = vmatpush1.msra.mxu0 0.0
    %3541 = vmatprep.subr.mxu0 0.0
    %3542 = vmatpush1.msra.mxu0 0.0
    %3543 = vmatprep.subr.mxu0 0.0
    %3544 = vmatpush1.msra.mxu0 0.0
    %3545 = vmatprep.subr.mxu0 0.0
    %3546 = vmatpush1.msra.mxu0 0.0
    %3547 = vmatprep.subr.mxu0 0.0
    %3548 = vmatpush1.msra.mxu0 0.0
    %3549 = vmatprep.subr.mxu0 0.0
    %3550 = vmatpush1.msra.mxu0 0.0
    %3551 = vmatprep.subr.mxu0 0.0
    %3552 = vmatpush1.msra.mxu0 0.0
    %3553 = vmatprep.subr.mxu0 0.0
    %3554 = vmatpush1.msra.mxu0 0.0
    %3555 = vmatprep.subr.mxu0 0.0
    %3556 = vmatpush1.msra.mxu0 0.0
    %3557 = vmatprep.subr.mxu0 0.0
    %3558 = vmatpush1.msra.mxu0 0.0
    %3559 = vmatprep.subr.mxu0 0.0
    %3560 = vmatpush1.msra.mxu0 0.0
    %3561 = vmatprep.subr.mxu0 0.0
    %3562 = vmatpush1.msra.mxu0 0.0
    %3563 = vmatprep.subr.mxu0 0.0
    %3564 = vmatpush1.msra.mxu0 0.0
    %3565 = vmatprep.subr.mxu0 0.0
    %3566 = vmatpush1.msra.mxu0 0.0
    %3567 = vmatprep.subr.mxu0 0.0
    %3568 = vmatpush1.msra.mxu0 0.0
    %3569 = vmatprep.subr.mxu0 0.0
    %3570 = vmatpush1.msra.mxu0 0.0
    %3571 = vmatprep.subr.mxu0 0.0
    %3572 = vmatpush1.msra.mxu0 0.0
    %3573 = vmatprep.subr.mxu0 0.0
    %3574 = vmatpush1.msra.mxu0 0.0
    %3575 = vmatprep.mubr.f32.mxu0 0.0
    %3576 = vmatmul.mubr.f32.gmra.mrb[0].mxu0 %v3438
    %v3577 = vpop.f32.mrb[0].mxu0
    %v3578 = vadd.f32 %v3408, %v3577
    %v3579 = vpop.f32.mrb[0].mxu0
    %v3580 = vadd.f32 %v3412, %v3579
    %3581 = vdwg.mxu0
    %3582 = vmatprep.subr.mxu0 %v3368
    %3583 = vmatpush1.msra.mxu0 %v3367
    %3584 = vmatprep.subr.mxu0 %v3376
    %3585 = vmatpush1.msra.mxu0 %v3375
    %3586 = vmatprep.subr.mxu0 %v3384
    %3587 = vmatpush1.msra.mxu0 %v3383
    %3588 = vmatprep.subr.mxu0 %v3392
    %3589 = vmatpush1.msra.mxu0 %v3391
    %3590 = vmatprep.subr.mxu0 0.0
    %3591 = vmatpush1.msra.mxu0 0.0
    %3592 = vmatprep.subr.mxu0 0.0
    %3593 = vmatpush1.msra.mxu0 0.0
    %3594 = vmatprep.subr.mxu0 0.0
    %3595 = vmatpush1.msra.mxu0 0.0
    %3596 = vmatprep.subr.mxu0 0.0
    %3597 = vmatpush1.msra.mxu0 0.0
    %3598 = vmatprep.subr.mxu0 0.0
    %3599 = vmatpush1.msra.mxu0 0.0
    %3600 = vmatprep.subr.mxu0 0.0
    %3601 = vmatpush1.msra.mxu0 0.0
    %3602 = vmatprep.subr.mxu0 0.0
    %3603 = vmatpush1.msra.mxu0 0.0
    %3604 = vmatprep.subr.mxu0 0.0
    %3605 = vmatpush1.msra.mxu0 0.0
    %3606 = vmatprep.subr.mxu0 0.0
    %3607 = vmatpush1.msra.mxu0 0.0
    %3608 = vmatprep.subr.mxu0 0.0
    %3609 = vmatpush1.msra.mxu0 0.0
    %3610 = vmatprep.subr.mxu0 0.0
    %3611 = vmatpush1.msra.mxu0 0.0
    %3612 = vmatprep.subr.mxu0 0.0
    %3613 = vmatpush1.msra.mxu0 0.0
    %3614 = vmatprep.subr.mxu0 0.0
    %3615 = vmatpush1.msra.mxu0 0.0
    %3616 = vmatprep.subr.mxu0 0.0
    %3617 = vmatpush1.msra.mxu0 0.0
    %3618 = vmatprep.subr.mxu0 0.0
    %3619 = vmatpush1.msra.mxu0 0.0
    %3620 = vmatprep.subr.mxu0 0.0
    %3621 = vmatpush1.msra.mxu0 0.0
    %3622 = vmatprep.subr.mxu0 0.0
    %3623 = vmatpush1.msra.mxu0 0.0
    %3624 = vmatprep.subr.mxu0 0.0
    %3625 = vmatpush1.msra.mxu0 0.0
    %3626 = vmatprep.subr.mxu0 0.0
    %3627 = vmatpush1.msra.mxu0 0.0
    %3628 = vmatprep.subr.mxu0 0.0
    %3629 = vmatpush1.msra.mxu0 0.0
    %3630 = vmatprep.subr.mxu0 0.0
    %3631 = vmatpush1.msra.mxu0 0.0
    %3632 = vmatprep.subr.mxu0 0.0
    %3633 = vmatpush1.msra.mxu0 0.0
    %3634 = vmatprep.subr.mxu0 0.0
    %3635 = vmatpush1.msra.mxu0 0.0
    %3636 = vmatprep.subr.mxu0 0.0
    %3637 = vmatpush1.msra.mxu0 0.0
    %3638 = vmatprep.subr.mxu0 0.0
    %3639 = vmatpush1.msra.mxu0 0.0
    %3640 = vmatprep.subr.mxu0 0.0
    %3641 = vmatpush1.msra.mxu0 0.0
    %3642 = vmatprep.subr.mxu0 0.0
    %3643 = vmatpush1.msra.mxu0 0.0
    %3644 = vmatprep.subr.mxu0 0.0
    %3645 = vmatpush1.msra.mxu0 0.0
    %3646 = vmatprep.mubr.f32.mxu0 0.0
    %3647 = vmatmul.mubr.f32.gmra.mrb[0].mxu0 %v3438
    %v3648 = vpop.f32.mrb[0].mxu0
    %v3649 = vadd.f32 %v3416, %v3648
    %v3650 = vpop.f32.mrb[0].mxu0
    %v3651 = vadd.f32 %v3420, %v3650
    %3652 = vdwg.mxu0
    %3653 = vmatprep.subr.mxu0 %v3370
    %3654 = vmatpush1.msra.mxu0 %v3369
    %3655 = vmatprep.subr.mxu0 %v3378
    %3656 = vmatpush1.msra.mxu0 %v3377
    %3657 = vmatprep.subr.mxu0 %v3386
    %3658 = vmatpush1.msra.mxu0 %v3385
    %3659 = vmatprep.subr.mxu0 %v3394
    %3660 = vmatpush1.msra.mxu0 %v3393
    %3661 = vmatprep.subr.mxu0 0.0
    %3662 = vmatpush1.msra.mxu0 0.0
    %3663 = vmatprep.subr.mxu0 0.0
    %3664 = vmatpush1.msra.mxu0 0.0
    %3665 = vmatprep.subr.mxu0 0.0
    %3666 = vmatpush1.msra.mxu0 0.0
    %3667 = vmatprep.subr.mxu0 0.0
    %3668 = vmatpush1.msra.mxu0 0.0
    %3669 = vmatprep.subr.mxu0 0.0
    %3670 = vmatpush1.msra.mxu0 0.0
    %3671 = vmatprep.subr.mxu0 0.0
    %3672 = vmatpush1.msra.mxu0 0.0
    %3673 = vmatprep.subr.mxu0 0.0
    %3674 = vmatpush1.msra.mxu0 0.0
    %3675 = vmatprep.subr.mxu0 0.0
    %3676 = vmatpush1.msra.mxu0 0.0
    %3677 = vmatprep.subr.mxu0 0.0
    %3678 = vmatpush1.msra.mxu0 0.0
    %3679 = vmatprep.subr.mxu0 0.0
    %3680 = vmatpush1.msra.mxu0 0.0
    %3681 = vmatprep.subr.mxu0 0.0
    %3682 = vmatpush1.msra.mxu0 0.0
    %3683 = vmatprep.subr.mxu0 0.0
    %3684 = vmatpush1.msra.mxu0 0.0
    %3685 = vmatprep.subr.mxu0 0.0
    %3686 = vmatpush1.msra.mxu0 0.0
    %3687 = vmatprep.subr.mxu0 0.0
    %3688 = vmatpush1.msra.mxu0 0.0
    %3689 = vmatprep.subr.mxu0 0.0
    %3690 = vmatpush1.msra.mxu0 0.0
    %3691 = vmatprep.subr.mxu0 0.0
    %3692 = vmatpush1.msra.mxu0 0.0
    %3693 = vmatprep.subr.mxu0 0.0
    %3694 = vmatpush1.msra.mxu0 0.0
    %3695 = vmatprep.subr.mxu0 0.0
    %3696 = vmatpush1.msra.mxu0 0.0
    %3697 = vmatprep.subr.mxu0 0.0
    %3698 = vmatpush1.msra.mxu0 0.0
    %3699 = vmatprep.subr.mxu0 0.0
    %3700 = vmatpush1.msra.mxu0 0.0
    %3701 = vmatprep.subr.mxu0 0.0
    %3702 = vmatpush1.msra.mxu0 0.0
    %3703 = vmatprep.subr.mxu0 0.0
    %3704 = vmatpush1.msra.mxu0 0.0
    %3705 = vmatprep.subr.mxu0 0.0
    %3706 = vmatpush1.msra.mxu0 0.0
    %3707 = vmatprep.subr.mxu0 0.0
    %3708 = vmatpush1.msra.mxu0 0.0
    %3709 = vmatprep.subr.mxu0 0.0
    %3710 = vmatpush1.msra.mxu0 0.0
    %3711 = vmatprep.subr.mxu0 0.0
    %3712 = vmatpush1.msra.mxu0 0.0
    %3713 = vmatprep.subr.mxu0 0.0
    %3714 = vmatpush1.msra.mxu0 0.0
    %3715 = vmatprep.subr.mxu0 0.0
    %3716 = vmatpush1.msra.mxu0 0.0
    %3717 = vmatprep.mubr.f32.mxu0 0.0
    %3718 = vmatmul.mubr.f32.gmra.mrb[0].mxu0 %v3438
    %v3719 = vpop.f32.mrb[0].mxu0
    %v3720 = vadd.f32 %v3424, %v3719
    %v3721 = vpop.f32.mrb[0].mxu0
    %v3722 = vadd.f32 %v3428, %v3721
    %3723 = vdwg.mxu0
    %v3732 = vcombine.low %v3507, %v3509
    %v3733 = vcombine.low %v3578, %v3580
    %v3735 = vunpack.c.l.s4 1983009808
    %v3736 = vunpack.c.0.s8 %v3735
    %v3737 = vlaneseq
    %v3738 = vshrl.u32 %v3737, 7
    %v3739 = vsub.s32 %v3736, %v3738
    %v3740 = vrot.slane %v3732, %v3739
    %v3742 = vunpack.c.l.s4 1983009808
    %v3743 = vunpack.c.0.s8 %v3742
    %v3744 = vlaneseq
    %v3745 = vshrl.u32 %v3744, 7
    %v3746 = vsub.s32 %v3743, %v3745
    %v3747 = vrot.slane %v3733, %v3746
    %v3748 = vcombine.low %v3740, %v3747
    %v3749 = vcombine.low %v3649, %v3651
    %v3750 = vcombine.low %v3720, %v3722
    %v3752 = vunpack.c.l.s4 1983009808
    %v3753 = vunpack.c.0.s8 %v3752
    %v3754 = vlaneseq
    %v3755 = vshrl.u32 %v3754, 7
    %v3756 = vsub.s32 %v3753, %v3755
    %v3757 = vrot.slane %v3749, %v3756
    %v3759 = vunpack.c.l.s4 1983009808
    %v3760 = vunpack.c.0.s8 %v3759
    %v3761 = vlaneseq
    %v3762 = vshrl.u32 %v3761, 7
    %v3763 = vsub.s32 %v3760, %v3762
    %v3764 = vrot.slane %v3750, %v3763
    %v3765 = vcombine.low %v3757, %v3764
    %3768 = vst [vmem:[%s26] sm:$0xff] %v3748
    %3769 = vst [vmem:[%s26 + $0x8] sm:$0xff] %v3765
    // Predicated region
    $region170: #{jamba_actor_critic_forward.1} parent=1 // pred_check
      _
    $region171: #{jamba_actor_critic_forward.1} parent=1 // pred_check_branch
      %3771 = sbr.rel (0) target = $region173
    $region172: #{jamba_actor_critic_forward.1} parent=1 // pred_region
      _
    $region173: #{jamba_actor_critic_forward.1} parent=1 // pred_fallthru
      _
    // Predicated region
    $region174: #{jamba_actor_critic_forward.1} parent=1 // pred_check
      _
    $region175: #{jamba_actor_critic_forward.1} parent=1 // pred_check_branch
      %3773 = sbr.rel (0) target = $region177
    $region176: #{jamba_actor_critic_forward.1} parent=1 // pred_region
      _
    $region177: #{jamba_actor_critic_forward.1} parent=1 // pred_fallthru
      _
    %3774 = vsyncpa [#allocation3], 1
    %3775 = vsyncpa [#allocation5], 1
    %3776 = vsyncpa [#allocation8], 1
    %3777 = vsyncpa [#allocation11], 1
    %3778 = vsyncpa [#allocation14], 1
    %3779 = vsyncpa [#allocation17], 1
    %3780 = vsyncpa [#allocation20], 1
    %3781 = vsyncpa [#allocation23], 1
    %3782 = vsyncpa [#allocation26], 1

</llo_original>
